<compile_context>
chip_gen: v6e
topology: v6e:2x2x1
jax: 0.10.0
libtpu: 0.0.40
codegen_flags: <defaults>
</compile_context>

<pallas_src>
import functools

import jax
import jax.numpy as jnp
from jax.experimental import pallas as pl
from jax.experimental.pallas import tpu as pltpu


# ----------------------------------------------------------------------------
# Fused forward kernel (one grid step = `bt` images, end to end)
# ----------------------------------------------------------------------------
def fused_forward_kernel(
    x_ref,                      # (bt, H, W, Cin)            NHWC input tile
    w1_ref, b1_ref,             # (36*Cin, 4*C1), (1, 4*C1)  conv1 w/ fused pool
    w2_ref, b2_ref,             # (25*C1, C2),   (1, C2)     conv2 im2col weights
    fw1_ref, fb1_ref,           # (F, 120), (1, 120)         fc1 (rows NHWC-permuted)
    fw2_ref, fb2_ref,           # (120, 84), (1, 84)
    fw3_ref, fb3_ref,           # (84, 10), (1, 10)
    o_ref,                      # (1, bt, 10)
    xpad1_ref,                  # (bt, H+4, W+4, Cin)        VMEM scratch
    xpad2_ref,                  # (bt, H/2+4, W/2+4, C1)     VMEM scratch
    c2_ref,                     # (bt*(H/2)*(W/2), C2)       VMEM scratch
    *, bt, H, W, Cin, C1, C2, K, pad,
):
    H1, W1 = H // 2, W // 2          # spatial after pool1
    H2, W2 = H1 // 2, W1 // 2        # spatial after pool2
    M1 = bt * H1 * W1

    # ---- conv1 input: zero-pad inside the kernel (no host jnp.pad) ----------
    xpad1_ref[...] = jnp.zeros_like(xpad1_ref)
    xpad1_ref[:, pl.ds(pad, H), pl.ds(pad, W), :] = x_ref[...]

    # ---- conv1 + bias + 2x2 maxpool + ReLU as a single matmul ---------------
    # (K+1)x(K+1) taps at stride 2 cover, for each pooled pixel, the union of
    # the four 5x5 conv windows in its pool region; w1_ref embeds the conv
    # kernel at the 4 pool offsets (N = 4*C1), so the pool is a max over 4
    # contiguous lane blocks of the matmul output.
    cols = []
    for kh in range(K + 1):
        for kw in range(K + 1):
            win = xpad1_ref[:, pl.ds(kh, H1, stride=2), pl.ds(kw, W1, stride=2), :]
            cols.append(win.reshape(M1, Cin))
    patch1 = jnp.concatenate(cols, axis=-1)                         # (M1, 36*Cin)
    h1 = jnp.dot(patch1, w1_ref[...],
                 preferred_element_type=jnp.float32) + b1_ref[...]  # (M1, 4*C1)
    p1 = jnp.maximum(jnp.maximum(h1[:, 0 * C1:1 * C1], h1[:, 1 * C1:2 * C1]),
                     jnp.maximum(h1[:, 2 * C1:3 * C1], h1[:, 3 * C1:4 * C1]))
    p1 = jnp.maximum(p1, 0.0)                                       # (M1, C1)

    # ---- conv2 input: zero-pad the pooled map in VMEM -----------------------
    xpad2_ref[...] = jnp.zeros_like(xpad2_ref)
    xpad2_ref[:, pl.ds(pad, H1), pl.ds(pad, W1), :] = p1.reshape(bt, H1, W1, C1)

    # ---- conv2 + bias as a single im2col matmul ------------------------------
    cols = []
    for kh in range(K):
        for kw in range(K):
            win = xpad2_ref[:, pl.ds(kh, H1), pl.ds(kw, W1), :]
            cols.append(win.reshape(M1, C1))
    patch2 = jnp.concatenate(cols, axis=-1)                         # (M1, 25*C1)
    c2_ref[...] = jnp.dot(patch2, w2_ref[...],
                          preferred_element_type=jnp.float32) + b2_ref[...]

    # ---- 2x2 maxpool + ReLU + flatten (lane-wise concat, NHWC order) --------
    # fc1's rows were permuted at init time to match this ordering, so this is
    # exactly torch's  features(x).view(B, -1)  followed by the classifier.
    feats = []
    for y in range(H2):
        for x in range(W2):
            taps = []
            for dy in range(2):
                for dx in range(2):
                    r = (2 * y + dy) * W1 + (2 * x + dx)
                    idx = pl.ds(r, bt) if bt == 1 else pl.ds(r, bt, stride=H1 * W1)
                    taps.append(c2_ref[idx, :])                     # (bt, C2)
            feats.append(jnp.maximum(jnp.maximum(taps[0], taps[1]),
                                     jnp.maximum(taps[2], taps[3])))
    flat = jnp.maximum(jnp.concatenate(feats, axis=-1), 0.0)        # (bt, H2*W2*C2)

    # ---- classifier MLP (fully fused) ----------------------------------------
    z = jnp.maximum(jnp.dot(flat, fw1_ref[...],
                            preferred_element_type=jnp.float32) + fb1_ref[...], 0.0)
    z = jnp.maximum(jnp.dot(z, fw2_ref[...],
                            preferred_element_type=jnp.float32) + fb2_ref[...], 0.0)
    out = jnp.dot(z, fw3_ref[...],
                  preferred_element_type=jnp.float32) + fb3_ref[...]
    o_ref[0] = out


# ----------------------------------------------------------------------------
# Host-side, one-time parameter repacking (torch layouts -> kernel layouts)
# ----------------------------------------------------------------------------
def fuse_conv_pool_weights(w_hwio, bias):
    """Embed a 5x5 'same' conv at the four 2x2-pool offsets.

    Returns W of shape ((K+1)^2*Cin, 4*Cout) and bias (1, 4*Cout) such that for
    the (K+1)x(K+1) stride-2 im2col patch of a pooled pixel, patch @ W + b gives
    the four pre-pool conv outputs of its pool window (lane blocks ordered
    (dy, dx)); max over the 4 blocks == conv + bias + maxpool(2,2).
    """
    kh, kw, cin, cout = w_hwio.shape
    big = jnp.zeros((kh + 1, kw + 1, cin, 2, 2, cout), w_hwio.dtype)
    for dy in range(2):
        for dx in range(2):
            big = big.at[dy:dy + kh, dx:dx + kw, :, dy, dx, :].set(w_hwio)
    w_big = big.reshape((kh + 1) * (kw + 1) * cin, 4 * cout)
    b_big = jnp.tile(bias, 4).reshape(1, 4 * cout)
    return w_big, b_big


def prepare_kernel_params(params, h, w):
    conv1, conv2, fc = params
    (fw1, fb1), (fw2, fb2), (fw3, fb3) = fc

    w1b, b1b = fuse_conv_pool_weights(conv1["w"], conv1["b"])

    kh, kw, c1, c2 = conv2["w"].shape
    w2f = conv2["w"].reshape(kh * kw * c1, c2)
    b2r = conv2["b"].reshape(1, c2)

    # Fold the NHWC -> NCHW (torch .view) flatten permutation into fc1's rows.
    s = (h // 4) * (w // 4)
    torch_rows = (jnp.arange(c2)[None, :] * s + jnp.arange(s)[:, None]).reshape(-1)
    fw1p = fw1[torch_rows, :]

    return (w1b, b1b, w2f, b2r, fw1p, fb1.reshape(1, -1),
            fw2, fb2.reshape(1, -1), fw3, fb3.reshape(1, -1))


# ----------------------------------------------------------------------------
# Full forward: one fused pallas_call
# ----------------------------------------------------------------------------
def example_net_forward(x_nchw, kernel_params, *, batch_tile=1):
    (w1b, b1b, w2f, b2r, fw1p, fb1r, fw2, fb2r, fw3, fb3r) = kernel_params
    B, Cin, H, W = x_nchw.shape
    K, pad = 5, 2
    assert H % 4 == 0 and W % 4 == 0, "spatial dims must be divisible by 4"
    assert B % batch_tile == 0
    bt = batch_tile
    C1 = b1b.shape[1] // 4
    C2 = b2r.shape[1]
    nout = fb3r.shape[1]
    assert w1b.shape[0] == (K + 1) * (K + 1) * Cin
    H1, W1 = H // 2, W // 2
    nsteps = B // bt

    # Single tiny layout op outside the kernel: channels onto the lane axis.
    x_nhwc = jnp.transpose(x_nchw, (0, 2, 3, 1))

    kernel = functools.partial(fused_forward_kernel, bt=bt, H=H, W=W, Cin=Cin,
                               C1=C1, C2=C2, K=K, pad=pad)

    def full(a):  # whole-array block, resident across all grid steps
        return pl.BlockSpec(a.shape, lambda i: (0,) * a.ndim)

    out = pl.pallas_call(
        kernel,
        out_shape=jax.ShapeDtypeStruct((nsteps, bt, nout), jnp.float32),
        grid_spec=pltpu.PrefetchScalarGridSpec(
            num_scalar_prefetch=0,
            grid=(nsteps,),
            in_specs=[
                pl.BlockSpec((bt, H, W, Cin), lambda i: (i, 0, 0, 0)),
                full(w1b), full(b1b), full(w2f), full(b2r),
                full(fw1p), full(fb1r), full(fw2), full(fb2r),
                full(fw3), full(fb3r),
            ],
            out_specs=pl.BlockSpec((1, bt, nout), lambda i: (i, 0, 0)),
            scratch_shapes=[
                pltpu.VMEM((bt, H + 2 * pad, W + 2 * pad, Cin), jnp.float32),
                pltpu.VMEM((bt, H1 + 2 * pad, W1 + 2 * pad, C1), jnp.float32),
                pltpu.VMEM((bt * H1 * W1, C2), jnp.float32),
            ],
        ),
        compiler_params=pltpu.CompilerParams(dimension_semantics=("parallel",)),
    )(x_nhwc, w1b, b1b, w2f, b2r, fw1p, fb1r, fw2, fb2r, fw3, fb3r)

    return {"prediction": out.reshape(B, nout)}


# ----------------------------------------------------------------------------
# Deterministic parameter init (torch layouts, transposed for JAX/HWIO)
# ----------------------------------------------------------------------------
def init_params(key, cin, h, w):
    ks = jax.random.split(key, 10)

    def u(k, shape, fan_in):
        bound = 1.0 / jnp.sqrt(jnp.float32(fan_in))
        return jax.random.uniform(k, shape, jnp.float32, -bound, bound)

    # torch Conv2d weight layout (Cout, Cin, KH, KW) -> HWIO
    w1 = u(ks[0], (6, cin, 5, 5), cin * 25).transpose(2, 3, 1, 0)
    b1 = u(ks[1], (6,), cin * 25)
    w2 = u(ks[2], (16, 6, 5, 5), 6 * 25).transpose(2, 3, 1, 0)
    b2 = u(ks[3], (16,), 6 * 25)

    feat = 16 * (h // 4) * (w // 4)
    # torch Linear weight layout (out, in) -> (in, out); rows in torch NCHW order
    fw1 = u(ks[4], (120, feat), feat).T
    fb1 = u(ks[5], (120,), feat)
    fw2 = u(ks[6], (84, 120), 120).T
    fb2 = u(ks[7], (84,), 120)
    fw3 = u(ks[8], (10, 84), 84).T
    fb3 = u(ks[9], (10,), 84)
    return ({"w": w1, "b": b1}, {"w": w2, "b": b2},
            ((fw1, fb1), (fw2, fb2), (fw3, fb3)))


# ----------------------------------------------------------------------------
# Pure-JAX reference for correctness checking
# ----------------------------------------------------------------------------
def reference_forward(x_nchw, params):
    conv1, conv2, fc = params

    def block(x, w, b):
        y = jax.lax.conv_general_dilated(
            x, w, (1, 1), [(2, 2), (2, 2)],
            dimension_numbers=("NHWC", "HWIO", "NHWC"),
            precision=jax.lax.Precision.HIGHEST)
        y = y + b[None, None, None, :]
        y = jax.lax.reduce_window(y, -jnp.inf, jax.lax.max,
                                  (1, 2, 2, 1), (1, 2, 2, 1), "VALID")
        return jnp.maximum(y, 0.0)

    x = jnp.transpose(x_nchw, (0, 2, 3, 1))
    x = block(x, conv1["w"], conv1["b"])
    x = block(x, conv2["w"], conv2["b"])
    x = jnp.transpose(x, (0, 3, 1, 2)).reshape(x.shape[0], -1)
    (w1, b1), (w2, b2), (w3, b3) = fc
    hi = jax.lax.Precision.HIGHEST
    h = jnp.maximum(jnp.dot(x, w1, precision=hi) + b1, 0.0)
    h = jnp.maximum(jnp.dot(h, w2, precision=hi) + b2, 0.0)
    return jnp.dot(h, w3, precision=hi) + b3


if __name__ == "__main__":
    B, C, H, W = 2, 4, 16, 16
    key = jax.random.PRNGKey(0)
    pkey, xkey = jax.random.split(key)

    params = init_params(pkey, C, H, W)
    kparams = prepare_kernel_params(params, H, W)
    x = jax.random.normal(xkey, (B, C, H, W), jnp.float32)   # 'image' in NCHW

    out = example_net_forward(x, kparams)["prediction"]
    out = jax.block_until_ready(out)

    ref = reference_forward(x, params)
    assert out.shape == (B, 10), out.shape
    assert jnp.allclose(out, ref, atol=1e-2, rtol=1e-2), "mismatch vs JAX reference"

    print("KERNEL_OK")
</pallas_src>

<mosaic_0001>
module attributes {stable_mosaic.version = 11 : i64} {
  func.func @fused_forward_kernel(%arg0: i32, %arg1: memref<1x16x16x4xf32, #tpu.memory_space<vmem>>, %arg2: memref<144x24xf32, #tpu.memory_space<vmem>>, %arg3: memref<1x24xf32, #tpu.memory_space<vmem>>, %arg4: memref<150x16xf32, #tpu.memory_space<vmem>>, %arg5: memref<1x16xf32, #tpu.memory_space<vmem>>, %arg6: memref<256x120xf32, #tpu.memory_space<vmem>>, %arg7: memref<1x120xf32, #tpu.memory_space<vmem>>, %arg8: memref<120x84xf32, #tpu.memory_space<vmem>>, %arg9: memref<1x84xf32, #tpu.memory_space<vmem>>, %arg10: memref<84x10xf32, #tpu.memory_space<vmem>>, %arg11: memref<1x10xf32, #tpu.memory_space<vmem>>, %arg12: memref<1x1x10xf32, #tpu.memory_space<vmem>>, %arg13: memref<1x20x20x4xf32, #tpu.memory_space<vmem>>, %arg14: memref<1x12x12x6xf32, #tpu.memory_space<vmem>>, %arg15: memref<64x16xf32, #tpu.memory_space<vmem>>) attributes {dimension_semantics = [#tpu.dimension_semantics<parallel>], iteration_bounds = array<i64: 2>, scalar_prefetch = 0 : i64, scratch_operands = 3 : i64, tpu.core_type = #tpu.core_type<tc>, window_params = [{transform_indices = @transform_0, window_bounds = array<i64: 1, 16, 16, 4>}, {pipeline_mode = #tpu.pipeline_mode<synchronous>, transform_indices = @transform_1, window_bounds = array<i64: 144, 24>}, {pipeline_mode = #tpu.pipeline_mode<synchronous>, transform_indices = @transform_2, window_bounds = array<i64: 1, 24>}, {pipeline_mode = #tpu.pipeline_mode<synchronous>, transform_indices = @transform_3, window_bounds = array<i64: 150, 16>}, {pipeline_mode = #tpu.pipeline_mode<synchronous>, transform_indices = @transform_4, window_bounds = array<i64: 1, 16>}, {pipeline_mode = #tpu.pipeline_mode<synchronous>, transform_indices = @transform_5, window_bounds = array<i64: 256, 120>}, {pipeline_mode = #tpu.pipeline_mode<synchronous>, transform_indices = @transform_6, window_bounds = array<i64: 1, 120>}, {pipeline_mode = #tpu.pipeline_mode<synchronous>, transform_indices = @transform_7, window_bounds = array<i64: 120, 84>}, {pipeline_mode = #tpu.pipeline_mode<synchronous>, transform_indices = @transform_8, window_bounds = array<i64: 1, 84>}, {pipeline_mode = #tpu.pipeline_mode<synchronous>, transform_indices = @transform_9, window_bounds = array<i64: 84, 10>}, {pipeline_mode = #tpu.pipeline_mode<synchronous>, transform_indices = @transform_10, window_bounds = array<i64: 1, 10>}, {transform_indices = @transform_11, window_bounds = array<i64: 1, 1, 10>}]} {
    %cst = arith.constant 0.000000e+00 : f32
    %0 = vector.broadcast %cst : f32 to vector<1x20x20x4xf32>
    %c0 = arith.constant 0 : index
    %c0_0 = arith.constant 0 : index
    %c0_1 = arith.constant 0 : index
    %c0_2 = arith.constant 0 : index
    %1 = vector.load %arg13[%c0, %c0_0, %c0_1, %c0_2] : memref<1x20x20x4xf32, #tpu.memory_space<vmem>>, vector<1x20x20x4xf32>
    tpu.vector_store %arg13[%c0, %c0_0, %c0_1, %c0_2], %0 {strides = array<i32>} : memref<1x20x20x4xf32, #tpu.memory_space<vmem>>, vector<1x20x20x4xf32>,
    %c0_3 = arith.constant 0 : index
    %c0_4 = arith.constant 0 : index
    %c0_5 = arith.constant 0 : index
    %c0_6 = arith.constant 0 : index
    %2 = vector.load %arg1[%c0_3, %c0_4, %c0_5, %c0_6] : memref<1x16x16x4xf32, #tpu.memory_space<vmem>>, vector<1x16x16x4xf32>
    %c0_7 = arith.constant 0 : index
    %c2 = arith.constant 2 : index
    %c2_8 = arith.constant 2 : index
    %c0_9 = arith.constant 0 : index
    %3 = vector.load %arg13[%c0_7, %c2, %c2_8, %c0_9] : memref<1x20x20x4xf32, #tpu.memory_space<vmem>>, vector<1x16x16x4xf32>
    tpu.vector_store %arg13[%c0_7, %c2, %c2_8, %c0_9], %2 {strides = array<i32>} : memref<1x20x20x4xf32, #tpu.memory_space<vmem>>, vector<1x16x16x4xf32>,
    %c0_10 = arith.constant 0 : index
    %c0_11 = arith.constant 0 : index
    %c0_12 = arith.constant 0 : index
    %c0_13 = arith.constant 0 : index
    %4 = tpu.strided_load %arg13[%c0_10, %c0_11, %c0_12, %c0_13] {strides = array<i32: 1, 2, 2, 1>} : memref<1x20x20x4xf32, #tpu.memory_space<vmem>>, vector<1x8x8x4xf32>
    %5 = vector.shape_cast %4 : vector<1x8x8x4xf32> to vector<64x4xf32>
    %c0_14 = arith.constant 0 : index
    %c0_15 = arith.constant 0 : index
    %c1 = arith.constant 1 : index
    %c0_16 = arith.constant 0 : index
    %6 = tpu.strided_load %arg13[%c0_14, %c0_15, %c1, %c0_16] {strides = array<i32: 1, 2, 2, 1>} : memref<1x20x20x4xf32, #tpu.memory_space<vmem>>, vector<1x8x8x4xf32>
    %7 = vector.shape_cast %6 : vector<1x8x8x4xf32> to vector<64x4xf32>
    %c0_17 = arith.constant 0 : index
    %c0_18 = arith.constant 0 : index
    %c2_19 = arith.constant 2 : index
    %c0_20 = arith.constant 0 : index
    %8 = tpu.strided_load %arg13[%c0_17, %c0_18, %c2_19, %c0_20] {strides = array<i32: 1, 2, 2, 1>} : memref<1x20x20x4xf32, #tpu.memory_space<vmem>>, vector<1x8x8x4xf32>
    %9 = vector.shape_cast %8 : vector<1x8x8x4xf32> to vector<64x4xf32>
    %c0_21 = arith.constant 0 : index
    %c0_22 = arith.constant 0 : index
    %c3 = arith.constant 3 : index
    %c0_23 = arith.constant 0 : index
    %10 = tpu.strided_load %arg13[%c0_21, %c0_22, %c3, %c0_23] {strides = array<i32: 1, 2, 2, 1>} : memref<1x20x20x4xf32, #tpu.memory_space<vmem>>, vector<1x8x8x4xf32>
    %11 = vector.shape_cast %10 : vector<1x8x8x4xf32> to vector<64x4xf32>
    %c0_24 = arith.constant 0 : index
    %c0_25 = arith.constant 0 : index
    %c4 = arith.constant 4 : index
    %c0_26 = arith.constant 0 : index
    %12 = tpu.strided_load %arg13[%c0_24, %c0_25, %c4, %c0_26] {strides = array<i32: 1, 2, 2, 1>} : memref<1x20x20x4xf32, #tpu.memory_space<vmem>>, vector<1x8x8x4xf32>
    %13 = vector.shape_cast %12 : vector<1x8x8x4xf32> to vector<64x4xf32>
    %c0_27 = arith.constant 0 : index
    %c0_28 = arith.constant 0 : index
    %c5 = arith.constant 5 : index
    %c0_29 = arith.constant 0 : index
    %14 = tpu.strided_load %arg13[%c0_27, %c0_28, %c5, %c0_29] {strides = array<i32: 1, 2, 2, 1>} : memref<1x20x20x4xf32, #tpu.memory_space<vmem>>, vector<1x8x8x4xf32>
    %15 = vector.shape_cast %14 : vector<1x8x8x4xf32> to vector<64x4xf32>
    %c0_30 = arith.constant 0 : index
    %c1_31 = arith.constant 1 : index
    %c0_32 = arith.constant 0 : index
    %c0_33 = arith.constant 0 : index
    %16 = tpu.strided_load %arg13[%c0_30, %c1_31, %c0_32, %c0_33] {strides = array<i32: 1, 2, 2, 1>} : memref<1x20x20x4xf32, #tpu.memory_space<vmem>>, vector<1x8x8x4xf32>
    %17 = vector.shape_cast %16 : vector<1x8x8x4xf32> to vector<64x4xf32>
    %c0_34 = arith.constant 0 : index
    %c1_35 = arith.constant 1 : index
    %c1_36 = arith.constant 1 : index
    %c0_37 = arith.constant 0 : index
    %18 = tpu.strided_load %arg13[%c0_34, %c1_35, %c1_36, %c0_37] {strides = array<i32: 1, 2, 2, 1>} : memref<1x20x20x4xf32, #tpu.memory_space<vmem>>, vector<1x8x8x4xf32>
    %19 = vector.shape_cast %18 : vector<1x8x8x4xf32> to vector<64x4xf32>
    %c0_38 = arith.constant 0 : index
    %c1_39 = arith.constant 1 : index
    %c2_40 = arith.constant 2 : index
    %c0_41 = arith.constant 0 : index
    %20 = tpu.strided_load %arg13[%c0_38, %c1_39, %c2_40, %c0_41] {strides = array<i32: 1, 2, 2, 1>} : memref<1x20x20x4xf32, #tpu.memory_space<vmem>>, vector<1x8x8x4xf32>
    %21 = vector.shape_cast %20 : vector<1x8x8x4xf32> to vector<64x4xf32>
    %c0_42 = arith.constant 0 : index
    %c1_43 = arith.constant 1 : index
    %c3_44 = arith.constant 3 : index
    %c0_45 = arith.constant 0 : index
    %22 = tpu.strided_load %arg13[%c0_42, %c1_43, %c3_44, %c0_45] {strides = array<i32: 1, 2, 2, 1>} : memref<1x20x20x4xf32, #tpu.memory_space<vmem>>, vector<1x8x8x4xf32>
    %23 = vector.shape_cast %22 : vector<1x8x8x4xf32> to vector<64x4xf32>
    %c0_46 = arith.constant 0 : index
    %c1_47 = arith.constant 1 : index
    %c4_48 = arith.constant 4 : index
    %c0_49 = arith.constant 0 : index
    %24 = tpu.strided_load %arg13[%c0_46, %c1_47, %c4_48, %c0_49] {strides = array<i32: 1, 2, 2, 1>} : memref<1x20x20x4xf32, #tpu.memory_space<vmem>>, vector<1x8x8x4xf32>
    %25 = vector.shape_cast %24 : vector<1x8x8x4xf32> to vector<64x4xf32>
    %c0_50 = arith.constant 0 : index
    %c1_51 = arith.constant 1 : index
    %c5_52 = arith.constant 5 : index
    %c0_53 = arith.constant 0 : index
    %26 = tpu.strided_load %arg13[%c0_50, %c1_51, %c5_52, %c0_53] {strides = array<i32: 1, 2, 2, 1>} : memref<1x20x20x4xf32, #tpu.memory_space<vmem>>, vector<1x8x8x4xf32>
    %27 = vector.shape_cast %26 : vector<1x8x8x4xf32> to vector<64x4xf32>
    %c0_54 = arith.constant 0 : index
    %c2_55 = arith.constant 2 : index
    %c0_56 = arith.constant 0 : index
    %c0_57 = arith.constant 0 : index
    %28 = tpu.strided_load %arg13[%c0_54, %c2_55, %c0_56, %c0_57] {strides = array<i32: 1, 2, 2, 1>} : memref<1x20x20x4xf32, #tpu.memory_space<vmem>>, vector<1x8x8x4xf32>
    %29 = vector.shape_cast %28 : vector<1x8x8x4xf32> to vector<64x4xf32>
    %c0_58 = arith.constant 0 : index
    %c2_59 = arith.constant 2 : index
    %c1_60 = arith.constant 1 : index
    %c0_61 = arith.constant 0 : index
    %30 = tpu.strided_load %arg13[%c0_58, %c2_59, %c1_60, %c0_61] {strides = array<i32: 1, 2, 2, 1>} : memref<1x20x20x4xf32, #tpu.memory_space<vmem>>, vector<1x8x8x4xf32>
    %31 = vector.shape_cast %30 : vector<1x8x8x4xf32> to vector<64x4xf32>
    %c0_62 = arith.constant 0 : index
    %c2_63 = arith.constant 2 : index
    %c2_64 = arith.constant 2 : index
    %c0_65 = arith.constant 0 : index
    %32 = tpu.strided_load %arg13[%c0_62, %c2_63, %c2_64, %c0_65] {strides = array<i32: 1, 2, 2, 1>} : memref<1x20x20x4xf32, #tpu.memory_space<vmem>>, vector<1x8x8x4xf32>
    %33 = vector.shape_cast %32 : vector<1x8x8x4xf32> to vector<64x4xf32>
    %c0_66 = arith.constant 0 : index
    %c2_67 = arith.constant 2 : index
    %c3_68 = arith.constant 3 : index
    %c0_69 = arith.constant 0 : index
    %34 = tpu.strided_load %arg13[%c0_66, %c2_67, %c3_68, %c0_69] {strides = array<i32: 1, 2, 2, 1>} : memref<1x20x20x4xf32, #tpu.memory_space<vmem>>, vector<1x8x8x4xf32>
    %35 = vector.shape_cast %34 : vector<1x8x8x4xf32> to vector<64x4xf32>
    %c0_70 = arith.constant 0 : index
    %c2_71 = arith.constant 2 : index
    %c4_72 = arith.constant 4 : index
    %c0_73 = arith.constant 0 : index
    %36 = tpu.strided_load %arg13[%c0_70, %c2_71, %c4_72, %c0_73] {strides = array<i32: 1, 2, 2, 1>} : memref<1x20x20x4xf32, #tpu.memory_space<vmem>>, vector<1x8x8x4xf32>
    %37 = vector.shape_cast %36 : vector<1x8x8x4xf32> to vector<64x4xf32>
    %c0_74 = arith.constant 0 : index
    %c2_75 = arith.constant 2 : index
    %c5_76 = arith.constant 5 : index
    %c0_77 = arith.constant 0 : index
    %38 = tpu.strided_load %arg13[%c0_74, %c2_75, %c5_76, %c0_77] {strides = array<i32: 1, 2, 2, 1>} : memref<1x20x20x4xf32, #tpu.memory_space<vmem>>, vector<1x8x8x4xf32>
    %39 = vector.shape_cast %38 : vector<1x8x8x4xf32> to vector<64x4xf32>
    %c0_78 = arith.constant 0 : index
    %c3_79 = arith.constant 3 : index
    %c0_80 = arith.constant 0 : index
    %c0_81 = arith.constant 0 : index
    %40 = tpu.strided_load %arg13[%c0_78, %c3_79, %c0_80, %c0_81] {strides = array<i32: 1, 2, 2, 1>} : memref<1x20x20x4xf32, #tpu.memory_space<vmem>>, vector<1x8x8x4xf32>
    %41 = vector.shape_cast %40 : vector<1x8x8x4xf32> to vector<64x4xf32>
    %c0_82 = arith.constant 0 : index
    %c3_83 = arith.constant 3 : index
    %c1_84 = arith.constant 1 : index
    %c0_85 = arith.constant 0 : index
    %42 = tpu.strided_load %arg13[%c0_82, %c3_83, %c1_84, %c0_85] {strides = array<i32: 1, 2, 2, 1>} : memref<1x20x20x4xf32, #tpu.memory_space<vmem>>, vector<1x8x8x4xf32>
    %43 = vector.shape_cast %42 : vector<1x8x8x4xf32> to vector<64x4xf32>
    %c0_86 = arith.constant 0 : index
    %c3_87 = arith.constant 3 : index
    %c2_88 = arith.constant 2 : index
    %c0_89 = arith.constant 0 : index
    %44 = tpu.strided_load %arg13[%c0_86, %c3_87, %c2_88, %c0_89] {strides = array<i32: 1, 2, 2, 1>} : memref<1x20x20x4xf32, #tpu.memory_space<vmem>>, vector<1x8x8x4xf32>
    %45 = vector.shape_cast %44 : vector<1x8x8x4xf32> to vector<64x4xf32>
    %c0_90 = arith.constant 0 : index
    %c3_91 = arith.constant 3 : index
    %c3_92 = arith.constant 3 : index
    %c0_93 = arith.constant 0 : index
    %46 = tpu.strided_load %arg13[%c0_90, %c3_91, %c3_92, %c0_93] {strides = array<i32: 1, 2, 2, 1>} : memref<1x20x20x4xf32, #tpu.memory_space<vmem>>, vector<1x8x8x4xf32>
    %47 = vector.shape_cast %46 : vector<1x8x8x4xf32> to vector<64x4xf32>
    %c0_94 = arith.constant 0 : index
    %c3_95 = arith.constant 3 : index
    %c4_96 = arith.constant 4 : index
    %c0_97 = arith.constant 0 : index
    %48 = tpu.strided_load %arg13[%c0_94, %c3_95, %c4_96, %c0_97] {strides = array<i32: 1, 2, 2, 1>} : memref<1x20x20x4xf32, #tpu.memory_space<vmem>>, vector<1x8x8x4xf32>
    %49 = vector.shape_cast %48 : vector<1x8x8x4xf32> to vector<64x4xf32>
    %c0_98 = arith.constant 0 : index
    %c3_99 = arith.constant 3 : index
    %c5_100 = arith.constant 5 : index
    %c0_101 = arith.constant 0 : index
    %50 = tpu.strided_load %arg13[%c0_98, %c3_99, %c5_100, %c0_101] {strides = array<i32: 1, 2, 2, 1>} : memref<1x20x20x4xf32, #tpu.memory_space<vmem>>, vector<1x8x8x4xf32>
    %51 = vector.shape_cast %50 : vector<1x8x8x4xf32> to vector<64x4xf32>
    %c0_102 = arith.constant 0 : index
    %c4_103 = arith.constant 4 : index
    %c0_104 = arith.constant 0 : index
    %c0_105 = arith.constant 0 : index
    %52 = tpu.strided_load %arg13[%c0_102, %c4_103, %c0_104, %c0_105] {strides = array<i32: 1, 2, 2, 1>} : memref<1x20x20x4xf32, #tpu.memory_space<vmem>>, vector<1x8x8x4xf32>
    %53 = vector.shape_cast %52 : vector<1x8x8x4xf32> to vector<64x4xf32>
    %c0_106 = arith.constant 0 : index
    %c4_107 = arith.constant 4 : index
    %c1_108 = arith.constant 1 : index
    %c0_109 = arith.constant 0 : index
    %54 = tpu.strided_load %arg13[%c0_106, %c4_107, %c1_108, %c0_109] {strides = array<i32: 1, 2, 2, 1>} : memref<1x20x20x4xf32, #tpu.memory_space<vmem>>, vector<1x8x8x4xf32>
    %55 = vector.shape_cast %54 : vector<1x8x8x4xf32> to vector<64x4xf32>
    %c0_110 = arith.constant 0 : index
    %c4_111 = arith.constant 4 : index
    %c2_112 = arith.constant 2 : index
    %c0_113 = arith.constant 0 : index
    %56 = tpu.strided_load %arg13[%c0_110, %c4_111, %c2_112, %c0_113] {strides = array<i32: 1, 2, 2, 1>} : memref<1x20x20x4xf32, #tpu.memory_space<vmem>>, vector<1x8x8x4xf32>
    %57 = vector.shape_cast %56 : vector<1x8x8x4xf32> to vector<64x4xf32>
    %c0_114 = arith.constant 0 : index
    %c4_115 = arith.constant 4 : index
    %c3_116 = arith.constant 3 : index
    %c0_117 = arith.constant 0 : index
    %58 = tpu.strided_load %arg13[%c0_114, %c4_115, %c3_116, %c0_117] {strides = array<i32: 1, 2, 2, 1>} : memref<1x20x20x4xf32, #tpu.memory_space<vmem>>, vector<1x8x8x4xf32>
    %59 = vector.shape_cast %58 : vector<1x8x8x4xf32> to vector<64x4xf32>
    %c0_118 = arith.constant 0 : index
    %c4_119 = arith.constant 4 : index
    %c4_120 = arith.constant 4 : index
    %c0_121 = arith.constant 0 : index
    %60 = tpu.strided_load %arg13[%c0_118, %c4_119, %c4_120, %c0_121] {strides = array<i32: 1, 2, 2, 1>} : memref<1x20x20x4xf32, #tpu.memory_space<vmem>>, vector<1x8x8x4xf32>
    %61 = vector.shape_cast %60 : vector<1x8x8x4xf32> to vector<64x4xf32>
    %c0_122 = arith.constant 0 : index
    %c4_123 = arith.constant 4 : index
    %c5_124 = arith.constant 5 : index
    %c0_125 = arith.constant 0 : index
    %62 = tpu.strided_load %arg13[%c0_122, %c4_123, %c5_124, %c0_125] {strides = array<i32: 1, 2, 2, 1>} : memref<1x20x20x4xf32, #tpu.memory_space<vmem>>, vector<1x8x8x4xf32>
    %63 = vector.shape_cast %62 : vector<1x8x8x4xf32> to vector<64x4xf32>
    %c0_126 = arith.constant 0 : index
    %c5_127 = arith.constant 5 : index
    %c0_128 = arith.constant 0 : index
    %c0_129 = arith.constant 0 : index
    %64 = tpu.strided_load %arg13[%c0_126, %c5_127, %c0_128, %c0_129] {strides = array<i32: 1, 2, 2, 1>} : memref<1x20x20x4xf32, #tpu.memory_space<vmem>>, vector<1x8x8x4xf32>
    %65 = vector.shape_cast %64 : vector<1x8x8x4xf32> to vector<64x4xf32>
    %c0_130 = arith.constant 0 : index
    %c5_131 = arith.constant 5 : index
    %c1_132 = arith.constant 1 : index
    %c0_133 = arith.constant 0 : index
    %66 = tpu.strided_load %arg13[%c0_130, %c5_131, %c1_132, %c0_133] {strides = array<i32: 1, 2, 2, 1>} : memref<1x20x20x4xf32, #tpu.memory_space<vmem>>, vector<1x8x8x4xf32>
    %67 = vector.shape_cast %66 : vector<1x8x8x4xf32> to vector<64x4xf32>
    %c0_134 = arith.constant 0 : index
    %c5_135 = arith.constant 5 : index
    %c2_136 = arith.constant 2 : index
    %c0_137 = arith.constant 0 : index
    %68 = tpu.strided_load %arg13[%c0_134, %c5_135, %c2_136, %c0_137] {strides = array<i32: 1, 2, 2, 1>} : memref<1x20x20x4xf32, #tpu.memory_space<vmem>>, vector<1x8x8x4xf32>
    %69 = vector.shape_cast %68 : vector<1x8x8x4xf32> to vector<64x4xf32>
    %c0_138 = arith.constant 0 : index
    %c5_139 = arith.constant 5 : index
    %c3_140 = arith.constant 3 : index
    %c0_141 = arith.constant 0 : index
    %70 = tpu.strided_load %arg13[%c0_138, %c5_139, %c3_140, %c0_141] {strides = array<i32: 1, 2, 2, 1>} : memref<1x20x20x4xf32, #tpu.memory_space<vmem>>, vector<1x8x8x4xf32>
    %71 = vector.shape_cast %70 : vector<1x8x8x4xf32> to vector<64x4xf32>
    %c0_142 = arith.constant 0 : index
    %c5_143 = arith.constant 5 : index
    %c4_144 = arith.constant 4 : index
    %c0_145 = arith.constant 0 : index
    %72 = tpu.strided_load %arg13[%c0_142, %c5_143, %c4_144, %c0_145] {strides = array<i32: 1, 2, 2, 1>} : memref<1x20x20x4xf32, #tpu.memory_space<vmem>>, vector<1x8x8x4xf32>
    %73 = vector.shape_cast %72 : vector<1x8x8x4xf32> to vector<64x4xf32>
    %c0_146 = arith.constant 0 : index
    %c5_147 = arith.constant 5 : index
    %c5_148 = arith.constant 5 : index
    %c0_149 = arith.constant 0 : index
    %74 = tpu.strided_load %arg13[%c0_146, %c5_147, %c5_148, %c0_149] {strides = array<i32: 1, 2, 2, 1>} : memref<1x20x20x4xf32, #tpu.memory_space<vmem>>, vector<1x8x8x4xf32>
    %75 = vector.shape_cast %74 : vector<1x8x8x4xf32> to vector<64x4xf32>
    %76 = tpu.concatenate %5, %7, %9, %11, %13, %15, %17, %19, %21, %23, %25, %27, %29, %31, %33, %35 in 1 : vector<64x4xf32>, vector<64x4xf32>, vector<64x4xf32>, vector<64x4xf32>, vector<64x4xf32>, vector<64x4xf32>, vector<64x4xf32>, vector<64x4xf32>, vector<64x4xf32>, vector<64x4xf32>, vector<64x4xf32>, vector<64x4xf32>, vector<64x4xf32>, vector<64x4xf32>, vector<64x4xf32>, vector<64x4xf32> -> vector<64x64xf32>
    %77 = tpu.concatenate %37, %39, %41, %43, %45, %47, %49, %51, %53, %55, %57, %59, %61, %63, %65, %67 in 1 : vector<64x4xf32>, vector<64x4xf32>, vector<64x4xf32>, vector<64x4xf32>, vector<64x4xf32>, vector<64x4xf32>, vector<64x4xf32>, vector<64x4xf32>, vector<64x4xf32>, vector<64x4xf32>, vector<64x4xf32>, vector<64x4xf32>, vector<64x4xf32>, vector<64x4xf32>, vector<64x4xf32>, vector<64x4xf32> -> vector<64x64xf32>
    %78 = tpu.concatenate %69, %71, %73, %75 in 1 : vector<64x4xf32>, vector<64x4xf32>, vector<64x4xf32>, vector<64x4xf32> -> vector<64x16xf32>
    %79 = tpu.concatenate %76, %77, %78 in 1 : vector<64x64xf32>, vector<64x64xf32>, vector<64x16xf32> -> vector<64x144xf32>
    %c0_150 = arith.constant 0 : index
    %c0_151 = arith.constant 0 : index
    %80 = vector.load %arg2[%c0_150, %c0_151] : memref<144x24xf32, #tpu.memory_space<vmem>>, vector<144x24xf32>
    %cst_152 = arith.constant dense<0.000000e+00> : vector<64x24xf32>
    %81 = tpu.matmul %79, %80, %cst_152 {dimension_numbers = #tpu.dot_dimension_numbers<[1], [0], [0], [1], [0, 0, 1, 1], [], []>} : vector<64x144xf32>, vector<144x24xf32>, vector<64x24xf32> -> vector<64x24xf32>
    %c0_153 = arith.constant 0 : index
    %c0_154 = arith.constant 0 : index
    %82 = vector.load %arg3[%c0_153, %c0_154] : memref<1x24xf32, #tpu.memory_space<vmem>>, vector<1x24xf32>
    %83 = vector.broadcast %82 : vector<1x24xf32> to vector<64x24xf32>
    %84 = arith.addf %81, %83 : vector<64x24xf32>
    %85 = vector.extract_strided_slice %84 {offsets = [0, 0], sizes = [64, 6], strides = [1, 1]} : vector<64x24xf32> to vector<64x6xf32>
    %86 = vector.extract_strided_slice %84 {offsets = [0, 6], sizes = [64, 6], strides = [1, 1]} : vector<64x24xf32> to vector<64x6xf32>
    %87 = arith.maximumf %85, %86 : vector<64x6xf32>
    %88 = vector.extract_strided_slice %84 {offsets = [0, 12], sizes = [64, 6], strides = [1, 1]} : vector<64x24xf32> to vector<64x6xf32>
    %89 = vector.extract_strided_slice %84 {offsets = [0, 18], sizes = [64, 6], strides = [1, 1]} : vector<64x24xf32> to vector<64x6xf32>
    %90 = arith.maximumf %88, %89 : vector<64x6xf32>
    %91 = arith.maximumf %87, %90 : vector<64x6xf32>
    %cst_155 = arith.constant 0.000000e+00 : f32
    %92 = vector.broadcast %cst_155 : f32 to vector<64x6xf32>
    %93 = arith.maximumf %91, %92 : vector<64x6xf32>
    %cst_156 = arith.constant 0.000000e+00 : f32
    %94 = vector.broadcast %cst_156 : f32 to vector<1x12x12x6xf32>
    %c0_157 = arith.constant 0 : index
    %c0_158 = arith.constant 0 : index
    %c0_159 = arith.constant 0 : index
    %c0_160 = arith.constant 0 : index
    %95 = vector.load %arg14[%c0_157, %c0_158, %c0_159, %c0_160] : memref<1x12x12x6xf32, #tpu.memory_space<vmem>>, vector<1x12x12x6xf32>
    tpu.vector_store %arg14[%c0_157, %c0_158, %c0_159, %c0_160], %94 {strides = array<i32>} : memref<1x12x12x6xf32, #tpu.memory_space<vmem>>, vector<1x12x12x6xf32>,
    %96 = vector.shape_cast %93 : vector<64x6xf32> to vector<1x8x8x6xf32>
    %c0_161 = arith.constant 0 : index
    %c2_162 = arith.constant 2 : index
    %c2_163 = arith.constant 2 : index
    %c0_164 = arith.constant 0 : index
    %97 = vector.load %arg14[%c0_161, %c2_162, %c2_163, %c0_164] : memref<1x12x12x6xf32, #tpu.memory_space<vmem>>, vector<1x8x8x6xf32>
    tpu.vector_store %arg14[%c0_161, %c2_162, %c2_163, %c0_164], %96 {strides = array<i32>} : memref<1x12x12x6xf32, #tpu.memory_space<vmem>>, vector<1x8x8x6xf32>,
    %c0_165 = arith.constant 0 : index
    %c0_166 = arith.constant 0 : index
    %c0_167 = arith.constant 0 : index
    %c0_168 = arith.constant 0 : index
    %98 = vector.load %arg14[%c0_165, %c0_166, %c0_167, %c0_168] : memref<1x12x12x6xf32, #tpu.memory_space<vmem>>, vector<1x8x8x6xf32>
    %99 = vector.shape_cast %98 : vector<1x8x8x6xf32> to vector<64x6xf32>
    %c0_169 = arith.constant 0 : index
    %c0_170 = arith.constant 0 : index
    %c1_171 = arith.constant 1 : index
    %c0_172 = arith.constant 0 : index
    %100 = vector.load %arg14[%c0_169, %c0_170, %c1_171, %c0_172] : memref<1x12x12x6xf32, #tpu.memory_space<vmem>>, vector<1x8x8x6xf32>
    %101 = vector.shape_cast %100 : vector<1x8x8x6xf32> to vector<64x6xf32>
    %c0_173 = arith.constant 0 : index
    %c0_174 = arith.constant 0 : index
    %c2_175 = arith.constant 2 : index
    %c0_176 = arith.constant 0 : index
    %102 = vector.load %arg14[%c0_173, %c0_174, %c2_175, %c0_176] : memref<1x12x12x6xf32, #tpu.memory_space<vmem>>, vector<1x8x8x6xf32>
    %103 = vector.shape_cast %102 : vector<1x8x8x6xf32> to vector<64x6xf32>
    %c0_177 = arith.constant 0 : index
    %c0_178 = arith.constant 0 : index
    %c3_179 = arith.constant 3 : index
    %c0_180 = arith.constant 0 : index
    %104 = vector.load %arg14[%c0_177, %c0_178, %c3_179, %c0_180] : memref<1x12x12x6xf32, #tpu.memory_space<vmem>>, vector<1x8x8x6xf32>
    %105 = vector.shape_cast %104 : vector<1x8x8x6xf32> to vector<64x6xf32>
    %c0_181 = arith.constant 0 : index
    %c0_182 = arith.constant 0 : index
    %c4_183 = arith.constant 4 : index
    %c0_184 = arith.constant 0 : index
    %106 = vector.load %arg14[%c0_181, %c0_182, %c4_183, %c0_184] : memref<1x12x12x6xf32, #tpu.memory_space<vmem>>, vector<1x8x8x6xf32>
    %107 = vector.shape_cast %106 : vector<1x8x8x6xf32> to vector<64x6xf32>
    %c0_185 = arith.constant 0 : index
    %c1_186 = arith.constant 1 : index
    %c0_187 = arith.constant 0 : index
    %c0_188 = arith.constant 0 : index
    %108 = vector.load %arg14[%c0_185, %c1_186, %c0_187, %c0_188] : memref<1x12x12x6xf32, #tpu.memory_space<vmem>>, vector<1x8x8x6xf32>
    %109 = vector.shape_cast %108 : vector<1x8x8x6xf32> to vector<64x6xf32>
    %c0_189 = arith.constant 0 : index
    %c1_190 = arith.constant 1 : index
    %c1_191 = arith.constant 1 : index
    %c0_192 = arith.constant 0 : index
    %110 = vector.load %arg14[%c0_189, %c1_190, %c1_191, %c0_192] : memref<1x12x12x6xf32, #tpu.memory_space<vmem>>, vector<1x8x8x6xf32>
    %111 = vector.shape_cast %110 : vector<1x8x8x6xf32> to vector<64x6xf32>
    %c0_193 = arith.constant 0 : index
    %c1_194 = arith.constant 1 : index
    %c2_195 = arith.constant 2 : index
    %c0_196 = arith.constant 0 : index
    %112 = vector.load %arg14[%c0_193, %c1_194, %c2_195, %c0_196] : memref<1x12x12x6xf32, #tpu.memory_space<vmem>>, vector<1x8x8x6xf32>
    %113 = vector.shape_cast %112 : vector<1x8x8x6xf32> to vector<64x6xf32>
    %c0_197 = arith.constant 0 : index
    %c1_198 = arith.constant 1 : index
    %c3_199 = arith.constant 3 : index
    %c0_200 = arith.constant 0 : index
    %114 = vector.load %arg14[%c0_197, %c1_198, %c3_199, %c0_200] : memref<1x12x12x6xf32, #tpu.memory_space<vmem>>, vector<1x8x8x6xf32>
    %115 = vector.shape_cast %114 : vector<1x8x8x6xf32> to vector<64x6xf32>
    %c0_201 = arith.constant 0 : index
    %c1_202 = arith.constant 1 : index
    %c4_203 = arith.constant 4 : index
    %c0_204 = arith.constant 0 : index
    %116 = vector.load %arg14[%c0_201, %c1_202, %c4_203, %c0_204] : memref<1x12x12x6xf32, #tpu.memory_space<vmem>>, vector<1x8x8x6xf32>
    %117 = vector.shape_cast %116 : vector<1x8x8x6xf32> to vector<64x6xf32>
    %c0_205 = arith.constant 0 : index
    %c2_206 = arith.constant 2 : index
    %c0_207 = arith.constant 0 : index
    %c0_208 = arith.constant 0 : index
    %118 = vector.load %arg14[%c0_205, %c2_206, %c0_207, %c0_208] : memref<1x12x12x6xf32, #tpu.memory_space<vmem>>, vector<1x8x8x6xf32>
    %119 = vector.shape_cast %118 : vector<1x8x8x6xf32> to vector<64x6xf32>
    %c0_209 = arith.constant 0 : index
    %c2_210 = arith.constant 2 : index
    %c1_211 = arith.constant 1 : index
    %c0_212 = arith.constant 0 : index
    %120 = vector.load %arg14[%c0_209, %c2_210, %c1_211, %c0_212] : memref<1x12x12x6xf32, #tpu.memory_space<vmem>>, vector<1x8x8x6xf32>
    %121 = vector.shape_cast %120 : vector<1x8x8x6xf32> to vector<64x6xf32>
    %c0_213 = arith.constant 0 : index
    %c2_214 = arith.constant 2 : index
    %c2_215 = arith.constant 2 : index
    %c0_216 = arith.constant 0 : index
    %122 = vector.load %arg14[%c0_213, %c2_214, %c2_215, %c0_216] : memref<1x12x12x6xf32, #tpu.memory_space<vmem>>, vector<1x8x8x6xf32>
    %123 = vector.shape_cast %122 : vector<1x8x8x6xf32> to vector<64x6xf32>
    %c0_217 = arith.constant 0 : index
    %c2_218 = arith.constant 2 : index
    %c3_219 = arith.constant 3 : index
    %c0_220 = arith.constant 0 : index
    %124 = vector.load %arg14[%c0_217, %c2_218, %c3_219, %c0_220] : memref<1x12x12x6xf32, #tpu.memory_space<vmem>>, vector<1x8x8x6xf32>
    %125 = vector.shape_cast %124 : vector<1x8x8x6xf32> to vector<64x6xf32>
    %c0_221 = arith.constant 0 : index
    %c2_222 = arith.constant 2 : index
    %c4_223 = arith.constant 4 : index
    %c0_224 = arith.constant 0 : index
    %126 = vector.load %arg14[%c0_221, %c2_222, %c4_223, %c0_224] : memref<1x12x12x6xf32, #tpu.memory_space<vmem>>, vector<1x8x8x6xf32>
    %127 = vector.shape_cast %126 : vector<1x8x8x6xf32> to vector<64x6xf32>
    %c0_225 = arith.constant 0 : index
    %c3_226 = arith.constant 3 : index
    %c0_227 = arith.constant 0 : index
    %c0_228 = arith.constant 0 : index
    %128 = vector.load %arg14[%c0_225, %c3_226, %c0_227, %c0_228] : memref<1x12x12x6xf32, #tpu.memory_space<vmem>>, vector<1x8x8x6xf32>
    %129 = vector.shape_cast %128 : vector<1x8x8x6xf32> to vector<64x6xf32>
    %c0_229 = arith.constant 0 : index
    %c3_230 = arith.constant 3 : index
    %c1_231 = arith.constant 1 : index
    %c0_232 = arith.constant 0 : index
    %130 = vector.load %arg14[%c0_229, %c3_230, %c1_231, %c0_232] : memref<1x12x12x6xf32, #tpu.memory_space<vmem>>, vector<1x8x8x6xf32>
    %131 = vector.shape_cast %130 : vector<1x8x8x6xf32> to vector<64x6xf32>
    %c0_233 = arith.constant 0 : index
    %c3_234 = arith.constant 3 : index
    %c2_235 = arith.constant 2 : index
    %c0_236 = arith.constant 0 : index
    %132 = vector.load %arg14[%c0_233, %c3_234, %c2_235, %c0_236] : memref<1x12x12x6xf32, #tpu.memory_space<vmem>>, vector<1x8x8x6xf32>
    %133 = vector.shape_cast %132 : vector<1x8x8x6xf32> to vector<64x6xf32>
    %c0_237 = arith.constant 0 : index
    %c3_238 = arith.constant 3 : index
    %c3_239 = arith.constant 3 : index
    %c0_240 = arith.constant 0 : index
    %134 = vector.load %arg14[%c0_237, %c3_238, %c3_239, %c0_240] : memref<1x12x12x6xf32, #tpu.memory_space<vmem>>, vector<1x8x8x6xf32>
    %135 = vector.shape_cast %134 : vector<1x8x8x6xf32> to vector<64x6xf32>
    %c0_241 = arith.constant 0 : index
    %c3_242 = arith.constant 3 : index
    %c4_243 = arith.constant 4 : index
    %c0_244 = arith.constant 0 : index
    %136 = vector.load %arg14[%c0_241, %c3_242, %c4_243, %c0_244] : memref<1x12x12x6xf32, #tpu.memory_space<vmem>>, vector<1x8x8x6xf32>
    %137 = vector.shape_cast %136 : vector<1x8x8x6xf32> to vector<64x6xf32>
    %c0_245 = arith.constant 0 : index
    %c4_246 = arith.constant 4 : index
    %c0_247 = arith.constant 0 : index
    %c0_248 = arith.constant 0 : index
    %138 = vector.load %arg14[%c0_245, %c4_246, %c0_247, %c0_248] : memref<1x12x12x6xf32, #tpu.memory_space<vmem>>, vector<1x8x8x6xf32>
    %139 = vector.shape_cast %138 : vector<1x8x8x6xf32> to vector<64x6xf32>
    %c0_249 = arith.constant 0 : index
    %c4_250 = arith.constant 4 : index
    %c1_251 = arith.constant 1 : index
    %c0_252 = arith.constant 0 : index
    %140 = vector.load %arg14[%c0_249, %c4_250, %c1_251, %c0_252] : memref<1x12x12x6xf32, #tpu.memory_space<vmem>>, vector<1x8x8x6xf32>
    %141 = vector.shape_cast %140 : vector<1x8x8x6xf32> to vector<64x6xf32>
    %c0_253 = arith.constant 0 : index
    %c4_254 = arith.constant 4 : index
    %c2_255 = arith.constant 2 : index
    %c0_256 = arith.constant 0 : index
    %142 = vector.load %arg14[%c0_253, %c4_254, %c2_255, %c0_256] : memref<1x12x12x6xf32, #tpu.memory_space<vmem>>, vector<1x8x8x6xf32>
    %143 = vector.shape_cast %142 : vector<1x8x8x6xf32> to vector<64x6xf32>
    %c0_257 = arith.constant 0 : index
    %c4_258 = arith.constant 4 : index
    %c3_259 = arith.constant 3 : index
    %c0_260 = arith.constant 0 : index
    %144 = vector.load %arg14[%c0_257, %c4_258, %c3_259, %c0_260] : memref<1x12x12x6xf32, #tpu.memory_space<vmem>>, vector<1x8x8x6xf32>
    %145 = vector.shape_cast %144 : vector<1x8x8x6xf32> to vector<64x6xf32>
    %c0_261 = arith.constant 0 : index
    %c4_262 = arith.constant 4 : index
    %c4_263 = arith.constant 4 : index
    %c0_264 = arith.constant 0 : index
    %146 = vector.load %arg14[%c0_261, %c4_262, %c4_263, %c0_264] : memref<1x12x12x6xf32, #tpu.memory_space<vmem>>, vector<1x8x8x6xf32>
    %147 = vector.shape_cast %146 : vector<1x8x8x6xf32> to vector<64x6xf32>
    %148 = tpu.concatenate %99, %101, %103, %105, %107, %109, %111, %113, %115, %117, %119, %121, %123, %125, %127, %129 in 1 : vector<64x6xf32>, vector<64x6xf32>, vector<64x6xf32>, vector<64x6xf32>, vector<64x6xf32>, vector<64x6xf32>, vector<64x6xf32>, vector<64x6xf32>, vector<64x6xf32>, vector<64x6xf32>, vector<64x6xf32>, vector<64x6xf32>, vector<64x6xf32>, vector<64x6xf32>, vector<64x6xf32>, vector<64x6xf32> -> vector<64x96xf32>
    %149 = tpu.concatenate %131, %133, %135, %137, %139, %141, %143, %145, %147 in 1 : vector<64x6xf32>, vector<64x6xf32>, vector<64x6xf32>, vector<64x6xf32>, vector<64x6xf32>, vector<64x6xf32>, vector<64x6xf32>, vector<64x6xf32>, vector<64x6xf32> -> vector<64x54xf32>
    %150 = tpu.concatenate %148, %149 in 1 : vector<64x96xf32>, vector<64x54xf32> -> vector<64x150xf32>
    %c0_265 = arith.constant 0 : index
    %c0_266 = arith.constant 0 : index
    %151 = vector.load %arg4[%c0_265, %c0_266] : memref<150x16xf32, #tpu.memory_space<vmem>>, vector<150x16xf32>
    %cst_267 = arith.constant dense<0.000000e+00> : vector<64x16xf32>
    %152 = tpu.matmul %150, %151, %cst_267 {dimension_numbers = #tpu.dot_dimension_numbers<[1], [0], [0], [1], [0, 0, 1, 1], [], []>} : vector<64x150xf32>, vector<150x16xf32>, vector<64x16xf32> -> vector<64x16xf32>
    %c0_268 = arith.constant 0 : index
    %c0_269 = arith.constant 0 : index
    %153 = vector.load %arg5[%c0_268, %c0_269] : memref<1x16xf32, #tpu.memory_space<vmem>>, vector<1x16xf32>
    %154 = vector.broadcast %153 : vector<1x16xf32> to vector<64x16xf32>
    %155 = arith.addf %152, %154 : vector<64x16xf32>
    %c0_270 = arith.constant 0 : index
    %c0_271 = arith.constant 0 : index
    %156 = vector.load %arg15[%c0_270, %c0_271] : memref<64x16xf32, #tpu.memory_space<vmem>>, vector<64x16xf32>
    tpu.vector_store %arg15[%c0_270, %c0_271], %155 {strides = array<i32>} : memref<64x16xf32, #tpu.memory_space<vmem>>, vector<64x16xf32>,
    %c0_272 = arith.constant 0 : index
    %c0_273 = arith.constant 0 : index
    %157 = vector.load %arg15[%c0_272, %c0_273] : memref<64x16xf32, #tpu.memory_space<vmem>>, vector<1x16xf32>
    %c1_274 = arith.constant 1 : index
    %c0_275 = arith.constant 0 : index
    %158 = vector.load %arg15[%c1_274, %c0_275] : memref<64x16xf32, #tpu.memory_space<vmem>>, vector<1x16xf32>
    %c8 = arith.constant 8 : index
    %c0_276 = arith.constant 0 : index
    %159 = vector.load %arg15[%c8, %c0_276] : memref<64x16xf32, #tpu.memory_space<vmem>>, vector<1x16xf32>
    %c9 = arith.constant 9 : index
    %c0_277 = arith.constant 0 : index
    %160 = vector.load %arg15[%c9, %c0_277] : memref<64x16xf32, #tpu.memory_space<vmem>>, vector<1x16xf32>
    %161 = arith.maximumf %157, %158 : vector<1x16xf32>
    %162 = arith.maximumf %159, %160 : vector<1x16xf32>
    %163 = arith.maximumf %161, %162 : vector<1x16xf32>
    %c2_278 = arith.constant 2 : index
    %c0_279 = arith.constant 0 : index
    %164 = vector.load %arg15[%c2_278, %c0_279] : memref<64x16xf32, #tpu.memory_space<vmem>>, vector<1x16xf32>
    %c3_280 = arith.constant 3 : index
    %c0_281 = arith.constant 0 : index
    %165 = vector.load %arg15[%c3_280, %c0_281] : memref<64x16xf32, #tpu.memory_space<vmem>>, vector<1x16xf32>
    %c10 = arith.constant 10 : index
    %c0_282 = arith.constant 0 : index
    %166 = vector.load %arg15[%c10, %c0_282] : memref<64x16xf32, #tpu.memory_space<vmem>>, vector<1x16xf32>
    %c11 = arith.constant 11 : index
    %c0_283 = arith.constant 0 : index
    %167 = vector.load %arg15[%c11, %c0_283] : memref<64x16xf32, #tpu.memory_space<vmem>>, vector<1x16xf32>
    %168 = arith.maximumf %164, %165 : vector<1x16xf32>
    %169 = arith.maximumf %166, %167 : vector<1x16xf32>
    %170 = arith.maximumf %168, %169 : vector<1x16xf32>
    %c4_284 = arith.constant 4 : index
    %c0_285 = arith.constant 0 : index
    %171 = vector.load %arg15[%c4_284, %c0_285] : memref<64x16xf32, #tpu.memory_space<vmem>>, vector<1x16xf32>
    %c5_286 = arith.constant 5 : index
    %c0_287 = arith.constant 0 : index
    %172 = vector.load %arg15[%c5_286, %c0_287] : memref<64x16xf32, #tpu.memory_space<vmem>>, vector<1x16xf32>
    %c12 = arith.constant 12 : index
    %c0_288 = arith.constant 0 : index
    %173 = vector.load %arg15[%c12, %c0_288] : memref<64x16xf32, #tpu.memory_space<vmem>>, vector<1x16xf32>
    %c13 = arith.constant 13 : index
    %c0_289 = arith.constant 0 : index
    %174 = vector.load %arg15[%c13, %c0_289] : memref<64x16xf32, #tpu.memory_space<vmem>>, vector<1x16xf32>
    %175 = arith.maximumf %171, %172 : vector<1x16xf32>
    %176 = arith.maximumf %173, %174 : vector<1x16xf32>
    %177 = arith.maximumf %175, %176 : vector<1x16xf32>
    %c6 = arith.constant 6 : index
    %c0_290 = arith.constant 0 : index
    %178 = vector.load %arg15[%c6, %c0_290] : memref<64x16xf32, #tpu.memory_space<vmem>>, vector<1x16xf32>
    %c7 = arith.constant 7 : index
    %c0_291 = arith.constant 0 : index
    %179 = vector.load %arg15[%c7, %c0_291] : memref<64x16xf32, #tpu.memory_space<vmem>>, vector<1x16xf32>
    %c14 = arith.constant 14 : index
    %c0_292 = arith.constant 0 : index
    %180 = vector.load %arg15[%c14, %c0_292] : memref<64x16xf32, #tpu.memory_space<vmem>>, vector<1x16xf32>
    %c15 = arith.constant 15 : index
    %c0_293 = arith.constant 0 : index
    %181 = vector.load %arg15[%c15, %c0_293] : memref<64x16xf32, #tpu.memory_space<vmem>>, vector<1x16xf32>
    %182 = arith.maximumf %178, %179 : vector<1x16xf32>
    %183 = arith.maximumf %180, %181 : vector<1x16xf32>
    %184 = arith.maximumf %182, %183 : vector<1x16xf32>
    %c16 = arith.constant 16 : index
    %c0_294 = arith.constant 0 : index
    %185 = vector.load %arg15[%c16, %c0_294] : memref<64x16xf32, #tpu.memory_space<vmem>>, vector<1x16xf32>
    %c17 = arith.constant 17 : index
    %c0_295 = arith.constant 0 : index
    %186 = vector.load %arg15[%c17, %c0_295] : memref<64x16xf32, #tpu.memory_space<vmem>>, vector<1x16xf32>
    %c24 = arith.constant 24 : index
    %c0_296 = arith.constant 0 : index
    %187 = vector.load %arg15[%c24, %c0_296] : memref<64x16xf32, #tpu.memory_space<vmem>>, vector<1x16xf32>
    %c25 = arith.constant 25 : index
    %c0_297 = arith.constant 0 : index
    %188 = vector.load %arg15[%c25, %c0_297] : memref<64x16xf32, #tpu.memory_space<vmem>>, vector<1x16xf32>
    %189 = arith.maximumf %185, %186 : vector<1x16xf32>
    %190 = arith.maximumf %187, %188 : vector<1x16xf32>
    %191 = arith.maximumf %189, %190 : vector<1x16xf32>
    %c18 = arith.constant 18 : index
    %c0_298 = arith.constant 0 : index
    %192 = vector.load %arg15[%c18, %c0_298] : memref<64x16xf32, #tpu.memory_space<vmem>>, vector<1x16xf32>
    %c19 = arith.constant 19 : index
    %c0_299 = arith.constant 0 : index
    %193 = vector.load %arg15[%c19, %c0_299] : memref<64x16xf32, #tpu.memory_space<vmem>>, vector<1x16xf32>
    %c26 = arith.constant 26 : index
    %c0_300 = arith.constant 0 : index
    %194 = vector.load %arg15[%c26, %c0_300] : memref<64x16xf32, #tpu.memory_space<vmem>>, vector<1x16xf32>
    %c27 = arith.constant 27 : index
    %c0_301 = arith.constant 0 : index
    %195 = vector.load %arg15[%c27, %c0_301] : memref<64x16xf32, #tpu.memory_space<vmem>>, vector<1x16xf32>
    %196 = arith.maximumf %192, %193 : vector<1x16xf32>
    %197 = arith.maximumf %194, %195 : vector<1x16xf32>
    %198 = arith.maximumf %196, %197 : vector<1x16xf32>
    %c20 = arith.constant 20 : index
    %c0_302 = arith.constant 0 : index
    %199 = vector.load %arg15[%c20, %c0_302] : memref<64x16xf32, #tpu.memory_space<vmem>>, vector<1x16xf32>
    %c21 = arith.constant 21 : index
    %c0_303 = arith.constant 0 : index
    %200 = vector.load %arg15[%c21, %c0_303] : memref<64x16xf32, #tpu.memory_space<vmem>>, vector<1x16xf32>
    %c28 = arith.constant 28 : index
    %c0_304 = arith.constant 0 : index
    %201 = vector.load %arg15[%c28, %c0_304] : memref<64x16xf32, #tpu.memory_space<vmem>>, vector<1x16xf32>
    %c29 = arith.constant 29 : index
    %c0_305 = arith.constant 0 : index
    %202 = vector.load %arg15[%c29, %c0_305] : memref<64x16xf32, #tpu.memory_space<vmem>>, vector<1x16xf32>
    %203 = arith.maximumf %199, %200 : vector<1x16xf32>
    %204 = arith.maximumf %201, %202 : vector<1x16xf32>
    %205 = arith.maximumf %203, %204 : vector<1x16xf32>
    %c22 = arith.constant 22 : index
    %c0_306 = arith.constant 0 : index
    %206 = vector.load %arg15[%c22, %c0_306] : memref<64x16xf32, #tpu.memory_space<vmem>>, vector<1x16xf32>
    %c23 = arith.constant 23 : index
    %c0_307 = arith.constant 0 : index
    %207 = vector.load %arg15[%c23, %c0_307] : memref<64x16xf32, #tpu.memory_space<vmem>>, vector<1x16xf32>
    %c30 = arith.constant 30 : index
    %c0_308 = arith.constant 0 : index
    %208 = vector.load %arg15[%c30, %c0_308] : memref<64x16xf32, #tpu.memory_space<vmem>>, vector<1x16xf32>
    %c31 = arith.constant 31 : index
    %c0_309 = arith.constant 0 : index
    %209 = vector.load %arg15[%c31, %c0_309] : memref<64x16xf32, #tpu.memory_space<vmem>>, vector<1x16xf32>
    %210 = arith.maximumf %206, %207 : vector<1x16xf32>
    %211 = arith.maximumf %208, %209 : vector<1x16xf32>
    %212 = arith.maximumf %210, %211 : vector<1x16xf32>
    %c32 = arith.constant 32 : index
    %c0_310 = arith.constant 0 : index
    %213 = vector.load %arg15[%c32, %c0_310] : memref<64x16xf32, #tpu.memory_space<vmem>>, vector<1x16xf32>
    %c33 = arith.constant 33 : index
    %c0_311 = arith.constant 0 : index
    %214 = vector.load %arg15[%c33, %c0_311] : memref<64x16xf32, #tpu.memory_space<vmem>>, vector<1x16xf32>
    %c40 = arith.constant 40 : index
    %c0_312 = arith.constant 0 : index
    %215 = vector.load %arg15[%c40, %c0_312] : memref<64x16xf32, #tpu.memory_space<vmem>>, vector<1x16xf32>
    %c41 = arith.constant 41 : index
    %c0_313 = arith.constant 0 : index
    %216 = vector.load %arg15[%c41, %c0_313] : memref<64x16xf32, #tpu.memory_space<vmem>>, vector<1x16xf32>
    %217 = arith.maximumf %213, %214 : vector<1x16xf32>
    %218 = arith.maximumf %215, %216 : vector<1x16xf32>
    %219 = arith.maximumf %217, %218 : vector<1x16xf32>
    %c34 = arith.constant 34 : index
    %c0_314 = arith.constant 0 : index
    %220 = vector.load %arg15[%c34, %c0_314] : memref<64x16xf32, #tpu.memory_space<vmem>>, vector<1x16xf32>
    %c35 = arith.constant 35 : index
    %c0_315 = arith.constant 0 : index
    %221 = vector.load %arg15[%c35, %c0_315] : memref<64x16xf32, #tpu.memory_space<vmem>>, vector<1x16xf32>
    %c42 = arith.constant 42 : index
    %c0_316 = arith.constant 0 : index
    %222 = vector.load %arg15[%c42, %c0_316] : memref<64x16xf32, #tpu.memory_space<vmem>>, vector<1x16xf32>
    %c43 = arith.constant 43 : index
    %c0_317 = arith.constant 0 : index
    %223 = vector.load %arg15[%c43, %c0_317] : memref<64x16xf32, #tpu.memory_space<vmem>>, vector<1x16xf32>
    %224 = arith.maximumf %220, %221 : vector<1x16xf32>
    %225 = arith.maximumf %222, %223 : vector<1x16xf32>
    %226 = arith.maximumf %224, %225 : vector<1x16xf32>
    %c36 = arith.constant 36 : index
    %c0_318 = arith.constant 0 : index
    %227 = vector.load %arg15[%c36, %c0_318] : memref<64x16xf32, #tpu.memory_space<vmem>>, vector<1x16xf32>
    %c37 = arith.constant 37 : index
    %c0_319 = arith.constant 0 : index
    %228 = vector.load %arg15[%c37, %c0_319] : memref<64x16xf32, #tpu.memory_space<vmem>>, vector<1x16xf32>
    %c44 = arith.constant 44 : index
    %c0_320 = arith.constant 0 : index
    %229 = vector.load %arg15[%c44, %c0_320] : memref<64x16xf32, #tpu.memory_space<vmem>>, vector<1x16xf32>
    %c45 = arith.constant 45 : index
    %c0_321 = arith.constant 0 : index
    %230 = vector.load %arg15[%c45, %c0_321] : memref<64x16xf32, #tpu.memory_space<vmem>>, vector<1x16xf32>
    %231 = arith.maximumf %227, %228 : vector<1x16xf32>
    %232 = arith.maximumf %229, %230 : vector<1x16xf32>
    %233 = arith.maximumf %231, %232 : vector<1x16xf32>
    %c38 = arith.constant 38 : index
    %c0_322 = arith.constant 0 : index
    %234 = vector.load %arg15[%c38, %c0_322] : memref<64x16xf32, #tpu.memory_space<vmem>>, vector<1x16xf32>
    %c39 = arith.constant 39 : index
    %c0_323 = arith.constant 0 : index
    %235 = vector.load %arg15[%c39, %c0_323] : memref<64x16xf32, #tpu.memory_space<vmem>>, vector<1x16xf32>
    %c46 = arith.constant 46 : index
    %c0_324 = arith.constant 0 : index
    %236 = vector.load %arg15[%c46, %c0_324] : memref<64x16xf32, #tpu.memory_space<vmem>>, vector<1x16xf32>
    %c47 = arith.constant 47 : index
    %c0_325 = arith.constant 0 : index
    %237 = vector.load %arg15[%c47, %c0_325] : memref<64x16xf32, #tpu.memory_space<vmem>>, vector<1x16xf32>
    %238 = arith.maximumf %234, %235 : vector<1x16xf32>
    %239 = arith.maximumf %236, %237 : vector<1x16xf32>
    %240 = arith.maximumf %238, %239 : vector<1x16xf32>
    %c48 = arith.constant 48 : index
    %c0_326 = arith.constant 0 : index
    %241 = vector.load %arg15[%c48, %c0_326] : memref<64x16xf32, #tpu.memory_space<vmem>>, vector<1x16xf32>
    %c49 = arith.constant 49 : index
    %c0_327 = arith.constant 0 : index
    %242 = vector.load %arg15[%c49, %c0_327] : memref<64x16xf32, #tpu.memory_space<vmem>>, vector<1x16xf32>
    %c56 = arith.constant 56 : index
    %c0_328 = arith.constant 0 : index
    %243 = vector.load %arg15[%c56, %c0_328] : memref<64x16xf32, #tpu.memory_space<vmem>>, vector<1x16xf32>
    %c57 = arith.constant 57 : index
    %c0_329 = arith.constant 0 : index
    %244 = vector.load %arg15[%c57, %c0_329] : memref<64x16xf32, #tpu.memory_space<vmem>>, vector<1x16xf32>
    %245 = arith.maximumf %241, %242 : vector<1x16xf32>
    %246 = arith.maximumf %243, %244 : vector<1x16xf32>
    %247 = arith.maximumf %245, %246 : vector<1x16xf32>
    %c50 = arith.constant 50 : index
    %c0_330 = arith.constant 0 : index
    %248 = vector.load %arg15[%c50, %c0_330] : memref<64x16xf32, #tpu.memory_space<vmem>>, vector<1x16xf32>
    %c51 = arith.constant 51 : index
    %c0_331 = arith.constant 0 : index
    %249 = vector.load %arg15[%c51, %c0_331] : memref<64x16xf32, #tpu.memory_space<vmem>>, vector<1x16xf32>
    %c58 = arith.constant 58 : index
    %c0_332 = arith.constant 0 : index
    %250 = vector.load %arg15[%c58, %c0_332] : memref<64x16xf32, #tpu.memory_space<vmem>>, vector<1x16xf32>
    %c59 = arith.constant 59 : index
    %c0_333 = arith.constant 0 : index
    %251 = vector.load %arg15[%c59, %c0_333] : memref<64x16xf32, #tpu.memory_space<vmem>>, vector<1x16xf32>
    %252 = arith.maximumf %248, %249 : vector<1x16xf32>
    %253 = arith.maximumf %250, %251 : vector<1x16xf32>
    %254 = arith.maximumf %252, %253 : vector<1x16xf32>
    %c52 = arith.constant 52 : index
    %c0_334 = arith.constant 0 : index
    %255 = vector.load %arg15[%c52, %c0_334] : memref<64x16xf32, #tpu.memory_space<vmem>>, vector<1x16xf32>
    %c53 = arith.constant 53 : index
    %c0_335 = arith.constant 0 : index
    %256 = vector.load %arg15[%c53, %c0_335] : memref<64x16xf32, #tpu.memory_space<vmem>>, vector<1x16xf32>
    %c60 = arith.constant 60 : index
    %c0_336 = arith.constant 0 : index
    %257 = vector.load %arg15[%c60, %c0_336] : memref<64x16xf32, #tpu.memory_space<vmem>>, vector<1x16xf32>
    %c61 = arith.constant 61 : index
    %c0_337 = arith.constant 0 : index
    %258 = vector.load %arg15[%c61, %c0_337] : memref<64x16xf32, #tpu.memory_space<vmem>>, vector<1x16xf32>
    %259 = arith.maximumf %255, %256 : vector<1x16xf32>
    %260 = arith.maximumf %257, %258 : vector<1x16xf32>
    %261 = arith.maximumf %259, %260 : vector<1x16xf32>
    %c54 = arith.constant 54 : index
    %c0_338 = arith.constant 0 : index
    %262 = vector.load %arg15[%c54, %c0_338] : memref<64x16xf32, #tpu.memory_space<vmem>>, vector<1x16xf32>
    %c55 = arith.constant 55 : index
    %c0_339 = arith.constant 0 : index
    %263 = vector.load %arg15[%c55, %c0_339] : memref<64x16xf32, #tpu.memory_space<vmem>>, vector<1x16xf32>
    %c62 = arith.constant 62 : index
    %c0_340 = arith.constant 0 : index
    %264 = vector.load %arg15[%c62, %c0_340] : memref<64x16xf32, #tpu.memory_space<vmem>>, vector<1x16xf32>
    %c63 = arith.constant 63 : index
    %c0_341 = arith.constant 0 : index
    %265 = vector.load %arg15[%c63, %c0_341] : memref<64x16xf32, #tpu.memory_space<vmem>>, vector<1x16xf32>
    %266 = arith.maximumf %262, %263 : vector<1x16xf32>
    %267 = arith.maximumf %264, %265 : vector<1x16xf32>
    %268 = arith.maximumf %266, %267 : vector<1x16xf32>
    %269 = tpu.concatenate %163, %170, %177, %184, %191, %198, %205, %212, %219, %226, %233, %240, %247, %254, %261, %268 in 1 : vector<1x16xf32>, vector<1x16xf32>, vector<1x16xf32>, vector<1x16xf32>, vector<1x16xf32>, vector<1x16xf32>, vector<1x16xf32>, vector<1x16xf32>, vector<1x16xf32>, vector<1x16xf32>, vector<1x16xf32>, vector<1x16xf32>, vector<1x16xf32>, vector<1x16xf32>, vector<1x16xf32>, vector<1x16xf32> -> vector<1x256xf32>
    %cst_342 = arith.constant 0.000000e+00 : f32
    %270 = vector.broadcast %cst_342 : f32 to vector<1x256xf32>
    %271 = arith.maximumf %269, %270 : vector<1x256xf32>
    %c0_343 = arith.constant 0 : index
    %c0_344 = arith.constant 0 : index
    %272 = vector.load %arg6[%c0_343, %c0_344] : memref<256x120xf32, #tpu.memory_space<vmem>>, vector<256x120xf32>
    %cst_345 = arith.constant dense<0.000000e+00> : vector<1x120xf32>
    %273 = tpu.matmul %271, %272, %cst_345 {dimension_numbers = #tpu.dot_dimension_numbers<[1], [0], [0], [1], [0, 0, 1, 1], [], []>} : vector<1x256xf32>, vector<256x120xf32>, vector<1x120xf32> -> vector<1x120xf32>
    %c0_346 = arith.constant 0 : index
    %c0_347 = arith.constant 0 : index
    %274 = vector.load %arg7[%c0_346, %c0_347] : memref<1x120xf32, #tpu.memory_space<vmem>>, vector<1x120xf32>
    %275 = arith.addf %273, %274 : vector<1x120xf32>
    %cst_348 = arith.constant 0.000000e+00 : f32
    %276 = vector.broadcast %cst_348 : f32 to vector<1x120xf32>
    %277 = arith.maximumf %275, %276 : vector<1x120xf32>
    %c0_349 = arith.constant 0 : index
    %c0_350 = arith.constant 0 : index
    %278 = vector.load %arg8[%c0_349, %c0_350] : memref<120x84xf32, #tpu.memory_space<vmem>>, vector<120x84xf32>
    %cst_351 = arith.constant dense<0.000000e+00> : vector<1x84xf32>
    %279 = tpu.matmul %277, %278, %cst_351 {dimension_numbers = #tpu.dot_dimension_numbers<[1], [0], [0], [1], [0, 0, 1, 1], [], []>} : vector<1x120xf32>, vector<120x84xf32>, vector<1x84xf32> -> vector<1x84xf32>
    %c0_352 = arith.constant 0 : index
    %c0_353 = arith.constant 0 : index
    %280 = vector.load %arg9[%c0_352, %c0_353] : memref<1x84xf32, #tpu.memory_space<vmem>>, vector<1x84xf32>
    %281 = arith.addf %279, %280 : vector<1x84xf32>
    %cst_354 = arith.constant 0.000000e+00 : f32
    %282 = vector.broadcast %cst_354 : f32 to vector<1x84xf32>
    %283 = arith.maximumf %281, %282 : vector<1x84xf32>
    %c0_355 = arith.constant 0 : index
    %c0_356 = arith.constant 0 : index
    %284 = vector.load %arg10[%c0_355, %c0_356] : memref<84x10xf32, #tpu.memory_space<vmem>>, vector<84x10xf32>
    %cst_357 = arith.constant dense<0.000000e+00> : vector<1x10xf32>
    %285 = tpu.matmul %283, %284, %cst_357 {dimension_numbers = #tpu.dot_dimension_numbers<[1], [0], [0], [1], [0, 0, 1, 1], [], []>} : vector<1x84xf32>, vector<84x10xf32>, vector<1x10xf32> -> vector<1x10xf32>
    %c0_358 = arith.constant 0 : index
    %c0_359 = arith.constant 0 : index
    %286 = vector.load %arg11[%c0_358, %c0_359] : memref<1x10xf32, #tpu.memory_space<vmem>>, vector<1x10xf32>
    %287 = arith.addf %285, %286 : vector<1x10xf32>
    %c0_360 = arith.constant 0 : index
    %c0_361 = arith.constant 0 : index
    %c0_362 = arith.constant 0 : index
    %288 = vector.load %arg12[%c0_360, %c0_361, %c0_362] : memref<1x1x10xf32, #tpu.memory_space<vmem>>, vector<1x1x10xf32>
    %289 = vector.shape_cast %288 : vector<1x1x10xf32> to vector<1x10xf32>
    %290 = vector.shape_cast %287 : vector<1x10xf32> to vector<1x1x10xf32>
    tpu.vector_store %arg12[%c0_360, %c0_361, %c0_362], %290 {strides = array<i32>} : memref<1x1x10xf32, #tpu.memory_space<vmem>>, vector<1x1x10xf32>,
    return
  }
  func.func @transform_0(%arg0: i32) -> (i32, i32, i32, i32) {
    %c0_i32 = arith.constant 0 : i32
    %c0_i32_0 = arith.constant 0 : i32
    %c0_i32_1 = arith.constant 0 : i32
    %c0_i32_2 = arith.constant 0 : i32
    return %arg0, %c0_i32, %c0_i32_0, %c0_i32_1 : i32, i32, i32, i32
  }
  func.func @transform_1(%arg0: i32) -> (i32, i32) {
    %c0_i32 = arith.constant 0 : i32
    %c0_i32_0 = arith.constant 0 : i32
    %c0_i32_1 = arith.constant 0 : i32
    return %c0_i32, %c0_i32_0 : i32, i32
  }
  func.func @transform_2(%arg0: i32) -> (i32, i32) {
    %c0_i32 = arith.constant 0 : i32
    %c0_i32_0 = arith.constant 0 : i32
    %c0_i32_1 = arith.constant 0 : i32
    return %c0_i32, %c0_i32_0 : i32, i32
  }
  func.func @transform_3(%arg0: i32) -> (i32, i32) {
    %c0_i32 = arith.constant 0 : i32
    %c0_i32_0 = arith.constant 0 : i32
    %c0_i32_1 = arith.constant 0 : i32
    return %c0_i32, %c0_i32_0 : i32, i32
  }
  func.func @transform_4(%arg0: i32) -> (i32, i32) {
    %c0_i32 = arith.constant 0 : i32
    %c0_i32_0 = arith.constant 0 : i32
    %c0_i32_1 = arith.constant 0 : i32
    return %c0_i32, %c0_i32_0 : i32, i32
  }
  func.func @transform_5(%arg0: i32) -> (i32, i32) {
    %c0_i32 = arith.constant 0 : i32
    %c0_i32_0 = arith.constant 0 : i32
    %c0_i32_1 = arith.constant 0 : i32
    return %c0_i32, %c0_i32_0 : i32, i32
  }
  func.func @transform_6(%arg0: i32) -> (i32, i32) {
    %c0_i32 = arith.constant 0 : i32
    %c0_i32_0 = arith.constant 0 : i32
    %c0_i32_1 = arith.constant 0 : i32
    return %c0_i32, %c0_i32_0 : i32, i32
  }
  func.func @transform_7(%arg0: i32) -> (i32, i32) {
    %c0_i32 = arith.constant 0 : i32
    %c0_i32_0 = arith.constant 0 : i32
    %c0_i32_1 = arith.constant 0 : i32
    return %c0_i32, %c0_i32_0 : i32, i32
  }
  func.func @transform_8(%arg0: i32) -> (i32, i32) {
    %c0_i32 = arith.constant 0 : i32
    %c0_i32_0 = arith.constant 0 : i32
    %c0_i32_1 = arith.constant 0 : i32
    return %c0_i32, %c0_i32_0 : i32, i32
  }
  func.func @transform_9(%arg0: i32) -> (i32, i32) {
    %c0_i32 = arith.constant 0 : i32
    %c0_i32_0 = arith.constant 0 : i32
    %c0_i32_1 = arith.constant 0 : i32
    return %c0_i32, %c0_i32_0 : i32, i32
  }
  func.func @transform_10(%arg0: i32) -> (i32, i32) {
    %c0_i32 = arith.constant 0 : i32
    %c0_i32_0 = arith.constant 0 : i32
    %c0_i32_1 = arith.constant 0 : i32
    return %c0_i32, %c0_i32_0 : i32, i32
  }
  func.func @transform_11(%arg0: i32) -> (i32, i32, i32) {
    %c0_i32 = arith.constant 0 : i32
    %c0_i32_0 = arith.constant 0 : i32
    %c0_i32_1 = arith.constant 0 : i32
    return %arg0, %c0_i32, %c0_i32_0 : i32, i32, i32
  }
}

</mosaic_0001>

<llo_original>
// kernel: tpu_custom_call.1
$region0: #{tpu_custom_call.1}
  #allocation0 [shape = 'u32[]', space=smem, size = 0x4, offset = 0x4, fixed_abs, tag = 'smem constant byte address 0x4 - core index']
  #allocation1 [shape = 'u32[144,128]{1,0:T(1,128)}', space=vmem, size = 0x12000, scoped, tag = 'internal scratch']
  #allocation2 [shape = 'f32[1,20,20,4]{3,2,1,0:T(8,128)}', space=vmem, size = 0x3c000, scoped, tag = 'scratch operand']
  #allocation3 [shape = 'f32[1,12,12,6]{3,2,1,0:T(8,128)}', space=vmem, size = 0x18000, scoped, tag = 'scratch operand']
  #allocation4 [shape = 'f32[64,16]{1,0:T(8,128)}', space=vmem, size = 0x8000, scoped, tag = 'scratch operand']
  %s0 = inlined_call_operand.vmem [shape: f32[2,16,16,4], index: 0, kind: input, shape index: {}]
  %s1 = inlined_call_operand.vmem [shape: f32[144,24], index: 1, kind: input, shape index: {}]
  %s2 = inlined_call_operand.vmem [shape: f32[1,24], index: 2, kind: input, shape index: {}]
  %s3 = inlined_call_operand.vmem [shape: f32[150,16], index: 3, kind: input, shape index: {}]
  %s4 = inlined_call_operand.vmem [shape: f32[1,16], index: 4, kind: input, shape index: {}]
  %s5 = inlined_call_operand.vmem [shape: f32[256,120], index: 5, kind: input, shape index: {}]
  %s6 = inlined_call_operand.vmem [shape: f32[1,120], index: 6, kind: input, shape index: {}]
  %s7 = inlined_call_operand.vmem [shape: f32[120,84], index: 7, kind: input, shape index: {}]
  %s8 = inlined_call_operand.vmem [shape: f32[1,84], index: 8, kind: input, shape index: {}]
  %s9 = inlined_call_operand.vmem [shape: f32[84,10], index: 9, kind: input, shape index: {}]
  %s10 = inlined_call_operand.vmem [shape: f32[1,10], index: 10, kind: input, shape index: {}]
  %s11 = inlined_call_operand.hbm [shape: f32[2,1,10], index: 11, kind: output, shape index: {}]
  %s12 = sld [smem:[#allocation0]]
  $region77: #{tpu_custom_call.1} parent=0
    _
  %s14 = ssub.s32 1, %s12
  %s15 = scalar_select 0, %s14, %s12
  $region1: #{tpu_custom_call.1} parent=0
    #allocation5 [shape = 'u8[1024]{0}', space=vmem, size = 0x400, scoped, tag = 'output window, operand 0']
    #allocation6 [shape = 's32[2]{0}', space=sflag, size = 0x8, scoped, tag = 'scoped memory for tpu_custom_call.1']
    %16 = vsyncpa [#allocation6], 0
    %s17 = scalar_lea.sflag [#allocation6], 1
    %18 = vsyncpa %s17, 0
    loop: start=0, step=1, limit=4
    $region2: #{tpu_custom_call.1} parent=1 // loop_pre_header
      _
    $region3: #{tpu_custom_call.1} parent=1 // loop_header
      %s20 = sphi 0, %s24
      %p21 = scmp.ge.s32.totalorder %s20, 4
      %s30 = sphi 0, %s32
      %s33 = sphi 0, %s30
      %s34 = sphi 0, %s33
      %s50 = sphi 0, %s34
      %s54 = sphi 0, %s54
      %s56 = sphi 0, %s54
      %s57 = sphi 0, %s56
      %s71 = sphi 0, %s57
      %s75 = sphi 0, %s75
      %s77 = sphi 0, %s75
      %s78 = sphi 0, %s77
      %s92 = sphi 0, %s78
      %s96 = sphi 0, %s96
      %s98 = sphi 0, %s96
      %s99 = sphi 0, %s98
      %s113 = sphi 0, %s99
      %s117 = sphi 0, %s117
      %s119 = sphi 0, %s117
      %s120 = sphi 0, %s119
      %s134 = sphi 0, %s120
      %s138 = sphi 0, %s138
      %s140 = sphi 0, %s138
      %s141 = sphi 0, %s140
      %s155 = sphi 0, %s141
      %s159 = sphi 0, %s159
      %s161 = sphi 0, %s159
      %s162 = sphi 0, %s161
      %s176 = sphi 0, %s162
      %s180 = sphi 0, %s180
      %s182 = sphi 0, %s180
      %s183 = sphi 0, %s182
      %s197 = sphi 0, %s183
      %s201 = sphi 0, %s201
      %s203 = sphi 0, %s201
      %s204 = sphi 0, %s203
      %s218 = sphi 0, %s204
      %s222 = sphi 0, %s222
      %s224 = sphi 0, %s222
      %s225 = sphi 0, %s224
      %s239 = sphi 0, %s225
      %s243 = sphi 0, %s243
      %s245 = sphi 0, %s243
      %s246 = sphi 0, %s245
      %s260 = sphi 0, %s246
      %s266 = sphi 0, %s268
      %s269 = sphi 0, %s266
      %s270 = sphi 0, %s269
      %s286 = sphi 0, %s270
    $region4: #{tpu_custom_call.1} parent=1 // loop_header_branch
      %23 = sbr.rel (%p21) target = $region8
    $region5: #{tpu_custom_call.1} parent=1 // loop_body
      %s25 = ssub.s32 %s20, 1
      %s26 = ssub.s32 %s20, 2
      %s27 = sadd.s32 %s20, 1
      %s28 = ssub.s32 %s20, %s27
      %p29 = scmp.eq.s32.totalorder %s28, 0
      %s31 = sadd.s32 %s30, 1
      %s32 = scalar_select %p29, %s30, %s31
      %p35 = pneg %p29
      %p36 = scmp.eq.s32.totalorder %s20, 1
      %p37 = por %p35, %p36
      %p38 = scmp.ne.s32.totalorder %s30, %s33
      %p39 = scmp.eq.s32.totalorder %s20, 0
      %p40 = por %p38, %p39
      %p41 = scmp.ne.s32.totalorder %s30, %s33
      %p42 = scmp.eq.s32.totalorder %s25, 1
      %p43 = por %p41, %p42
      %p44 = scmp.ne.s32.totalorder %s33, %s34
      %p45 = scmp.eq.s32.totalorder %s25, 0
      %p46 = por %p44, %p45
      %p47 = scmp.ne.s32.totalorder %s33, %s34
      %p48 = scmp.eq.s32.totalorder %s26, 1
      %p49 = por %p47, %p48
      %p51 = scmp.ne.s32.totalorder %s34, %s50
      %p52 = scmp.eq.s32.totalorder %s26, 0
      %p53 = por %p51, %p52
      %s55 = sadd.s32 %s54, 1
      %p58 = scmp.eq.s32.totalorder %s20, 1
      %p59 = scmp.ne.s32.totalorder %s54, %s56
      %p60 = scmp.eq.s32.totalorder %s20, 0
      %p61 = por %p59, %p60
      %p62 = scmp.ne.s32.totalorder %s54, %s56
      %p63 = scmp.eq.s32.totalorder %s25, 1
      %p64 = por %p62, %p63
      %p65 = scmp.ne.s32.totalorder %s56, %s57
      %p66 = scmp.eq.s32.totalorder %s25, 0
      %p67 = por %p65, %p66
      %p68 = scmp.ne.s32.totalorder %s56, %s57
      %p69 = scmp.eq.s32.totalorder %s26, 1
      %p70 = por %p68, %p69
      %p72 = scmp.ne.s32.totalorder %s57, %s71
      %p73 = scmp.eq.s32.totalorder %s26, 0
      %p74 = por %p72, %p73
      %s76 = sadd.s32 %s75, 1
      %p79 = scmp.eq.s32.totalorder %s20, 1
      %p80 = scmp.ne.s32.totalorder %s75, %s77
      %p81 = scmp.eq.s32.totalorder %s20, 0
      %p82 = por %p80, %p81
      %p83 = scmp.ne.s32.totalorder %s75, %s77
      %p84 = scmp.eq.s32.totalorder %s25, 1
      %p85 = por %p83, %p84
      %p86 = scmp.ne.s32.totalorder %s77, %s78
      %p87 = scmp.eq.s32.totalorder %s25, 0
      %p88 = por %p86, %p87
      %p89 = scmp.ne.s32.totalorder %s77, %s78
      %p90 = scmp.eq.s32.totalorder %s26, 1
      %p91 = por %p89, %p90
      %p93 = scmp.ne.s32.totalorder %s78, %s92
      %p94 = scmp.eq.s32.totalorder %s26, 0
      %p95 = por %p93, %p94
      %s97 = sadd.s32 %s96, 1
      %p100 = scmp.eq.s32.totalorder %s20, 1
      %p101 = scmp.ne.s32.totalorder %s96, %s98
      %p102 = scmp.eq.s32.totalorder %s20, 0
      %p103 = por %p101, %p102
      %p104 = scmp.ne.s32.totalorder %s96, %s98
      %p105 = scmp.eq.s32.totalorder %s25, 1
      %p106 = por %p104, %p105
      %p107 = scmp.ne.s32.totalorder %s98, %s99
      %p108 = scmp.eq.s32.totalorder %s25, 0
      %p109 = por %p107, %p108
      %p110 = scmp.ne.s32.totalorder %s98, %s99
      %p111 = scmp.eq.s32.totalorder %s26, 1
      %p112 = por %p110, %p111
      %p114 = scmp.ne.s32.totalorder %s99, %s113
      %p115 = scmp.eq.s32.totalorder %s26, 0
      %p116 = por %p114, %p115
      %s118 = sadd.s32 %s117, 1
      %p121 = scmp.eq.s32.totalorder %s20, 1
      %p122 = scmp.ne.s32.totalorder %s117, %s119
      %p123 = scmp.eq.s32.totalorder %s20, 0
      %p124 = por %p122, %p123
      %p125 = scmp.ne.s32.totalorder %s117, %s119
      %p126 = scmp.eq.s32.totalorder %s25, 1
      %p127 = por %p125, %p126
      %p128 = scmp.ne.s32.totalorder %s119, %s120
      %p129 = scmp.eq.s32.totalorder %s25, 0
      %p130 = por %p128, %p129
      %p131 = scmp.ne.s32.totalorder %s119, %s120
      %p132 = scmp.eq.s32.totalorder %s26, 1
      %p133 = por %p131, %p132
      %p135 = scmp.ne.s32.totalorder %s120, %s134
      %p136 = scmp.eq.s32.totalorder %s26, 0
      %p137 = por %p135, %p136
      %s139 = sadd.s32 %s138, 1
      %p142 = scmp.eq.s32.totalorder %s20, 1
      %p143 = scmp.ne.s32.totalorder %s138, %s140
      %p144 = scmp.eq.s32.totalorder %s20, 0
      %p145 = por %p143, %p144
      %p146 = scmp.ne.s32.totalorder %s138, %s140
      %p147 = scmp.eq.s32.totalorder %s25, 1
      %p148 = por %p146, %p147
      %p149 = scmp.ne.s32.totalorder %s140, %s141
      %p150 = scmp.eq.s32.totalorder %s25, 0
      %p151 = por %p149, %p150
      %p152 = scmp.ne.s32.totalorder %s140, %s141
      %p153 = scmp.eq.s32.totalorder %s26, 1
      %p154 = por %p152, %p153
      %p156 = scmp.ne.s32.totalorder %s141, %s155
      %p157 = scmp.eq.s32.totalorder %s26, 0
      %p158 = por %p156, %p157
      %s160 = sadd.s32 %s159, 1
      %p163 = scmp.eq.s32.totalorder %s20, 1
      %p164 = scmp.ne.s32.totalorder %s159, %s161
      %p165 = scmp.eq.s32.totalorder %s20, 0
      %p166 = por %p164, %p165
      %p167 = scmp.ne.s32.totalorder %s159, %s161
      %p168 = scmp.eq.s32.totalorder %s25, 1
      %p169 = por %p167, %p168
      %p170 = scmp.ne.s32.totalorder %s161, %s162
      %p171 = scmp.eq.s32.totalorder %s25, 0
      %p172 = por %p170, %p171
      %p173 = scmp.ne.s32.totalorder %s161, %s162
      %p174 = scmp.eq.s32.totalorder %s26, 1
      %p175 = por %p173, %p174
      %p177 = scmp.ne.s32.totalorder %s162, %s176
      %p178 = scmp.eq.s32.totalorder %s26, 0
      %p179 = por %p177, %p178
      %s181 = sadd.s32 %s180, 1
      %p184 = scmp.eq.s32.totalorder %s20, 1
      %p185 = scmp.ne.s32.totalorder %s180, %s182
      %p186 = scmp.eq.s32.totalorder %s20, 0
      %p187 = por %p185, %p186
      %p188 = scmp.ne.s32.totalorder %s180, %s182
      %p189 = scmp.eq.s32.totalorder %s25, 1
      %p190 = por %p188, %p189
      %p191 = scmp.ne.s32.totalorder %s182, %s183
      %p192 = scmp.eq.s32.totalorder %s25, 0
      %p193 = por %p191, %p192
      %p194 = scmp.ne.s32.totalorder %s182, %s183
      %p195 = scmp.eq.s32.totalorder %s26, 1
      %p196 = por %p194, %p195
      %p198 = scmp.ne.s32.totalorder %s183, %s197
      %p199 = scmp.eq.s32.totalorder %s26, 0
      %p200 = por %p198, %p199
      %s202 = sadd.s32 %s201, 1
      %p205 = scmp.eq.s32.totalorder %s20, 1
      %p206 = scmp.ne.s32.totalorder %s201, %s203
      %p207 = scmp.eq.s32.totalorder %s20, 0
      %p208 = por %p206, %p207
      %p209 = scmp.ne.s32.totalorder %s201, %s203
      %p210 = scmp.eq.s32.totalorder %s25, 1
      %p211 = por %p209, %p210
      %p212 = scmp.ne.s32.totalorder %s203, %s204
      %p213 = scmp.eq.s32.totalorder %s25, 0
      %p214 = por %p212, %p213
      %p215 = scmp.ne.s32.totalorder %s203, %s204
      %p216 = scmp.eq.s32.totalorder %s26, 1
      %p217 = por %p215, %p216
      %p219 = scmp.ne.s32.totalorder %s204, %s218
      %p220 = scmp.eq.s32.totalorder %s26, 0
      %p221 = por %p219, %p220
      %s223 = sadd.s32 %s222, 1
      %p226 = scmp.eq.s32.totalorder %s20, 1
      %p227 = scmp.ne.s32.totalorder %s222, %s224
      %p228 = scmp.eq.s32.totalorder %s20, 0
      %p229 = por %p227, %p228
      %p230 = scmp.ne.s32.totalorder %s222, %s224
      %p231 = scmp.eq.s32.totalorder %s25, 1
      %p232 = por %p230, %p231
      %p233 = scmp.ne.s32.totalorder %s224, %s225
      %p234 = scmp.eq.s32.totalorder %s25, 0
      %p235 = por %p233, %p234
      %p236 = scmp.ne.s32.totalorder %s224, %s225
      %p237 = scmp.eq.s32.totalorder %s26, 1
      %p238 = por %p236, %p237
      %p240 = scmp.ne.s32.totalorder %s225, %s239
      %p241 = scmp.eq.s32.totalorder %s26, 0
      %p242 = por %p240, %p241
      %s244 = sadd.s32 %s243, 1
      %p247 = scmp.eq.s32.totalorder %s20, 1
      %p248 = scmp.ne.s32.totalorder %s243, %s245
      %p249 = scmp.eq.s32.totalorder %s20, 0
      %p250 = por %p248, %p249
      %p251 = scmp.ne.s32.totalorder %s243, %s245
      %p252 = scmp.eq.s32.totalorder %s25, 1
      %p253 = por %p251, %p252
      %p254 = scmp.ne.s32.totalorder %s245, %s246
      %p255 = scmp.eq.s32.totalorder %s25, 0
      %p256 = por %p254, %p255
      %p257 = scmp.ne.s32.totalorder %s245, %s246
      %p258 = scmp.eq.s32.totalorder %s26, 1
      %p259 = por %p257, %p258
      %p261 = scmp.ne.s32.totalorder %s246, %s260
      %p262 = scmp.eq.s32.totalorder %s26, 0
      %p263 = por %p261, %p262
      %s264 = ssub.s32 %s20, %s27
      %p265 = scmp.eq.s32.totalorder %s264, 0
      %s267 = sadd.s32 %s266, 1
      %s268 = scalar_select %p265, %s266, %s267
      %p271 = pneg %p265
      %p272 = scmp.eq.s32.totalorder %s20, 1
      %p273 = por %p271, %p272
      %p274 = scmp.ne.s32.totalorder %s266, %s269
      %p275 = scmp.eq.s32.totalorder %s20, 0
      %p276 = por %p274, %p275
      %p277 = scmp.ne.s32.totalorder %s266, %s269
      %p278 = scmp.eq.s32.totalorder %s25, 1
      %p279 = por %p277, %p278
      %p280 = scmp.ne.s32.totalorder %s269, %s270
      %p281 = scmp.eq.s32.totalorder %s25, 0
      %p282 = por %p280, %p281
      %p283 = scmp.ne.s32.totalorder %s269, %s270
      %p284 = scmp.eq.s32.totalorder %s26, 1
      %p285 = por %p283, %p284
      %p287 = scmp.ne.s32.totalorder %s270, %s286
      %p288 = scmp.eq.s32.totalorder %s26, 0
      %p289 = por %p287, %p288
      %p290 = scmp.le.s32.totalorder 1, %s20
      %p291 = scmp.lt.s32.totalorder %s20, 3
      %p292 = pnand %p290, %p291
      %p293 = pneg %p292
      // Predicated region
      $region9: #{tpu_custom_call.1} parent=5 // pred_check
        _
      $region10: #{tpu_custom_call.1} parent=5 // pred_check_branch
        %295 = sbr.rel (%p292) target = $region12
      $region11: #{tpu_custom_call.1} parent=5 // pred_region
        %s296 = ssub.s32 %s20, 1
        // Predicated region
        $region13: #{tpu_custom_call.1} parent=11 // pred_check
          %p297 = pneg %p67
        $region14: #{tpu_custom_call.1} parent=11 // pred_check_branch
          %299 = sbr.rel (%p297) target = $region16
        $region15: #{tpu_custom_call.1} parent=11 // pred_region
          _
        $region16: #{tpu_custom_call.1} parent=11 // pred_fallthru
          _
        // Predicated region
        $region17: #{tpu_custom_call.1} parent=11 // pred_check
          %p300 = pneg %p88
        $region18: #{tpu_custom_call.1} parent=11 // pred_check_branch
          %302 = sbr.rel (%p300) target = $region20
        $region19: #{tpu_custom_call.1} parent=11 // pred_region
          _
        $region20: #{tpu_custom_call.1} parent=11 // pred_fallthru
          _
        // Predicated region
        $region21: #{tpu_custom_call.1} parent=11 // pred_check
          %p303 = pneg %p109
        $region22: #{tpu_custom_call.1} parent=11 // pred_check_branch
          %305 = sbr.rel (%p303) target = $region24
        $region23: #{tpu_custom_call.1} parent=11 // pred_region
          _
        $region24: #{tpu_custom_call.1} parent=11 // pred_fallthru
          _
        // Predicated region
        $region25: #{tpu_custom_call.1} parent=11 // pred_check
          %p306 = pneg %p130
        $region26: #{tpu_custom_call.1} parent=11 // pred_check_branch
          %308 = sbr.rel (%p306) target = $region28
        $region27: #{tpu_custom_call.1} parent=11 // pred_region
          _
        $region28: #{tpu_custom_call.1} parent=11 // pred_fallthru
          _
        // Predicated region
        $region29: #{tpu_custom_call.1} parent=11 // pred_check
          %p309 = pneg %p151
        $region30: #{tpu_custom_call.1} parent=11 // pred_check_branch
          %311 = sbr.rel (%p309) target = $region32
        $region31: #{tpu_custom_call.1} parent=11 // pred_region
          _
        $region32: #{tpu_custom_call.1} parent=11 // pred_fallthru
          _
        // Predicated region
        $region33: #{tpu_custom_call.1} parent=11 // pred_check
          %p312 = pneg %p172
        $region34: #{tpu_custom_call.1} parent=11 // pred_check_branch
          %314 = sbr.rel (%p312) target = $region36
        $region35: #{tpu_custom_call.1} parent=11 // pred_region
          _
        $region36: #{tpu_custom_call.1} parent=11 // pred_fallthru
          _
        // Predicated region
        $region37: #{tpu_custom_call.1} parent=11 // pred_check
          %p315 = pneg %p193
        $region38: #{tpu_custom_call.1} parent=11 // pred_check_branch
          %317 = sbr.rel (%p315) target = $region40
        $region39: #{tpu_custom_call.1} parent=11 // pred_region
          _
        $region40: #{tpu_custom_call.1} parent=11 // pred_fallthru
          _
        // Predicated region
        $region41: #{tpu_custom_call.1} parent=11 // pred_check
          %p318 = pneg %p214
        $region42: #{tpu_custom_call.1} parent=11 // pred_check_branch
          %320 = sbr.rel (%p318) target = $region44
        $region43: #{tpu_custom_call.1} parent=11 // pred_region
          _
        $region44: #{tpu_custom_call.1} parent=11 // pred_fallthru
          _
        // Predicated region
        $region45: #{tpu_custom_call.1} parent=11 // pred_check
          %p321 = pneg %p235
        $region46: #{tpu_custom_call.1} parent=11 // pred_check_branch
          %323 = sbr.rel (%p321) target = $region48
        $region47: #{tpu_custom_call.1} parent=11 // pred_region
          _
        $region48: #{tpu_custom_call.1} parent=11 // pred_fallthru
          _
        // Predicated region
        $region49: #{tpu_custom_call.1} parent=11 // pred_check
          %p324 = pneg %p256
        $region50: #{tpu_custom_call.1} parent=11 // pred_check_branch
          %326 = sbr.rel (%p324) target = $region52
        $region51: #{tpu_custom_call.1} parent=11 // pred_region
          _
        $region52: #{tpu_custom_call.1} parent=11 // pred_fallthru
          _
      $region12: #{tpu_custom_call.1} parent=5 // pred_fallthru
        _
      %p327 = scmp.lt.s32.totalorder %s20, 2
      // Predicated region
      $region53: #{tpu_custom_call.1} parent=5 // pred_check
        %p328 = pneg %p327
      $region54: #{tpu_custom_call.1} parent=5 // pred_check_branch
        %330 = sbr.rel (%p328) target = $region56
      $region55: #{tpu_custom_call.1} parent=5 // pred_region
        // Predicated region
        $region57: #{tpu_custom_call.1} parent=55 // pred_check
          %p331 = pneg %p40
        $region58: #{tpu_custom_call.1} parent=55 // pred_check_branch
          %333 = sbr.rel (%p331) target = $region60
        $region59: #{tpu_custom_call.1} parent=55 // pred_region
          %p334 = scmp.lt.s32.totalorder %s20, 1
          %s335 = scalar_select %p334, %s20, 1
          %s336 = smul.addr %s335, 32
          %s337 = smul.addr %s336, 8
          %s338 = scalar_lea.vmem %s0, %s337
        $region60: #{tpu_custom_call.1} parent=55 // pred_fallthru
          _
      $region56: #{tpu_custom_call.1} parent=5 // pred_fallthru
        _
      %p339 = scmp.le.s32.totalorder 1, %s20
      %p340 = scmp.lt.s32.totalorder %s20, 3
      %p341 = pnand %p339, %p340
      %p342 = pneg %p341
      // Predicated region
      $region61: #{tpu_custom_call.1} parent=5 // pred_check
        _
      $region62: #{tpu_custom_call.1} parent=5 // pred_check_branch
        %344 = sbr.rel (%p341) target = $region64
      $region63: #{tpu_custom_call.1} parent=5 // pred_region
        %s345 = ssub.s32 %s20, 1
        %p346 = scmp.lt.s32.totalorder %s25, 1
        %s347 = scalar_select %p346, %s25, 1
        %s348 = smul.addr %s347, 32
        %s349 = smul.addr %s348, 8
        %s350 = scalar_lea.vmem %s0, %s349
        %p351 = pneg %p46
        %p352 = pneg %p43
        %p353 = pneg %p67
        %p354 = pneg %p64
        %p355 = pneg %p88
        %p356 = pneg %p85
        %p357 = pneg %p109
        %p358 = pneg %p106
        %p359 = pneg %p130
        %p360 = pneg %p127
        %p361 = pneg %p151
        %p362 = pneg %p148
        %p363 = pneg %p172
        %p364 = pneg %p169
        %p365 = pneg %p193
        %p366 = pneg %p190
        %p367 = pneg %p214
        %p368 = pneg %p211
        %p369 = pneg %p235
        %p370 = pneg %p232
        %p371 = pneg %p256
        %p372 = pneg %p253
        %p373 = pneg %p282
        %p374 = pneg %p279
        %s375 = sand.u32 %s269, 1
        %s376 = scalar_lea.sflag [#allocation6], %s375
        %s377 = sand.u32 %s269, 1
        %s378 = scalar_lea.vmem [#allocation5], %s377
        %p379 = scmp.lt.s32.totalorder %s25, 1
        %s380 = scalar_select %p379, %s25, 1
        %s381 = smul.addr %s380, 32
        %s382 = smul.addr %s381, 8
        %s383 = scalar_lea.vmem %s0, %s382
        %vm384 = vcmask 31744
        %385 = vst.msk [vmem:[#allocation2] sm:$0xff] %vm384, 0.0
        %386 = vst.msk [vmem:[#allocation2 + $0x8] sm:$0xff] %vm384, 0.0
        %vm387 = vcmask 27648
        %388 = vst.msk [vmem:[#allocation2 + $0x10] sm:$0xf] %vm387, 0.0
        %389 = vst.msk [vmem:[#allocation2 + $0x18] sm:$0xff] %vm384, 0.0
        %390 = vst.msk [vmem:[#allocation2 + $0x20] sm:$0xff] %vm384, 0.0
        %391 = vst.msk [vmem:[#allocation2 + $0x28] sm:$0xf] %vm387, 0.0
        %392 = vst.msk [vmem:[#allocation2 + $0x30] sm:$0xff] %vm384, 0.0
        %393 = vst.msk [vmem:[#allocation2 + $0x38] sm:$0xff] %vm384, 0.0
        %394 = vst.msk [vmem:[#allocation2 + $0x40] sm:$0xf] %vm387, 0.0
        %395 = vst.msk [vmem:[#allocation2 + $0x48] sm:$0xff] %vm384, 0.0
        %396 = vst.msk [vmem:[#allocation2 + $0x50] sm:$0xff] %vm384, 0.0
        %397 = vst.msk [vmem:[#allocation2 + $0x58] sm:$0xf] %vm387, 0.0
        %398 = vst.msk [vmem:[#allocation2 + $0x60] sm:$0xff] %vm384, 0.0
        %399 = vst.msk [vmem:[#allocation2 + $0x68] sm:$0xff] %vm384, 0.0
        %400 = vst.msk [vmem:[#allocation2 + $0x70] sm:$0xf] %vm387, 0.0
        %401 = vst.msk [vmem:[#allocation2 + $0x78] sm:$0xff] %vm384, 0.0
        %402 = vst.msk [vmem:[#allocation2 + $0x80] sm:$0xff] %vm384, 0.0
        %403 = vst.msk [vmem:[#allocation2 + $0x88] sm:$0xf] %vm387, 0.0
        %404 = vst.msk [vmem:[#allocation2 + $0x90] sm:$0xff] %vm384, 0.0
        %405 = vst.msk [vmem:[#allocation2 + $0x98] sm:$0xff] %vm384, 0.0
        %406 = vst.msk [vmem:[#allocation2 + $0xa0] sm:$0xf] %vm387, 0.0
        %407 = vst.msk [vmem:[#allocation2 + $0xa8] sm:$0xff] %vm384, 0.0
        %408 = vst.msk [vmem:[#allocation2 + $0xb0] sm:$0xff] %vm384, 0.0
        %409 = vst.msk [vmem:[#allocation2 + $0xb8] sm:$0xf] %vm387, 0.0
        %410 = vst.msk [vmem:[#allocation2 + $0xc0] sm:$0xff] %vm384, 0.0
        %411 = vst.msk [vmem:[#allocation2 + $0xc8] sm:$0xff] %vm384, 0.0
        %412 = vst.msk [vmem:[#allocation2 + $0xd0] sm:$0xf] %vm387, 0.0
        %413 = vst.msk [vmem:[#allocation2 + $0xd8] sm:$0xff] %vm384, 0.0
        %414 = vst.msk [vmem:[#allocation2 + $0xe0] sm:$0xff] %vm384, 0.0
        %415 = vst.msk [vmem:[#allocation2 + $0xe8] sm:$0xf] %vm387, 0.0
        %416 = vst.msk [vmem:[#allocation2 + $0xf0] sm:$0xff] %vm384, 0.0
        %417 = vst.msk [vmem:[#allocation2 + $0xf8] sm:$0xff] %vm384, 0.0
        %418 = vst.msk [vmem:[#allocation2 + $0x100] sm:$0xf] %vm387, 0.0
        %419 = vst.msk [vmem:[#allocation2 + $0x108] sm:$0xff] %vm384, 0.0
        %420 = vst.msk [vmem:[#allocation2 + $0x110] sm:$0xff] %vm384, 0.0
        %421 = vst.msk [vmem:[#allocation2 + $0x118] sm:$0xf] %vm387, 0.0
        %422 = vst.msk [vmem:[#allocation2 + $0x120] sm:$0xff] %vm384, 0.0
        %423 = vst.msk [vmem:[#allocation2 + $0x128] sm:$0xff] %vm384, 0.0
        %424 = vst.msk [vmem:[#allocation2 + $0x130] sm:$0xf] %vm387, 0.0
        %425 = vst.msk [vmem:[#allocation2 + $0x138] sm:$0xff] %vm384, 0.0
        %426 = vst.msk [vmem:[#allocation2 + $0x140] sm:$0xff] %vm384, 0.0
        %427 = vst.msk [vmem:[#allocation2 + $0x148] sm:$0xf] %vm387, 0.0
        %428 = vst.msk [vmem:[#allocation2 + $0x150] sm:$0xff] %vm384, 0.0
        %429 = vst.msk [vmem:[#allocation2 + $0x158] sm:$0xff] %vm384, 0.0
        %430 = vst.msk [vmem:[#allocation2 + $0x160] sm:$0xf] %vm387, 0.0
        %431 = vst.msk [vmem:[#allocation2 + $0x168] sm:$0xff] %vm384, 0.0
        %432 = vst.msk [vmem:[#allocation2 + $0x170] sm:$0xff] %vm384, 0.0
        %433 = vst.msk [vmem:[#allocation2 + $0x178] sm:$0xf] %vm387, 0.0
        %434 = vst.msk [vmem:[#allocation2 + $0x180] sm:$0xff] %vm384, 0.0
        %435 = vst.msk [vmem:[#allocation2 + $0x188] sm:$0xff] %vm384, 0.0
        %436 = vst.msk [vmem:[#allocation2 + $0x190] sm:$0xf] %vm387, 0.0
        %437 = vst.msk [vmem:[#allocation2 + $0x198] sm:$0xff] %vm384, 0.0
        %438 = vst.msk [vmem:[#allocation2 + $0x1a0] sm:$0xff] %vm384, 0.0
        %439 = vst.msk [vmem:[#allocation2 + $0x1a8] sm:$0xf] %vm387, 0.0
        %440 = vst.msk [vmem:[#allocation2 + $0x1b0] sm:$0xff] %vm384, 0.0
        %441 = vst.msk [vmem:[#allocation2 + $0x1b8] sm:$0xff] %vm384, 0.0
        %442 = vst.msk [vmem:[#allocation2 + $0x1c0] sm:$0xf] %vm387, 0.0
        %443 = vst.msk [vmem:[#allocation2 + $0x1c8] sm:$0xff] %vm384, 0.0
        %444 = vst.msk [vmem:[#allocation2 + $0x1d0] sm:$0xff] %vm384, 0.0
        %445 = vst.msk [vmem:[#allocation2 + $0x1d8] sm:$0xf] %vm387, 0.0
        %v446 = vld [vmem:[%s383] sm:$0xff]
        %v447 = vld [vmem:[%s383 + $0x8] sm:$0xff]
        %v448 = vld [vmem:[%s383 + $0x10] sm:$0xff]
        %v449 = vld [vmem:[%s383 + $0x18] sm:$0xff]
        %v450 = vld [vmem:[%s383 + $0x20] sm:$0xff]
        %v451 = vld [vmem:[%s383 + $0x28] sm:$0xff]
        %v452 = vld [vmem:[%s383 + $0x30] sm:$0xff]
        %v453 = vld [vmem:[%s383 + $0x38] sm:$0xff]
        %v454 = vld [vmem:[%s383 + $0x40] sm:$0xff]
        %v455 = vld [vmem:[%s383 + $0x48] sm:$0xff]
        %v456 = vld [vmem:[%s383 + $0x50] sm:$0xff]
        %v457 = vld [vmem:[%s383 + $0x58] sm:$0xff]
        %v458 = vld [vmem:[%s383 + $0x60] sm:$0xff]
        %v459 = vld [vmem:[%s383 + $0x68] sm:$0xff]
        %v460 = vld [vmem:[%s383 + $0x70] sm:$0xff]
        %v461 = vld [vmem:[%s383 + $0x78] sm:$0xff]
        %v462 = vld [vmem:[%s383 + $0x80] sm:$0xff]
        %v463 = vld [vmem:[%s383 + $0x88] sm:$0xff]
        %v464 = vld [vmem:[%s383 + $0x90] sm:$0xff]
        %v465 = vld [vmem:[%s383 + $0x98] sm:$0xff]
        %v466 = vld [vmem:[%s383 + $0xa0] sm:$0xff]
        %v467 = vld [vmem:[%s383 + $0xa8] sm:$0xff]
        %v468 = vld [vmem:[%s383 + $0xb0] sm:$0xff]
        %v469 = vld [vmem:[%s383 + $0xb8] sm:$0xff]
        %v470 = vld [vmem:[%s383 + $0xc0] sm:$0xff]
        %v471 = vld [vmem:[%s383 + $0xc8] sm:$0xff]
        %v472 = vld [vmem:[%s383 + $0xd0] sm:$0xff]
        %v473 = vld [vmem:[%s383 + $0xd8] sm:$0xff]
        %v474 = vld [vmem:[%s383 + $0xe0] sm:$0xff]
        %v475 = vld [vmem:[%s383 + $0xe8] sm:$0xff]
        %v476 = vld [vmem:[%s383 + $0xf0] sm:$0xff]
        %v477 = vld [vmem:[%s383 + $0xf8] sm:$0xff]
        %s478 = scalar_lea.vmem [#allocation2], 48
        %479 = vst.msk [vmem:[%s478 + $0x2] sm:$0xff] %vm384, %v446
        %480 = vst.msk [vmem:[%s478 + $0xa] sm:$0xff] %vm384, %v447
        %481 = vst.msk [vmem:[%s478 + $0x1a] sm:$0xff] %vm384, %v448
        %482 = vst.msk [vmem:[%s478 + $0x22] sm:$0xff] %vm384, %v449
        %483 = vst.msk [vmem:[%s478 + $0x32] sm:$0xff] %vm384, %v450
        %484 = vst.msk [vmem:[%s478 + $0x3a] sm:$0xff] %vm384, %v451
        %485 = vst.msk [vmem:[%s478 + $0x4a] sm:$0xff] %vm384, %v452
        %486 = vst.msk [vmem:[%s478 + $0x52] sm:$0xff] %vm384, %v453
        %487 = vst.msk [vmem:[%s478 + $0x62] sm:$0xff] %vm384, %v454
        %488 = vst.msk [vmem:[%s478 + $0x6a] sm:$0xff] %vm384, %v455
        %489 = vst.msk [vmem:[%s478 + $0x7a] sm:$0xff] %vm384, %v456
        %490 = vst.msk [vmem:[%s478 + $0x82] sm:$0xff] %vm384, %v457
        %491 = vst.msk [vmem:[%s478 + $0x92] sm:$0xff] %vm384, %v458
        %492 = vst.msk [vmem:[%s478 + $0x9a] sm:$0xff] %vm384, %v459
        %493 = vst.msk [vmem:[%s478 + $0xaa] sm:$0xff] %vm384, %v460
        %494 = vst.msk [vmem:[%s478 + $0xb2] sm:$0xff] %vm384, %v461
        %495 = vst.msk [vmem:[%s478 + $0xc2] sm:$0xff] %vm384, %v462
        %496 = vst.msk [vmem:[%s478 + $0xca] sm:$0xff] %vm384, %v463
        %497 = vst.msk [vmem:[%s478 + $0xda] sm:$0xff] %vm384, %v464
        %498 = vst.msk [vmem:[%s478 + $0xe2] sm:$0xff] %vm384, %v465
        %499 = vst.msk [vmem:[%s478 + $0xf2] sm:$0xff] %vm384, %v466
        %500 = vst.msk [vmem:[%s478 + $0xfa] sm:$0xff] %vm384, %v467
        %501 = vst.msk [vmem:[%s478 + $0x10a] sm:$0xff] %vm384, %v468
        %502 = vst.msk [vmem:[%s478 + $0x112] sm:$0xff] %vm384, %v469
        %503 = vst.msk [vmem:[%s478 + $0x122] sm:$0xff] %vm384, %v470
        %504 = vst.msk [vmem:[%s478 + $0x12a] sm:$0xff] %vm384, %v471
        %505 = vst.msk [vmem:[%s478 + $0x13a] sm:$0xff] %vm384, %v472
        %506 = vst.msk [vmem:[%s478 + $0x142] sm:$0xff] %vm384, %v473
        %507 = vst.msk [vmem:[%s478 + $0x152] sm:$0xff] %vm384, %v474
        %508 = vst.msk [vmem:[%s478 + $0x15a] sm:$0xff] %vm384, %v475
        %509 = vst.msk [vmem:[%s478 + $0x16a] sm:$0xff] %vm384, %v476
        %510 = vst.msk [vmem:[%s478 + $0x172] sm:$0xff] %vm384, %v477
        %v511 = vld [vmem:[#allocation2] ss:$2 sm:$0xff]
        %s512 = scalar_lea.vmem [#allocation2], 48
        %v513 = vld [vmem:[%s512] ss:$2 sm:$0xff]
        %s514 = scalar_lea.vmem [#allocation2], 96
        %v515 = vld [vmem:[%s514] ss:$2 sm:$0xff]
        %s516 = scalar_lea.vmem [#allocation2], 144
        %v517 = vld [vmem:[%s516] ss:$2 sm:$0xff]
        %s518 = scalar_lea.vmem [#allocation2], 192
        %v519 = vld [vmem:[%s518] ss:$2 sm:$0xff]
        %s520 = scalar_lea.vmem [#allocation2], 240
        %v521 = vld [vmem:[%s520] ss:$2 sm:$0xff]
        %s522 = scalar_lea.vmem [#allocation2], 288
        %v523 = vld [vmem:[%s522] ss:$2 sm:$0xff]
        %s524 = scalar_lea.vmem [#allocation2], 336
        %v525 = vld [vmem:[%s524] ss:$2 sm:$0xff]
        %s526 = scalar_lea.vmem [#allocation2], 1
        %v527 = vld [vmem:[%s526] ss:$2 sm:$0xff]
        %s528 = scalar_lea.vmem [#allocation2], 49
        %v529 = vld [vmem:[%s528] ss:$2 sm:$0xff]
        %s530 = scalar_lea.vmem [#allocation2], 97
        %v531 = vld [vmem:[%s530] ss:$2 sm:$0xff]
        %s532 = scalar_lea.vmem [#allocation2], 145
        %v533 = vld [vmem:[%s532] ss:$2 sm:$0xff]
        %s534 = scalar_lea.vmem [#allocation2], 193
        %v535 = vld [vmem:[%s534] ss:$2 sm:$0xff]
        %s536 = scalar_lea.vmem [#allocation2], 241
        %v537 = vld [vmem:[%s536] ss:$2 sm:$0xff]
        %s538 = scalar_lea.vmem [#allocation2], 289
        %v539 = vld [vmem:[%s538] ss:$2 sm:$0xff]
        %s540 = scalar_lea.vmem [#allocation2], 337
        %v541 = vld [vmem:[%s540] ss:$2 sm:$0xff]
        %s542 = scalar_lea.vmem [#allocation2], 2
        %v543 = vld [vmem:[%s542] ss:$2 sm:$0xff]
        %s544 = scalar_lea.vmem [#allocation2], 50
        %v545 = vld [vmem:[%s544] ss:$2 sm:$0xff]
        %s546 = scalar_lea.vmem [#allocation2], 98
        %v547 = vld [vmem:[%s546] ss:$2 sm:$0xff]
        %s548 = scalar_lea.vmem [#allocation2], 146
        %v549 = vld [vmem:[%s548] ss:$2 sm:$0xff]
        %s550 = scalar_lea.vmem [#allocation2], 194
        %v551 = vld [vmem:[%s550] ss:$2 sm:$0xff]
        %s552 = scalar_lea.vmem [#allocation2], 242
        %v553 = vld [vmem:[%s552] ss:$2 sm:$0xff]
        %s554 = scalar_lea.vmem [#allocation2], 290
        %v555 = vld [vmem:[%s554] ss:$2 sm:$0xff]
        %s556 = scalar_lea.vmem [#allocation2], 338
        %v557 = vld [vmem:[%s556] ss:$2 sm:$0xff]
        %s558 = scalar_lea.vmem [#allocation2], 3
        %v559 = vld [vmem:[%s558] ss:$2 sm:$0xff]
        %s560 = scalar_lea.vmem [#allocation2], 51
        %v561 = vld [vmem:[%s560] ss:$2 sm:$0xff]
        %s562 = scalar_lea.vmem [#allocation2], 99
        %v563 = vld [vmem:[%s562] ss:$2 sm:$0xff]
        %s564 = scalar_lea.vmem [#allocation2], 147
        %v565 = vld [vmem:[%s564] ss:$2 sm:$0xff]
        %s566 = scalar_lea.vmem [#allocation2], 195
        %v567 = vld [vmem:[%s566] ss:$2 sm:$0xff]
        %s568 = scalar_lea.vmem [#allocation2], 243
        %v569 = vld [vmem:[%s568] ss:$2 sm:$0xff]
        %s570 = scalar_lea.vmem [#allocation2], 291
        %v571 = vld [vmem:[%s570] ss:$2 sm:$0xff]
        %s572 = scalar_lea.vmem [#allocation2], 339
        %v573 = vld [vmem:[%s572] ss:$2 sm:$0xff]
        %s574 = scalar_lea.vmem [#allocation2], 4
        %v575 = vld [vmem:[%s574] ss:$2 sm:$0xff]
        %s576 = scalar_lea.vmem [#allocation2], 52
        %v577 = vld [vmem:[%s576] ss:$2 sm:$0xff]
        %s578 = scalar_lea.vmem [#allocation2], 100
        %v579 = vld [vmem:[%s578] ss:$2 sm:$0xff]
        %s580 = scalar_lea.vmem [#allocation2], 148
        %v581 = vld [vmem:[%s580] ss:$2 sm:$0xff]
        %s582 = scalar_lea.vmem [#allocation2], 196
        %v583 = vld [vmem:[%s582] ss:$2 sm:$0xff]
        %s584 = scalar_lea.vmem [#allocation2], 244
        %v585 = vld [vmem:[%s584] ss:$2 sm:$0xff]
        %s586 = scalar_lea.vmem [#allocation2], 292
        %v587 = vld [vmem:[%s586] ss:$2 sm:$0xff]
        %s588 = scalar_lea.vmem [#allocation2], 340
        %v589 = vld [vmem:[%s588] ss:$2 sm:$0xff]
        %s590 = scalar_lea.vmem [#allocation2], 5
        %v591 = vld [vmem:[%s590] ss:$2 sm:$0xff]
        %s592 = scalar_lea.vmem [#allocation2], 53
        %v593 = vld [vmem:[%s592] ss:$2 sm:$0xff]
        %s594 = scalar_lea.vmem [#allocation2], 101
        %v595 = vld [vmem:[%s594] ss:$2 sm:$0xff]
        %s596 = scalar_lea.vmem [#allocation2], 149
        %v597 = vld [vmem:[%s596] ss:$2 sm:$0xff]
        %s598 = scalar_lea.vmem [#allocation2], 197
        %v599 = vld [vmem:[%s598] ss:$2 sm:$0xff]
        %s600 = scalar_lea.vmem [#allocation2], 245
        %v601 = vld [vmem:[%s600] ss:$2 sm:$0xff]
        %s602 = scalar_lea.vmem [#allocation2], 293
        %v603 = vld [vmem:[%s602] ss:$2 sm:$0xff]
        %s604 = scalar_lea.vmem [#allocation2], 341
        %v605 = vld [vmem:[%s604] ss:$2 sm:$0xff]
        %s606 = scalar_lea.vmem [#allocation2], 24
        %v607 = vld [vmem:[%s606] ss:$2 sm:$0xff]
        %s608 = scalar_lea.vmem %s606, 48 [#allocation2]
        %v609 = vld [vmem:[%s608] ss:$2 sm:$0xff]
        %s610 = scalar_lea.vmem %s606, 96 [#allocation2]
        %v611 = vld [vmem:[%s610] ss:$2 sm:$0xff]
        %s612 = scalar_lea.vmem %s606, 144 [#allocation2]
        %v613 = vld [vmem:[%s612] ss:$2 sm:$0xff]
        %s614 = scalar_lea.vmem %s606, 192 [#allocation2]
        %v615 = vld [vmem:[%s614] ss:$2 sm:$0xff]
        %s616 = scalar_lea.vmem %s606, 240 [#allocation2]
        %v617 = vld [vmem:[%s616] ss:$2 sm:$0xff]
        %s618 = scalar_lea.vmem %s606, 288 [#allocation2]
        %v619 = vld [vmem:[%s618] ss:$2 sm:$0xff]
        %s620 = scalar_lea.vmem %s606, 336 [#allocation2]
        %v621 = vld [vmem:[%s620] ss:$2 sm:$0xff]
        %s622 = scalar_lea.vmem %s606, 1 [#allocation2]
        %v623 = vld [vmem:[%s622] ss:$2 sm:$0xff]
        %s624 = scalar_lea.vmem %s606, 49 [#allocation2]
        %v625 = vld [vmem:[%s624] ss:$2 sm:$0xff]
        %s626 = scalar_lea.vmem %s606, 97 [#allocation2]
        %v627 = vld [vmem:[%s626] ss:$2 sm:$0xff]
        %s628 = scalar_lea.vmem %s606, 145 [#allocation2]
        %v629 = vld [vmem:[%s628] ss:$2 sm:$0xff]
        %s630 = scalar_lea.vmem %s606, 193 [#allocation2]
        %v631 = vld [vmem:[%s630] ss:$2 sm:$0xff]
        %s632 = scalar_lea.vmem %s606, 241 [#allocation2]
        %v633 = vld [vmem:[%s632] ss:$2 sm:$0xff]
        %s634 = scalar_lea.vmem %s606, 289 [#allocation2]
        %v635 = vld [vmem:[%s634] ss:$2 sm:$0xff]
        %s636 = scalar_lea.vmem %s606, 337 [#allocation2]
        %v637 = vld [vmem:[%s636] ss:$2 sm:$0xff]
        %s638 = scalar_lea.vmem %s606, 2 [#allocation2]
        %v639 = vld [vmem:[%s638] ss:$2 sm:$0xff]
        %s640 = scalar_lea.vmem %s606, 50 [#allocation2]
        %v641 = vld [vmem:[%s640] ss:$2 sm:$0xff]
        %s642 = scalar_lea.vmem %s606, 98 [#allocation2]
        %v643 = vld [vmem:[%s642] ss:$2 sm:$0xff]
        %s644 = scalar_lea.vmem %s606, 146 [#allocation2]
        %v645 = vld [vmem:[%s644] ss:$2 sm:$0xff]
        %s646 = scalar_lea.vmem %s606, 194 [#allocation2]
        %v647 = vld [vmem:[%s646] ss:$2 sm:$0xff]
        %s648 = scalar_lea.vmem %s606, 242 [#allocation2]
        %v649 = vld [vmem:[%s648] ss:$2 sm:$0xff]
        %s650 = scalar_lea.vmem %s606, 290 [#allocation2]
        %v651 = vld [vmem:[%s650] ss:$2 sm:$0xff]
        %s652 = scalar_lea.vmem %s606, 338 [#allocation2]
        %v653 = vld [vmem:[%s652] ss:$2 sm:$0xff]
        %s654 = scalar_lea.vmem %s606, 3 [#allocation2]
        %v655 = vld [vmem:[%s654] ss:$2 sm:$0xff]
        %s656 = scalar_lea.vmem %s606, 51 [#allocation2]
        %v657 = vld [vmem:[%s656] ss:$2 sm:$0xff]
        %s658 = scalar_lea.vmem %s606, 99 [#allocation2]
        %v659 = vld [vmem:[%s658] ss:$2 sm:$0xff]
        %s660 = scalar_lea.vmem %s606, 147 [#allocation2]
        %v661 = vld [vmem:[%s660] ss:$2 sm:$0xff]
        %s662 = scalar_lea.vmem %s606, 195 [#allocation2]
        %v663 = vld [vmem:[%s662] ss:$2 sm:$0xff]
        %s664 = scalar_lea.vmem %s606, 243 [#allocation2]
        %v665 = vld [vmem:[%s664] ss:$2 sm:$0xff]
        %s666 = scalar_lea.vmem %s606, 291 [#allocation2]
        %v667 = vld [vmem:[%s666] ss:$2 sm:$0xff]
        %s668 = scalar_lea.vmem %s606, 339 [#allocation2]
        %v669 = vld [vmem:[%s668] ss:$2 sm:$0xff]
        %s670 = scalar_lea.vmem %s606, 4 [#allocation2]
        %v671 = vld [vmem:[%s670] ss:$2 sm:$0xff]
        %s672 = scalar_lea.vmem %s606, 52 [#allocation2]
        %v673 = vld [vmem:[%s672] ss:$2 sm:$0xff]
        %s674 = scalar_lea.vmem %s606, 100 [#allocation2]
        %v675 = vld [vmem:[%s674] ss:$2 sm:$0xff]
        %s676 = scalar_lea.vmem %s606, 148 [#allocation2]
        %v677 = vld [vmem:[%s676] ss:$2 sm:$0xff]
        %s678 = scalar_lea.vmem %s606, 196 [#allocation2]
        %v679 = vld [vmem:[%s678] ss:$2 sm:$0xff]
        %s680 = scalar_lea.vmem %s606, 244 [#allocation2]
        %v681 = vld [vmem:[%s680] ss:$2 sm:$0xff]
        %s682 = scalar_lea.vmem %s606, 292 [#allocation2]
        %v683 = vld [vmem:[%s682] ss:$2 sm:$0xff]
        %s684 = scalar_lea.vmem %s606, 340 [#allocation2]
        %v685 = vld [vmem:[%s684] ss:$2 sm:$0xff]
        %s686 = scalar_lea.vmem %s606, 5 [#allocation2]
        %v687 = vld [vmem:[%s686] ss:$2 sm:$0xff]
        %s688 = scalar_lea.vmem %s606, 53 [#allocation2]
        %v689 = vld [vmem:[%s688] ss:$2 sm:$0xff]
        %s690 = scalar_lea.vmem %s606, 101 [#allocation2]
        %v691 = vld [vmem:[%s690] ss:$2 sm:$0xff]
        %s692 = scalar_lea.vmem %s606, 149 [#allocation2]
        %v693 = vld [vmem:[%s692] ss:$2 sm:$0xff]
        %s694 = scalar_lea.vmem %s606, 197 [#allocation2]
        %v695 = vld [vmem:[%s694] ss:$2 sm:$0xff]
        %s696 = scalar_lea.vmem %s606, 245 [#allocation2]
        %v697 = vld [vmem:[%s696] ss:$2 sm:$0xff]
        %s698 = scalar_lea.vmem %s606, 293 [#allocation2]
        %v699 = vld [vmem:[%s698] ss:$2 sm:$0xff]
        %s700 = scalar_lea.vmem %s606, 341 [#allocation2]
        %v701 = vld [vmem:[%s700] ss:$2 sm:$0xff]
        %v702 = vld [vmem:[%s478] ss:$2 sm:$0xff]
        %s703 = scalar_lea.vmem %s478, 48 [#allocation2]
        %v704 = vld [vmem:[%s703] ss:$2 sm:$0xff]
        %s705 = scalar_lea.vmem %s478, 96 [#allocation2]
        %v706 = vld [vmem:[%s705] ss:$2 sm:$0xff]
        %s707 = scalar_lea.vmem %s478, 144 [#allocation2]
        %v708 = vld [vmem:[%s707] ss:$2 sm:$0xff]
        %s709 = scalar_lea.vmem %s478, 192 [#allocation2]
        %v710 = vld [vmem:[%s709] ss:$2 sm:$0xff]
        %s711 = scalar_lea.vmem %s478, 240 [#allocation2]
        %v712 = vld [vmem:[%s711] ss:$2 sm:$0xff]
        %s713 = scalar_lea.vmem %s478, 288 [#allocation2]
        %v714 = vld [vmem:[%s713] ss:$2 sm:$0xff]
        %s715 = scalar_lea.vmem %s478, 336 [#allocation2]
        %v716 = vld [vmem:[%s715] ss:$2 sm:$0xff]
        %s717 = scalar_lea.vmem %s478, 1 [#allocation2]
        %v718 = vld [vmem:[%s717] ss:$2 sm:$0xff]
        %s719 = scalar_lea.vmem %s478, 49 [#allocation2]
        %v720 = vld [vmem:[%s719] ss:$2 sm:$0xff]
        %s721 = scalar_lea.vmem %s478, 97 [#allocation2]
        %v722 = vld [vmem:[%s721] ss:$2 sm:$0xff]
        %s723 = scalar_lea.vmem %s478, 145 [#allocation2]
        %v724 = vld [vmem:[%s723] ss:$2 sm:$0xff]
        %s725 = scalar_lea.vmem %s478, 193 [#allocation2]
        %v726 = vld [vmem:[%s725] ss:$2 sm:$0xff]
        %s727 = scalar_lea.vmem %s478, 241 [#allocation2]
        %v728 = vld [vmem:[%s727] ss:$2 sm:$0xff]
        %s729 = scalar_lea.vmem %s478, 289 [#allocation2]
        %v730 = vld [vmem:[%s729] ss:$2 sm:$0xff]
        %s731 = scalar_lea.vmem %s478, 337 [#allocation2]
        %v732 = vld [vmem:[%s731] ss:$2 sm:$0xff]
        %s733 = scalar_lea.vmem %s478, 2 [#allocation2]
        %v734 = vld [vmem:[%s733] ss:$2 sm:$0xff]
        %s735 = scalar_lea.vmem %s478, 50 [#allocation2]
        %v736 = vld [vmem:[%s735] ss:$2 sm:$0xff]
        %s737 = scalar_lea.vmem %s478, 98 [#allocation2]
        %v738 = vld [vmem:[%s737] ss:$2 sm:$0xff]
        %s739 = scalar_lea.vmem %s478, 146 [#allocation2]
        %v740 = vld [vmem:[%s739] ss:$2 sm:$0xff]
        %s741 = scalar_lea.vmem %s478, 194 [#allocation2]
        %v742 = vld [vmem:[%s741] ss:$2 sm:$0xff]
        %s743 = scalar_lea.vmem %s478, 242 [#allocation2]
        %v744 = vld [vmem:[%s743] ss:$2 sm:$0xff]
        %s745 = scalar_lea.vmem %s478, 290 [#allocation2]
        %v746 = vld [vmem:[%s745] ss:$2 sm:$0xff]
        %s747 = scalar_lea.vmem %s478, 338 [#allocation2]
        %v748 = vld [vmem:[%s747] ss:$2 sm:$0xff]
        %s749 = scalar_lea.vmem %s478, 3 [#allocation2]
        %v750 = vld [vmem:[%s749] ss:$2 sm:$0xff]
        %s751 = scalar_lea.vmem %s478, 51 [#allocation2]
        %v752 = vld [vmem:[%s751] ss:$2 sm:$0xff]
        %s753 = scalar_lea.vmem %s478, 99 [#allocation2]
        %v754 = vld [vmem:[%s753] ss:$2 sm:$0xff]
        %s755 = scalar_lea.vmem %s478, 147 [#allocation2]
        %v756 = vld [vmem:[%s755] ss:$2 sm:$0xff]
        %s757 = scalar_lea.vmem %s478, 195 [#allocation2]
        %v758 = vld [vmem:[%s757] ss:$2 sm:$0xff]
        %s759 = scalar_lea.vmem %s478, 243 [#allocation2]
        %v760 = vld [vmem:[%s759] ss:$2 sm:$0xff]
        %s761 = scalar_lea.vmem %s478, 291 [#allocation2]
        %v762 = vld [vmem:[%s761] ss:$2 sm:$0xff]
        %s763 = scalar_lea.vmem %s478, 339 [#allocation2]
        %v764 = vld [vmem:[%s763] ss:$2 sm:$0xff]
        %s765 = scalar_lea.vmem %s478, 4 [#allocation2]
        %v766 = vld [vmem:[%s765] ss:$2 sm:$0xff]
        %s767 = scalar_lea.vmem %s478, 52 [#allocation2]
        %v768 = vld [vmem:[%s767] ss:$2 sm:$0xff]
        %s769 = scalar_lea.vmem %s478, 100 [#allocation2]
        %v770 = vld [vmem:[%s769] ss:$2 sm:$0xff]
        %s771 = scalar_lea.vmem %s478, 148 [#allocation2]
        %v772 = vld [vmem:[%s771] ss:$2 sm:$0xff]
        %s773 = scalar_lea.vmem %s478, 196 [#allocation2]
        %v774 = vld [vmem:[%s773] ss:$2 sm:$0xff]
        %s775 = scalar_lea.vmem %s478, 244 [#allocation2]
        %v776 = vld [vmem:[%s775] ss:$2 sm:$0xff]
        %s777 = scalar_lea.vmem %s478, 292 [#allocation2]
        %v778 = vld [vmem:[%s777] ss:$2 sm:$0xff]
        %s779 = scalar_lea.vmem %s478, 340 [#allocation2]
        %v780 = vld [vmem:[%s779] ss:$2 sm:$0xff]
        %s781 = scalar_lea.vmem %s478, 5 [#allocation2]
        %v782 = vld [vmem:[%s781] ss:$2 sm:$0xff]
        %s783 = scalar_lea.vmem %s478, 53 [#allocation2]
        %v784 = vld [vmem:[%s783] ss:$2 sm:$0xff]
        %s785 = scalar_lea.vmem %s478, 101 [#allocation2]
        %v786 = vld [vmem:[%s785] ss:$2 sm:$0xff]
        %s787 = scalar_lea.vmem %s478, 149 [#allocation2]
        %v788 = vld [vmem:[%s787] ss:$2 sm:$0xff]
        %s789 = scalar_lea.vmem %s478, 197 [#allocation2]
        %v790 = vld [vmem:[%s789] ss:$2 sm:$0xff]
        %s791 = scalar_lea.vmem %s478, 245 [#allocation2]
        %v792 = vld [vmem:[%s791] ss:$2 sm:$0xff]
        %s793 = scalar_lea.vmem %s478, 293 [#allocation2]
        %v794 = vld [vmem:[%s793] ss:$2 sm:$0xff]
        %s795 = scalar_lea.vmem %s478, 341 [#allocation2]
        %v796 = vld [vmem:[%s795] ss:$2 sm:$0xff]
        %s797 = scalar_lea.vmem [#allocation2], 72
        %v798 = vld [vmem:[%s797] ss:$2 sm:$0xff]
        %s799 = scalar_lea.vmem %s797, 48 [#allocation2]
        %v800 = vld [vmem:[%s799] ss:$2 sm:$0xff]
        %s801 = scalar_lea.vmem %s797, 96 [#allocation2]
        %v802 = vld [vmem:[%s801] ss:$2 sm:$0xff]
        %s803 = scalar_lea.vmem %s797, 144 [#allocation2]
        %v804 = vld [vmem:[%s803] ss:$2 sm:$0xff]
        %s805 = scalar_lea.vmem %s797, 192 [#allocation2]
        %v806 = vld [vmem:[%s805] ss:$2 sm:$0xff]
        %s807 = scalar_lea.vmem %s797, 240 [#allocation2]
        %v808 = vld [vmem:[%s807] ss:$2 sm:$0xff]
        %s809 = scalar_lea.vmem %s797, 288 [#allocation2]
        %v810 = vld [vmem:[%s809] ss:$2 sm:$0xff]
        %s811 = scalar_lea.vmem %s797, 336 [#allocation2]
        %v812 = vld [vmem:[%s811] ss:$2 sm:$0xff]
        %s813 = scalar_lea.vmem %s797, 1 [#allocation2]
        %v814 = vld [vmem:[%s813] ss:$2 sm:$0xff]
        %s815 = scalar_lea.vmem %s797, 49 [#allocation2]
        %v816 = vld [vmem:[%s815] ss:$2 sm:$0xff]
        %s817 = scalar_lea.vmem %s797, 97 [#allocation2]
        %v818 = vld [vmem:[%s817] ss:$2 sm:$0xff]
        %s819 = scalar_lea.vmem %s797, 145 [#allocation2]
        %v820 = vld [vmem:[%s819] ss:$2 sm:$0xff]
        %s821 = scalar_lea.vmem %s797, 193 [#allocation2]
        %v822 = vld [vmem:[%s821] ss:$2 sm:$0xff]
        %s823 = scalar_lea.vmem %s797, 241 [#allocation2]
        %v824 = vld [vmem:[%s823] ss:$2 sm:$0xff]
        %s825 = scalar_lea.vmem %s797, 289 [#allocation2]
        %v826 = vld [vmem:[%s825] ss:$2 sm:$0xff]
        %s827 = scalar_lea.vmem %s797, 337 [#allocation2]
        %v828 = vld [vmem:[%s827] ss:$2 sm:$0xff]
        %s829 = scalar_lea.vmem %s797, 2 [#allocation2]
        %v830 = vld [vmem:[%s829] ss:$2 sm:$0xff]
        %s831 = scalar_lea.vmem %s797, 50 [#allocation2]
        %v832 = vld [vmem:[%s831] ss:$2 sm:$0xff]
        %s833 = scalar_lea.vmem %s797, 98 [#allocation2]
        %v834 = vld [vmem:[%s833] ss:$2 sm:$0xff]
        %s835 = scalar_lea.vmem %s797, 146 [#allocation2]
        %v836 = vld [vmem:[%s835] ss:$2 sm:$0xff]
        %s837 = scalar_lea.vmem %s797, 194 [#allocation2]
        %v838 = vld [vmem:[%s837] ss:$2 sm:$0xff]
        %s839 = scalar_lea.vmem %s797, 242 [#allocation2]
        %v840 = vld [vmem:[%s839] ss:$2 sm:$0xff]
        %s841 = scalar_lea.vmem %s797, 290 [#allocation2]
        %v842 = vld [vmem:[%s841] ss:$2 sm:$0xff]
        %s843 = scalar_lea.vmem %s797, 338 [#allocation2]
        %v844 = vld [vmem:[%s843] ss:$2 sm:$0xff]
        %s845 = scalar_lea.vmem %s797, 3 [#allocation2]
        %v846 = vld [vmem:[%s845] ss:$2 sm:$0xff]
        %s847 = scalar_lea.vmem %s797, 51 [#allocation2]
        %v848 = vld [vmem:[%s847] ss:$2 sm:$0xff]
        %s849 = scalar_lea.vmem %s797, 99 [#allocation2]
        %v850 = vld [vmem:[%s849] ss:$2 sm:$0xff]
        %s851 = scalar_lea.vmem %s797, 147 [#allocation2]
        %v852 = vld [vmem:[%s851] ss:$2 sm:$0xff]
        %s853 = scalar_lea.vmem %s797, 195 [#allocation2]
        %v854 = vld [vmem:[%s853] ss:$2 sm:$0xff]
        %s855 = scalar_lea.vmem %s797, 243 [#allocation2]
        %v856 = vld [vmem:[%s855] ss:$2 sm:$0xff]
        %s857 = scalar_lea.vmem %s797, 291 [#allocation2]
        %v858 = vld [vmem:[%s857] ss:$2 sm:$0xff]
        %s859 = scalar_lea.vmem %s797, 339 [#allocation2]
        %v860 = vld [vmem:[%s859] ss:$2 sm:$0xff]
        %s861 = scalar_lea.vmem %s797, 4 [#allocation2]
        %v862 = vld [vmem:[%s861] ss:$2 sm:$0xff]
        %s863 = scalar_lea.vmem %s797, 52 [#allocation2]
        %v864 = vld [vmem:[%s863] ss:$2 sm:$0xff]
        %s865 = scalar_lea.vmem %s797, 100 [#allocation2]
        %v866 = vld [vmem:[%s865] ss:$2 sm:$0xff]
        %s867 = scalar_lea.vmem %s797, 148 [#allocation2]
        %v868 = vld [vmem:[%s867] ss:$2 sm:$0xff]
        %s869 = scalar_lea.vmem %s797, 196 [#allocation2]
        %v870 = vld [vmem:[%s869] ss:$2 sm:$0xff]
        %s871 = scalar_lea.vmem %s797, 244 [#allocation2]
        %v872 = vld [vmem:[%s871] ss:$2 sm:$0xff]
        %s873 = scalar_lea.vmem %s797, 292 [#allocation2]
        %v874 = vld [vmem:[%s873] ss:$2 sm:$0xff]
        %s875 = scalar_lea.vmem %s797, 340 [#allocation2]
        %v876 = vld [vmem:[%s875] ss:$2 sm:$0xff]
        %s877 = scalar_lea.vmem %s797, 5 [#allocation2]
        %v878 = vld [vmem:[%s877] ss:$2 sm:$0xff]
        %s879 = scalar_lea.vmem %s797, 53 [#allocation2]
        %v880 = vld [vmem:[%s879] ss:$2 sm:$0xff]
        %s881 = scalar_lea.vmem %s797, 101 [#allocation2]
        %v882 = vld [vmem:[%s881] ss:$2 sm:$0xff]
        %s883 = scalar_lea.vmem %s797, 149 [#allocation2]
        %v884 = vld [vmem:[%s883] ss:$2 sm:$0xff]
        %s885 = scalar_lea.vmem %s797, 197 [#allocation2]
        %v886 = vld [vmem:[%s885] ss:$2 sm:$0xff]
        %s887 = scalar_lea.vmem %s797, 245 [#allocation2]
        %v888 = vld [vmem:[%s887] ss:$2 sm:$0xff]
        %s889 = scalar_lea.vmem %s797, 293 [#allocation2]
        %v890 = vld [vmem:[%s889] ss:$2 sm:$0xff]
        %s891 = scalar_lea.vmem %s797, 341 [#allocation2]
        %v892 = vld [vmem:[%s891] ss:$2 sm:$0xff]
        %s893 = scalar_lea.vmem [#allocation2], 96
        %v894 = vld [vmem:[%s893] ss:$2 sm:$0xff]
        %s895 = scalar_lea.vmem %s893, 48 [#allocation2]
        %v896 = vld [vmem:[%s895] ss:$2 sm:$0xff]
        %s897 = scalar_lea.vmem %s893, 96 [#allocation2]
        %v898 = vld [vmem:[%s897] ss:$2 sm:$0xff]
        %s899 = scalar_lea.vmem %s893, 144 [#allocation2]
        %v900 = vld [vmem:[%s899] ss:$2 sm:$0xff]
        %s901 = scalar_lea.vmem %s893, 192 [#allocation2]
        %v902 = vld [vmem:[%s901] ss:$2 sm:$0xff]
        %s903 = scalar_lea.vmem %s893, 240 [#allocation2]
        %v904 = vld [vmem:[%s903] ss:$2 sm:$0xff]
        %s905 = scalar_lea.vmem %s893, 288 [#allocation2]
        %v906 = vld [vmem:[%s905] ss:$2 sm:$0xff]
        %s907 = scalar_lea.vmem %s893, 336 [#allocation2]
        %v908 = vld [vmem:[%s907] ss:$2 sm:$0xff]
        %s909 = scalar_lea.vmem %s893, 1 [#allocation2]
        %v910 = vld [vmem:[%s909] ss:$2 sm:$0xff]
        %s911 = scalar_lea.vmem %s893, 49 [#allocation2]
        %v912 = vld [vmem:[%s911] ss:$2 sm:$0xff]
        %s913 = scalar_lea.vmem %s893, 97 [#allocation2]
        %v914 = vld [vmem:[%s913] ss:$2 sm:$0xff]
        %s915 = scalar_lea.vmem %s893, 145 [#allocation2]
        %v916 = vld [vmem:[%s915] ss:$2 sm:$0xff]
        %s917 = scalar_lea.vmem %s893, 193 [#allocation2]
        %v918 = vld [vmem:[%s917] ss:$2 sm:$0xff]
        %s919 = scalar_lea.vmem %s893, 241 [#allocation2]
        %v920 = vld [vmem:[%s919] ss:$2 sm:$0xff]
        %s921 = scalar_lea.vmem %s893, 289 [#allocation2]
        %v922 = vld [vmem:[%s921] ss:$2 sm:$0xff]
        %s923 = scalar_lea.vmem %s893, 337 [#allocation2]
        %v924 = vld [vmem:[%s923] ss:$2 sm:$0xff]
        %s925 = scalar_lea.vmem %s893, 2 [#allocation2]
        %v926 = vld [vmem:[%s925] ss:$2 sm:$0xff]
        %s927 = scalar_lea.vmem %s893, 50 [#allocation2]
        %v928 = vld [vmem:[%s927] ss:$2 sm:$0xff]
        %s929 = scalar_lea.vmem %s893, 98 [#allocation2]
        %v930 = vld [vmem:[%s929] ss:$2 sm:$0xff]
        %s931 = scalar_lea.vmem %s893, 146 [#allocation2]
        %v932 = vld [vmem:[%s931] ss:$2 sm:$0xff]
        %s933 = scalar_lea.vmem %s893, 194 [#allocation2]
        %v934 = vld [vmem:[%s933] ss:$2 sm:$0xff]
        %s935 = scalar_lea.vmem %s893, 242 [#allocation2]
        %v936 = vld [vmem:[%s935] ss:$2 sm:$0xff]
        %s937 = scalar_lea.vmem %s893, 290 [#allocation2]
        %v938 = vld [vmem:[%s937] ss:$2 sm:$0xff]
        %s939 = scalar_lea.vmem %s893, 338 [#allocation2]
        %v940 = vld [vmem:[%s939] ss:$2 sm:$0xff]
        %s941 = scalar_lea.vmem %s893, 3 [#allocation2]
        %v942 = vld [vmem:[%s941] ss:$2 sm:$0xff]
        %s943 = scalar_lea.vmem %s893, 51 [#allocation2]
        %v944 = vld [vmem:[%s943] ss:$2 sm:$0xff]
        %s945 = scalar_lea.vmem %s893, 99 [#allocation2]
        %v946 = vld [vmem:[%s945] ss:$2 sm:$0xff]
        %s947 = scalar_lea.vmem %s893, 147 [#allocation2]
        %v948 = vld [vmem:[%s947] ss:$2 sm:$0xff]
        %s949 = scalar_lea.vmem %s893, 195 [#allocation2]
        %v950 = vld [vmem:[%s949] ss:$2 sm:$0xff]
        %s951 = scalar_lea.vmem %s893, 243 [#allocation2]
        %v952 = vld [vmem:[%s951] ss:$2 sm:$0xff]
        %s953 = scalar_lea.vmem %s893, 291 [#allocation2]
        %v954 = vld [vmem:[%s953] ss:$2 sm:$0xff]
        %s955 = scalar_lea.vmem %s893, 339 [#allocation2]
        %v956 = vld [vmem:[%s955] ss:$2 sm:$0xff]
        %s957 = scalar_lea.vmem %s893, 4 [#allocation2]
        %v958 = vld [vmem:[%s957] ss:$2 sm:$0xff]
        %s959 = scalar_lea.vmem %s893, 52 [#allocation2]
        %v960 = vld [vmem:[%s959] ss:$2 sm:$0xff]
        %s961 = scalar_lea.vmem %s893, 100 [#allocation2]
        %v962 = vld [vmem:[%s961] ss:$2 sm:$0xff]
        %s963 = scalar_lea.vmem %s893, 148 [#allocation2]
        %v964 = vld [vmem:[%s963] ss:$2 sm:$0xff]
        %s965 = scalar_lea.vmem %s893, 196 [#allocation2]
        %v966 = vld [vmem:[%s965] ss:$2 sm:$0xff]
        %s967 = scalar_lea.vmem %s893, 244 [#allocation2]
        %v968 = vld [vmem:[%s967] ss:$2 sm:$0xff]
        %s969 = scalar_lea.vmem %s893, 292 [#allocation2]
        %v970 = vld [vmem:[%s969] ss:$2 sm:$0xff]
        %s971 = scalar_lea.vmem %s893, 340 [#allocation2]
        %v972 = vld [vmem:[%s971] ss:$2 sm:$0xff]
        %s973 = scalar_lea.vmem %s893, 5 [#allocation2]
        %v974 = vld [vmem:[%s973] ss:$2 sm:$0xff]
        %s975 = scalar_lea.vmem %s893, 53 [#allocation2]
        %v976 = vld [vmem:[%s975] ss:$2 sm:$0xff]
        %s977 = scalar_lea.vmem %s893, 101 [#allocation2]
        %v978 = vld [vmem:[%s977] ss:$2 sm:$0xff]
        %s979 = scalar_lea.vmem %s893, 149 [#allocation2]
        %v980 = vld [vmem:[%s979] ss:$2 sm:$0xff]
        %s981 = scalar_lea.vmem %s893, 197 [#allocation2]
        %v982 = vld [vmem:[%s981] ss:$2 sm:$0xff]
        %s983 = scalar_lea.vmem %s893, 245 [#allocation2]
        %v984 = vld [vmem:[%s983] ss:$2 sm:$0xff]
        %s985 = scalar_lea.vmem %s893, 293 [#allocation2]
        %v986 = vld [vmem:[%s985] ss:$2 sm:$0xff]
        %s987 = scalar_lea.vmem %s893, 341 [#allocation2]
        %v988 = vld [vmem:[%s987] ss:$2 sm:$0xff]
        %s989 = scalar_lea.vmem [#allocation2], 120
        %v990 = vld [vmem:[%s989] ss:$2 sm:$0xff]
        %s991 = scalar_lea.vmem %s989, 48 [#allocation2]
        %v992 = vld [vmem:[%s991] ss:$2 sm:$0xff]
        %s993 = scalar_lea.vmem %s989, 96 [#allocation2]
        %v994 = vld [vmem:[%s993] ss:$2 sm:$0xff]
        %s995 = scalar_lea.vmem %s989, 144 [#allocation2]
        %v996 = vld [vmem:[%s995] ss:$2 sm:$0xff]
        %s997 = scalar_lea.vmem %s989, 192 [#allocation2]
        %v998 = vld [vmem:[%s997] ss:$2 sm:$0xff]
        %s999 = scalar_lea.vmem %s989, 240 [#allocation2]
        %v1000 = vld [vmem:[%s999] ss:$2 sm:$0xff]
        %s1001 = scalar_lea.vmem %s989, 288 [#allocation2]
        %v1002 = vld [vmem:[%s1001] ss:$2 sm:$0xff]
        %s1003 = scalar_lea.vmem %s989, 336 [#allocation2]
        %v1004 = vld [vmem:[%s1003] ss:$2 sm:$0xff]
        %s1005 = scalar_lea.vmem %s989, 1 [#allocation2]
        %v1006 = vld [vmem:[%s1005] ss:$2 sm:$0xff]
        %s1007 = scalar_lea.vmem %s989, 49 [#allocation2]
        %v1008 = vld [vmem:[%s1007] ss:$2 sm:$0xff]
        %s1009 = scalar_lea.vmem %s989, 97 [#allocation2]
        %v1010 = vld [vmem:[%s1009] ss:$2 sm:$0xff]
        %s1011 = scalar_lea.vmem %s989, 145 [#allocation2]
        %v1012 = vld [vmem:[%s1011] ss:$2 sm:$0xff]
        %s1013 = scalar_lea.vmem %s989, 193 [#allocation2]
        %v1014 = vld [vmem:[%s1013] ss:$2 sm:$0xff]
        %s1015 = scalar_lea.vmem %s989, 241 [#allocation2]
        %v1016 = vld [vmem:[%s1015] ss:$2 sm:$0xff]
        %s1017 = scalar_lea.vmem %s989, 289 [#allocation2]
        %v1018 = vld [vmem:[%s1017] ss:$2 sm:$0xff]
        %s1019 = scalar_lea.vmem %s989, 337 [#allocation2]
        %v1020 = vld [vmem:[%s1019] ss:$2 sm:$0xff]
        %s1021 = scalar_lea.vmem %s989, 2 [#allocation2]
        %v1022 = vld [vmem:[%s1021] ss:$2 sm:$0xff]
        %s1023 = scalar_lea.vmem %s989, 50 [#allocation2]
        %v1024 = vld [vmem:[%s1023] ss:$2 sm:$0xff]
        %s1025 = scalar_lea.vmem %s989, 98 [#allocation2]
        %v1026 = vld [vmem:[%s1025] ss:$2 sm:$0xff]
        %s1027 = scalar_lea.vmem %s989, 146 [#allocation2]
        %v1028 = vld [vmem:[%s1027] ss:$2 sm:$0xff]
        %s1029 = scalar_lea.vmem %s989, 194 [#allocation2]
        %v1030 = vld [vmem:[%s1029] ss:$2 sm:$0xff]
        %s1031 = scalar_lea.vmem %s989, 242 [#allocation2]
        %v1032 = vld [vmem:[%s1031] ss:$2 sm:$0xff]
        %s1033 = scalar_lea.vmem %s989, 290 [#allocation2]
        %v1034 = vld [vmem:[%s1033] ss:$2 sm:$0xff]
        %s1035 = scalar_lea.vmem %s989, 338 [#allocation2]
        %v1036 = vld [vmem:[%s1035] ss:$2 sm:$0xff]
        %s1037 = scalar_lea.vmem %s989, 3 [#allocation2]
        %v1038 = vld [vmem:[%s1037] ss:$2 sm:$0xff]
        %s1039 = scalar_lea.vmem %s989, 51 [#allocation2]
        %v1040 = vld [vmem:[%s1039] ss:$2 sm:$0xff]
        %s1041 = scalar_lea.vmem %s989, 99 [#allocation2]
        %v1042 = vld [vmem:[%s1041] ss:$2 sm:$0xff]
        %s1043 = scalar_lea.vmem %s989, 147 [#allocation2]
        %v1044 = vld [vmem:[%s1043] ss:$2 sm:$0xff]
        %s1045 = scalar_lea.vmem %s989, 195 [#allocation2]
        %v1046 = vld [vmem:[%s1045] ss:$2 sm:$0xff]
        %s1047 = scalar_lea.vmem %s989, 243 [#allocation2]
        %v1048 = vld [vmem:[%s1047] ss:$2 sm:$0xff]
        %s1049 = scalar_lea.vmem %s989, 291 [#allocation2]
        %v1050 = vld [vmem:[%s1049] ss:$2 sm:$0xff]
        %s1051 = scalar_lea.vmem %s989, 339 [#allocation2]
        %v1052 = vld [vmem:[%s1051] ss:$2 sm:$0xff]
        %s1053 = scalar_lea.vmem %s989, 4 [#allocation2]
        %v1054 = vld [vmem:[%s1053] ss:$2 sm:$0xff]
        %s1055 = scalar_lea.vmem %s989, 52 [#allocation2]
        %v1056 = vld [vmem:[%s1055] ss:$2 sm:$0xff]
        %s1057 = scalar_lea.vmem %s989, 100 [#allocation2]
        %v1058 = vld [vmem:[%s1057] ss:$2 sm:$0xff]
        %s1059 = scalar_lea.vmem %s989, 148 [#allocation2]
        %v1060 = vld [vmem:[%s1059] ss:$2 sm:$0xff]
        %s1061 = scalar_lea.vmem %s989, 196 [#allocation2]
        %v1062 = vld [vmem:[%s1061] ss:$2 sm:$0xff]
        %s1063 = scalar_lea.vmem %s989, 244 [#allocation2]
        %v1064 = vld [vmem:[%s1063] ss:$2 sm:$0xff]
        %s1065 = scalar_lea.vmem %s989, 292 [#allocation2]
        %v1066 = vld [vmem:[%s1065] ss:$2 sm:$0xff]
        %s1067 = scalar_lea.vmem %s989, 340 [#allocation2]
        %v1068 = vld [vmem:[%s1067] ss:$2 sm:$0xff]
        %s1069 = scalar_lea.vmem %s989, 5 [#allocation2]
        %v1070 = vld [vmem:[%s1069] ss:$2 sm:$0xff]
        %s1071 = scalar_lea.vmem %s989, 53 [#allocation2]
        %v1072 = vld [vmem:[%s1071] ss:$2 sm:$0xff]
        %s1073 = scalar_lea.vmem %s989, 101 [#allocation2]
        %v1074 = vld [vmem:[%s1073] ss:$2 sm:$0xff]
        %s1075 = scalar_lea.vmem %s989, 149 [#allocation2]
        %v1076 = vld [vmem:[%s1075] ss:$2 sm:$0xff]
        %s1077 = scalar_lea.vmem %s989, 197 [#allocation2]
        %v1078 = vld [vmem:[%s1077] ss:$2 sm:$0xff]
        %s1079 = scalar_lea.vmem %s989, 245 [#allocation2]
        %v1080 = vld [vmem:[%s1079] ss:$2 sm:$0xff]
        %s1081 = scalar_lea.vmem %s989, 293 [#allocation2]
        %v1082 = vld [vmem:[%s1081] ss:$2 sm:$0xff]
        %s1083 = scalar_lea.vmem %s989, 341 [#allocation2]
        %v1084 = vld [vmem:[%s1083] ss:$2 sm:$0xff]
        %1093 = vrot.lane.b32.xlu0 %v527, 4
        %v1094 = vpop.permute.xlu0 %1093
        %1095 = vrot.lane.b32.xlu0 %v529, 4
        %v1096 = vpop.permute.xlu0 %1095
        %1097 = vrot.lane.b32.xlu0 %v531, 4
        %v1098 = vpop.permute.xlu0 %1097
        %1099 = vrot.lane.b32.xlu0 %v533, 4
        %v1100 = vpop.permute.xlu0 %1099
        %1101 = vrot.lane.b32.xlu0 %v535, 4
        %v1102 = vpop.permute.xlu0 %1101
        %1103 = vrot.lane.b32.xlu0 %v537, 4
        %v1104 = vpop.permute.xlu0 %1103
        %1105 = vrot.lane.b32.xlu0 %v539, 4
        %v1106 = vpop.permute.xlu0 %1105
        %1107 = vrot.lane.b32.xlu0 %v541, 4
        %v1108 = vpop.permute.xlu0 %1107
        %1125 = vrot.lane.b32.xlu0 %v543, 8
        %v1126 = vpop.permute.xlu0 %1125
        %1127 = vrot.lane.b32.xlu0 %v545, 8
        %v1128 = vpop.permute.xlu0 %1127
        %1129 = vrot.lane.b32.xlu0 %v547, 8
        %v1130 = vpop.permute.xlu0 %1129
        %1131 = vrot.lane.b32.xlu0 %v549, 8
        %v1132 = vpop.permute.xlu0 %1131
        %1133 = vrot.lane.b32.xlu0 %v551, 8
        %v1134 = vpop.permute.xlu0 %1133
        %1135 = vrot.lane.b32.xlu0 %v553, 8
        %v1136 = vpop.permute.xlu0 %1135
        %1137 = vrot.lane.b32.xlu0 %v555, 8
        %v1138 = vpop.permute.xlu0 %1137
        %1139 = vrot.lane.b32.xlu0 %v557, 8
        %v1140 = vpop.permute.xlu0 %1139
        %1157 = vrot.lane.b32.xlu0 %v559, 12
        %v1158 = vpop.permute.xlu0 %1157
        %1159 = vrot.lane.b32.xlu0 %v561, 12
        %v1160 = vpop.permute.xlu0 %1159
        %1161 = vrot.lane.b32.xlu0 %v563, 12
        %v1162 = vpop.permute.xlu0 %1161
        %1163 = vrot.lane.b32.xlu0 %v565, 12
        %v1164 = vpop.permute.xlu0 %1163
        %1165 = vrot.lane.b32.xlu0 %v567, 12
        %v1166 = vpop.permute.xlu0 %1165
        %1167 = vrot.lane.b32.xlu0 %v569, 12
        %v1168 = vpop.permute.xlu0 %1167
        %1169 = vrot.lane.b32.xlu0 %v571, 12
        %v1170 = vpop.permute.xlu0 %1169
        %1171 = vrot.lane.b32.xlu0 %v573, 12
        %v1172 = vpop.permute.xlu0 %1171
        %1189 = vrot.lane.b32.xlu0 %v575, 16
        %v1190 = vpop.permute.xlu0 %1189
        %1191 = vrot.lane.b32.xlu0 %v577, 16
        %v1192 = vpop.permute.xlu0 %1191
        %1193 = vrot.lane.b32.xlu0 %v579, 16
        %v1194 = vpop.permute.xlu0 %1193
        %1195 = vrot.lane.b32.xlu0 %v581, 16
        %v1196 = vpop.permute.xlu0 %1195
        %1197 = vrot.lane.b32.xlu0 %v583, 16
        %v1198 = vpop.permute.xlu0 %1197
        %1199 = vrot.lane.b32.xlu0 %v585, 16
        %v1200 = vpop.permute.xlu0 %1199
        %1201 = vrot.lane.b32.xlu0 %v587, 16
        %v1202 = vpop.permute.xlu0 %1201
        %1203 = vrot.lane.b32.xlu0 %v589, 16
        %v1204 = vpop.permute.xlu0 %1203
        %1221 = vrot.lane.b32.xlu0 %v591, 20
        %v1222 = vpop.permute.xlu0 %1221
        %1223 = vrot.lane.b32.xlu0 %v593, 20
        %v1224 = vpop.permute.xlu0 %1223
        %1225 = vrot.lane.b32.xlu0 %v595, 20
        %v1226 = vpop.permute.xlu0 %1225
        %1227 = vrot.lane.b32.xlu0 %v597, 20
        %v1228 = vpop.permute.xlu0 %1227
        %1229 = vrot.lane.b32.xlu0 %v599, 20
        %v1230 = vpop.permute.xlu0 %1229
        %1231 = vrot.lane.b32.xlu0 %v601, 20
        %v1232 = vpop.permute.xlu0 %1231
        %1233 = vrot.lane.b32.xlu0 %v603, 20
        %v1234 = vpop.permute.xlu0 %1233
        %1235 = vrot.lane.b32.xlu0 %v605, 20
        %v1236 = vpop.permute.xlu0 %1235
        %1253 = vrot.lane.b32.xlu0 %v607, 24
        %v1254 = vpop.permute.xlu0 %1253
        %1255 = vrot.lane.b32.xlu0 %v609, 24
        %v1256 = vpop.permute.xlu0 %1255
        %1257 = vrot.lane.b32.xlu0 %v611, 24
        %v1258 = vpop.permute.xlu0 %1257
        %1259 = vrot.lane.b32.xlu0 %v613, 24
        %v1260 = vpop.permute.xlu0 %1259
        %1261 = vrot.lane.b32.xlu0 %v615, 24
        %v1262 = vpop.permute.xlu0 %1261
        %1263 = vrot.lane.b32.xlu0 %v617, 24
        %v1264 = vpop.permute.xlu0 %1263
        %1265 = vrot.lane.b32.xlu0 %v619, 24
        %v1266 = vpop.permute.xlu0 %1265
        %1267 = vrot.lane.b32.xlu0 %v621, 24
        %v1268 = vpop.permute.xlu0 %1267
        %1285 = vrot.lane.b32.xlu0 %v623, 28
        %v1286 = vpop.permute.xlu0 %1285
        %1287 = vrot.lane.b32.xlu0 %v625, 28
        %v1288 = vpop.permute.xlu0 %1287
        %1289 = vrot.lane.b32.xlu0 %v627, 28
        %v1290 = vpop.permute.xlu0 %1289
        %1291 = vrot.lane.b32.xlu0 %v629, 28
        %v1292 = vpop.permute.xlu0 %1291
        %1293 = vrot.lane.b32.xlu0 %v631, 28
        %v1294 = vpop.permute.xlu0 %1293
        %1295 = vrot.lane.b32.xlu0 %v633, 28
        %v1296 = vpop.permute.xlu0 %1295
        %1297 = vrot.lane.b32.xlu0 %v635, 28
        %v1298 = vpop.permute.xlu0 %1297
        %1299 = vrot.lane.b32.xlu0 %v637, 28
        %v1300 = vpop.permute.xlu0 %1299
        %1317 = vrot.lane.b32.xlu0 %v639, 32
        %v1318 = vpop.permute.xlu0 %1317
        %1319 = vrot.lane.b32.xlu0 %v641, 32
        %v1320 = vpop.permute.xlu0 %1319
        %1321 = vrot.lane.b32.xlu0 %v643, 32
        %v1322 = vpop.permute.xlu0 %1321
        %1323 = vrot.lane.b32.xlu0 %v645, 32
        %v1324 = vpop.permute.xlu0 %1323
        %1325 = vrot.lane.b32.xlu0 %v647, 32
        %v1326 = vpop.permute.xlu0 %1325
        %1327 = vrot.lane.b32.xlu0 %v649, 32
        %v1328 = vpop.permute.xlu0 %1327
        %1329 = vrot.lane.b32.xlu0 %v651, 32
        %v1330 = vpop.permute.xlu0 %1329
        %1331 = vrot.lane.b32.xlu0 %v653, 32
        %v1332 = vpop.permute.xlu0 %1331
        %1349 = vrot.lane.b32.xlu0 %v655, 36
        %v1350 = vpop.permute.xlu0 %1349
        %1351 = vrot.lane.b32.xlu0 %v657, 36
        %v1352 = vpop.permute.xlu0 %1351
        %1353 = vrot.lane.b32.xlu0 %v659, 36
        %v1354 = vpop.permute.xlu0 %1353
        %1355 = vrot.lane.b32.xlu0 %v661, 36
        %v1356 = vpop.permute.xlu0 %1355
        %1357 = vrot.lane.b32.xlu0 %v663, 36
        %v1358 = vpop.permute.xlu0 %1357
        %1359 = vrot.lane.b32.xlu0 %v665, 36
        %v1360 = vpop.permute.xlu0 %1359
        %1361 = vrot.lane.b32.xlu0 %v667, 36
        %v1362 = vpop.permute.xlu0 %1361
        %1363 = vrot.lane.b32.xlu0 %v669, 36
        %v1364 = vpop.permute.xlu0 %1363
        %1381 = vrot.lane.b32.xlu0 %v671, 40
        %v1382 = vpop.permute.xlu0 %1381
        %1383 = vrot.lane.b32.xlu0 %v673, 40
        %v1384 = vpop.permute.xlu0 %1383
        %1385 = vrot.lane.b32.xlu0 %v675, 40
        %v1386 = vpop.permute.xlu0 %1385
        %1387 = vrot.lane.b32.xlu0 %v677, 40
        %v1388 = vpop.permute.xlu0 %1387
        %1389 = vrot.lane.b32.xlu0 %v679, 40
        %v1390 = vpop.permute.xlu0 %1389
        %1391 = vrot.lane.b32.xlu0 %v681, 40
        %v1392 = vpop.permute.xlu0 %1391
        %1393 = vrot.lane.b32.xlu0 %v683, 40
        %v1394 = vpop.permute.xlu0 %1393
        %1395 = vrot.lane.b32.xlu0 %v685, 40
        %v1396 = vpop.permute.xlu0 %1395
        %1413 = vrot.lane.b32.xlu0 %v687, 44
        %v1414 = vpop.permute.xlu0 %1413
        %1415 = vrot.lane.b32.xlu0 %v689, 44
        %v1416 = vpop.permute.xlu0 %1415
        %1417 = vrot.lane.b32.xlu0 %v691, 44
        %v1418 = vpop.permute.xlu0 %1417
        %1419 = vrot.lane.b32.xlu0 %v693, 44
        %v1420 = vpop.permute.xlu0 %1419
        %1421 = vrot.lane.b32.xlu0 %v695, 44
        %v1422 = vpop.permute.xlu0 %1421
        %1423 = vrot.lane.b32.xlu0 %v697, 44
        %v1424 = vpop.permute.xlu0 %1423
        %1425 = vrot.lane.b32.xlu0 %v699, 44
        %v1426 = vpop.permute.xlu0 %1425
        %1427 = vrot.lane.b32.xlu0 %v701, 44
        %v1428 = vpop.permute.xlu0 %1427
        %1445 = vrot.lane.b32.xlu0 %v702, 48
        %v1446 = vpop.permute.xlu0 %1445
        %1447 = vrot.lane.b32.xlu0 %v704, 48
        %v1448 = vpop.permute.xlu0 %1447
        %1449 = vrot.lane.b32.xlu0 %v706, 48
        %v1450 = vpop.permute.xlu0 %1449
        %1451 = vrot.lane.b32.xlu0 %v708, 48
        %v1452 = vpop.permute.xlu0 %1451
        %1453 = vrot.lane.b32.xlu0 %v710, 48
        %v1454 = vpop.permute.xlu0 %1453
        %1455 = vrot.lane.b32.xlu0 %v712, 48
        %v1456 = vpop.permute.xlu0 %1455
        %1457 = vrot.lane.b32.xlu0 %v714, 48
        %v1458 = vpop.permute.xlu0 %1457
        %1459 = vrot.lane.b32.xlu0 %v716, 48
        %v1460 = vpop.permute.xlu0 %1459
        %1477 = vrot.lane.b32.xlu0 %v718, 52
        %v1478 = vpop.permute.xlu0 %1477
        %1479 = vrot.lane.b32.xlu0 %v720, 52
        %v1480 = vpop.permute.xlu0 %1479
        %1481 = vrot.lane.b32.xlu0 %v722, 52
        %v1482 = vpop.permute.xlu0 %1481
        %1483 = vrot.lane.b32.xlu0 %v724, 52
        %v1484 = vpop.permute.xlu0 %1483
        %1485 = vrot.lane.b32.xlu0 %v726, 52
        %v1486 = vpop.permute.xlu0 %1485
        %1487 = vrot.lane.b32.xlu0 %v728, 52
        %v1488 = vpop.permute.xlu0 %1487
        %1489 = vrot.lane.b32.xlu0 %v730, 52
        %v1490 = vpop.permute.xlu0 %1489
        %1491 = vrot.lane.b32.xlu0 %v732, 52
        %v1492 = vpop.permute.xlu0 %1491
        %1509 = vrot.lane.b32.xlu0 %v734, 56
        %v1510 = vpop.permute.xlu0 %1509
        %1511 = vrot.lane.b32.xlu0 %v736, 56
        %v1512 = vpop.permute.xlu0 %1511
        %1513 = vrot.lane.b32.xlu0 %v738, 56
        %v1514 = vpop.permute.xlu0 %1513
        %1515 = vrot.lane.b32.xlu0 %v740, 56
        %v1516 = vpop.permute.xlu0 %1515
        %1517 = vrot.lane.b32.xlu0 %v742, 56
        %v1518 = vpop.permute.xlu0 %1517
        %1519 = vrot.lane.b32.xlu0 %v744, 56
        %v1520 = vpop.permute.xlu0 %1519
        %1521 = vrot.lane.b32.xlu0 %v746, 56
        %v1522 = vpop.permute.xlu0 %1521
        %1523 = vrot.lane.b32.xlu0 %v748, 56
        %v1524 = vpop.permute.xlu0 %1523
        %1541 = vrot.lane.b32.xlu0 %v750, 60
        %v1542 = vpop.permute.xlu0 %1541
        %1543 = vrot.lane.b32.xlu0 %v752, 60
        %v1544 = vpop.permute.xlu0 %1543
        %1545 = vrot.lane.b32.xlu0 %v754, 60
        %v1546 = vpop.permute.xlu0 %1545
        %1547 = vrot.lane.b32.xlu0 %v756, 60
        %v1548 = vpop.permute.xlu0 %1547
        %1549 = vrot.lane.b32.xlu0 %v758, 60
        %v1550 = vpop.permute.xlu0 %1549
        %1551 = vrot.lane.b32.xlu0 %v760, 60
        %v1552 = vpop.permute.xlu0 %1551
        %1553 = vrot.lane.b32.xlu0 %v762, 60
        %v1554 = vpop.permute.xlu0 %1553
        %1555 = vrot.lane.b32.xlu0 %v764, 60
        %v1556 = vpop.permute.xlu0 %1555
        %v1565 = vsel %vm384, %v511, %v1094
        %v1566 = vsel %vm384, %v513, %v1096
        %v1567 = vsel %vm384, %v515, %v1098
        %v1568 = vsel %vm384, %v517, %v1100
        %v1569 = vsel %vm384, %v519, %v1102
        %v1570 = vsel %vm384, %v521, %v1104
        %v1571 = vsel %vm384, %v523, %v1106
        %v1572 = vsel %vm384, %v525, %v1108
        %vm1573 = vcmask 64512
        %v1574 = vsel %vm1573, %v1565, %v1126
        %v1575 = vsel %vm1573, %v1566, %v1128
        %v1576 = vsel %vm1573, %v1567, %v1130
        %v1577 = vsel %vm1573, %v1568, %v1132
        %v1578 = vsel %vm1573, %v1569, %v1134
        %v1579 = vsel %vm1573, %v1570, %v1136
        %v1580 = vsel %vm1573, %v1571, %v1138
        %v1581 = vsel %vm1573, %v1572, %v1140
        %vm1582 = vcmask 97280
        %v1583 = vsel %vm1582, %v1574, %v1158
        %v1584 = vsel %vm1582, %v1575, %v1160
        %v1585 = vsel %vm1582, %v1576, %v1162
        %v1586 = vsel %vm1582, %v1577, %v1164
        %v1587 = vsel %vm1582, %v1578, %v1166
        %v1588 = vsel %vm1582, %v1579, %v1168
        %v1589 = vsel %vm1582, %v1580, %v1170
        %v1590 = vsel %vm1582, %v1581, %v1172
        %vm1591 = vcmask 130048
        %v1592 = vsel %vm1591, %v1583, %v1190
        %v1593 = vsel %vm1591, %v1584, %v1192
        %v1594 = vsel %vm1591, %v1585, %v1194
        %v1595 = vsel %vm1591, %v1586, %v1196
        %v1596 = vsel %vm1591, %v1587, %v1198
        %v1597 = vsel %vm1591, %v1588, %v1200
        %v1598 = vsel %vm1591, %v1589, %v1202
        %v1599 = vsel %vm1591, %v1590, %v1204
        %vm1600 = vcmask 162816
        %v1601 = vsel %vm1600, %v1592, %v1222
        %v1602 = vsel %vm1600, %v1593, %v1224
        %v1603 = vsel %vm1600, %v1594, %v1226
        %v1604 = vsel %vm1600, %v1595, %v1228
        %v1605 = vsel %vm1600, %v1596, %v1230
        %v1606 = vsel %vm1600, %v1597, %v1232
        %v1607 = vsel %vm1600, %v1598, %v1234
        %v1608 = vsel %vm1600, %v1599, %v1236
        %vm1609 = vcmask 195584
        %v1610 = vsel %vm1609, %v1601, %v1254
        %v1611 = vsel %vm1609, %v1602, %v1256
        %v1612 = vsel %vm1609, %v1603, %v1258
        %v1613 = vsel %vm1609, %v1604, %v1260
        %v1614 = vsel %vm1609, %v1605, %v1262
        %v1615 = vsel %vm1609, %v1606, %v1264
        %v1616 = vsel %vm1609, %v1607, %v1266
        %v1617 = vsel %vm1609, %v1608, %v1268
        %vm1618 = vcmask 228352
        %v1619 = vsel %vm1618, %v1610, %v1286
        %v1620 = vsel %vm1618, %v1611, %v1288
        %v1621 = vsel %vm1618, %v1612, %v1290
        %v1622 = vsel %vm1618, %v1613, %v1292
        %v1623 = vsel %vm1618, %v1614, %v1294
        %v1624 = vsel %vm1618, %v1615, %v1296
        %v1625 = vsel %vm1618, %v1616, %v1298
        %v1626 = vsel %vm1618, %v1617, %v1300
        %vm1627 = vcmask 261120
        %v1628 = vsel %vm1627, %v1619, %v1318
        %v1629 = vsel %vm1627, %v1620, %v1320
        %v1630 = vsel %vm1627, %v1621, %v1322
        %v1631 = vsel %vm1627, %v1622, %v1324
        %v1632 = vsel %vm1627, %v1623, %v1326
        %v1633 = vsel %vm1627, %v1624, %v1328
        %v1634 = vsel %vm1627, %v1625, %v1330
        %v1635 = vsel %vm1627, %v1626, %v1332
        %vm1636 = vcmask 293888
        %v1637 = vsel %vm1636, %v1628, %v1350
        %v1638 = vsel %vm1636, %v1629, %v1352
        %v1639 = vsel %vm1636, %v1630, %v1354
        %v1640 = vsel %vm1636, %v1631, %v1356
        %v1641 = vsel %vm1636, %v1632, %v1358
        %v1642 = vsel %vm1636, %v1633, %v1360
        %v1643 = vsel %vm1636, %v1634, %v1362
        %v1644 = vsel %vm1636, %v1635, %v1364
        %vm1645 = vcmask 326656
        %v1646 = vsel %vm1645, %v1637, %v1382
        %v1647 = vsel %vm1645, %v1638, %v1384
        %v1648 = vsel %vm1645, %v1639, %v1386
        %v1649 = vsel %vm1645, %v1640, %v1388
        %v1650 = vsel %vm1645, %v1641, %v1390
        %v1651 = vsel %vm1645, %v1642, %v1392
        %v1652 = vsel %vm1645, %v1643, %v1394
        %v1653 = vsel %vm1645, %v1644, %v1396
        %vm1654 = vcmask 359424
        %v1655 = vsel %vm1654, %v1646, %v1414
        %v1656 = vsel %vm1654, %v1647, %v1416
        %v1657 = vsel %vm1654, %v1648, %v1418
        %v1658 = vsel %vm1654, %v1649, %v1420
        %v1659 = vsel %vm1654, %v1650, %v1422
        %v1660 = vsel %vm1654, %v1651, %v1424
        %v1661 = vsel %vm1654, %v1652, %v1426
        %v1662 = vsel %vm1654, %v1653, %v1428
        %vm1663 = vcmask 392192
        %v1664 = vsel %vm1663, %v1655, %v1446
        %v1665 = vsel %vm1663, %v1656, %v1448
        %v1666 = vsel %vm1663, %v1657, %v1450
        %v1667 = vsel %vm1663, %v1658, %v1452
        %v1668 = vsel %vm1663, %v1659, %v1454
        %v1669 = vsel %vm1663, %v1660, %v1456
        %v1670 = vsel %vm1663, %v1661, %v1458
        %v1671 = vsel %vm1663, %v1662, %v1460
        %vm1672 = vcmask 424960
        %v1673 = vsel %vm1672, %v1664, %v1478
        %v1674 = vsel %vm1672, %v1665, %v1480
        %v1675 = vsel %vm1672, %v1666, %v1482
        %v1676 = vsel %vm1672, %v1667, %v1484
        %v1677 = vsel %vm1672, %v1668, %v1486
        %v1678 = vsel %vm1672, %v1669, %v1488
        %v1679 = vsel %vm1672, %v1670, %v1490
        %v1680 = vsel %vm1672, %v1671, %v1492
        %vm1681 = vcmask 457728
        %v1682 = vsel %vm1681, %v1673, %v1510
        %v1683 = vsel %vm1681, %v1674, %v1512
        %v1684 = vsel %vm1681, %v1675, %v1514
        %v1685 = vsel %vm1681, %v1676, %v1516
        %v1686 = vsel %vm1681, %v1677, %v1518
        %v1687 = vsel %vm1681, %v1678, %v1520
        %v1688 = vsel %vm1681, %v1679, %v1522
        %v1689 = vsel %vm1681, %v1680, %v1524
        %vm1690 = vcmask 490496
        %v1691 = vsel %vm1690, %v1682, %v1542
        %v1692 = vsel %vm1690, %v1683, %v1544
        %v1693 = vsel %vm1690, %v1684, %v1546
        %v1694 = vsel %vm1690, %v1685, %v1548
        %v1695 = vsel %vm1690, %v1686, %v1550
        %v1696 = vsel %vm1690, %v1687, %v1552
        %v1697 = vsel %vm1690, %v1688, %v1554
        %v1698 = vsel %vm1690, %v1689, %v1556
        %1707 = vrot.lane.b32.xlu0 %v782, 4
        %v1708 = vpop.permute.xlu0 %1707
        %1709 = vrot.lane.b32.xlu0 %v784, 4
        %v1710 = vpop.permute.xlu0 %1709
        %1711 = vrot.lane.b32.xlu0 %v786, 4
        %v1712 = vpop.permute.xlu0 %1711
        %1713 = vrot.lane.b32.xlu0 %v788, 4
        %v1714 = vpop.permute.xlu0 %1713
        %1715 = vrot.lane.b32.xlu0 %v790, 4
        %v1716 = vpop.permute.xlu0 %1715
        %1717 = vrot.lane.b32.xlu0 %v792, 4
        %v1718 = vpop.permute.xlu0 %1717
        %1719 = vrot.lane.b32.xlu0 %v794, 4
        %v1720 = vpop.permute.xlu0 %1719
        %1721 = vrot.lane.b32.xlu0 %v796, 4
        %v1722 = vpop.permute.xlu0 %1721
        %1739 = vrot.lane.b32.xlu0 %v798, 8
        %v1740 = vpop.permute.xlu0 %1739
        %1741 = vrot.lane.b32.xlu0 %v800, 8
        %v1742 = vpop.permute.xlu0 %1741
        %1743 = vrot.lane.b32.xlu0 %v802, 8
        %v1744 = vpop.permute.xlu0 %1743
        %1745 = vrot.lane.b32.xlu0 %v804, 8
        %v1746 = vpop.permute.xlu0 %1745
        %1747 = vrot.lane.b32.xlu0 %v806, 8
        %v1748 = vpop.permute.xlu0 %1747
        %1749 = vrot.lane.b32.xlu0 %v808, 8
        %v1750 = vpop.permute.xlu0 %1749
        %1751 = vrot.lane.b32.xlu0 %v810, 8
        %v1752 = vpop.permute.xlu0 %1751
        %1753 = vrot.lane.b32.xlu0 %v812, 8
        %v1754 = vpop.permute.xlu0 %1753
        %1771 = vrot.lane.b32.xlu0 %v814, 12
        %v1772 = vpop.permute.xlu0 %1771
        %1773 = vrot.lane.b32.xlu0 %v816, 12
        %v1774 = vpop.permute.xlu0 %1773
        %1775 = vrot.lane.b32.xlu0 %v818, 12
        %v1776 = vpop.permute.xlu0 %1775
        %1777 = vrot.lane.b32.xlu0 %v820, 12
        %v1778 = vpop.permute.xlu0 %1777
        %1779 = vrot.lane.b32.xlu0 %v822, 12
        %v1780 = vpop.permute.xlu0 %1779
        %1781 = vrot.lane.b32.xlu0 %v824, 12
        %v1782 = vpop.permute.xlu0 %1781
        %1783 = vrot.lane.b32.xlu0 %v826, 12
        %v1784 = vpop.permute.xlu0 %1783
        %1785 = vrot.lane.b32.xlu0 %v828, 12
        %v1786 = vpop.permute.xlu0 %1785
        %1803 = vrot.lane.b32.xlu0 %v830, 16
        %v1804 = vpop.permute.xlu0 %1803
        %1805 = vrot.lane.b32.xlu0 %v832, 16
        %v1806 = vpop.permute.xlu0 %1805
        %1807 = vrot.lane.b32.xlu0 %v834, 16
        %v1808 = vpop.permute.xlu0 %1807
        %1809 = vrot.lane.b32.xlu0 %v836, 16
        %v1810 = vpop.permute.xlu0 %1809
        %1811 = vrot.lane.b32.xlu0 %v838, 16
        %v1812 = vpop.permute.xlu0 %1811
        %1813 = vrot.lane.b32.xlu0 %v840, 16
        %v1814 = vpop.permute.xlu0 %1813
        %1815 = vrot.lane.b32.xlu0 %v842, 16
        %v1816 = vpop.permute.xlu0 %1815
        %1817 = vrot.lane.b32.xlu0 %v844, 16
        %v1818 = vpop.permute.xlu0 %1817
        %1835 = vrot.lane.b32.xlu0 %v846, 20
        %v1836 = vpop.permute.xlu0 %1835
        %1837 = vrot.lane.b32.xlu0 %v848, 20
        %v1838 = vpop.permute.xlu0 %1837
        %1839 = vrot.lane.b32.xlu0 %v850, 20
        %v1840 = vpop.permute.xlu0 %1839
        %1841 = vrot.lane.b32.xlu0 %v852, 20
        %v1842 = vpop.permute.xlu0 %1841
        %1843 = vrot.lane.b32.xlu0 %v854, 20
        %v1844 = vpop.permute.xlu0 %1843
        %1845 = vrot.lane.b32.xlu0 %v856, 20
        %v1846 = vpop.permute.xlu0 %1845
        %1847 = vrot.lane.b32.xlu0 %v858, 20
        %v1848 = vpop.permute.xlu0 %1847
        %1849 = vrot.lane.b32.xlu0 %v860, 20
        %v1850 = vpop.permute.xlu0 %1849
        %1867 = vrot.lane.b32.xlu0 %v862, 24
        %v1868 = vpop.permute.xlu0 %1867
        %1869 = vrot.lane.b32.xlu0 %v864, 24
        %v1870 = vpop.permute.xlu0 %1869
        %1871 = vrot.lane.b32.xlu0 %v866, 24
        %v1872 = vpop.permute.xlu0 %1871
        %1873 = vrot.lane.b32.xlu0 %v868, 24
        %v1874 = vpop.permute.xlu0 %1873
        %1875 = vrot.lane.b32.xlu0 %v870, 24
        %v1876 = vpop.permute.xlu0 %1875
        %1877 = vrot.lane.b32.xlu0 %v872, 24
        %v1878 = vpop.permute.xlu0 %1877
        %1879 = vrot.lane.b32.xlu0 %v874, 24
        %v1880 = vpop.permute.xlu0 %1879
        %1881 = vrot.lane.b32.xlu0 %v876, 24
        %v1882 = vpop.permute.xlu0 %1881
        %1899 = vrot.lane.b32.xlu0 %v878, 28
        %v1900 = vpop.permute.xlu0 %1899
        %1901 = vrot.lane.b32.xlu0 %v880, 28
        %v1902 = vpop.permute.xlu0 %1901
        %1903 = vrot.lane.b32.xlu0 %v882, 28
        %v1904 = vpop.permute.xlu0 %1903
        %1905 = vrot.lane.b32.xlu0 %v884, 28
        %v1906 = vpop.permute.xlu0 %1905
        %1907 = vrot.lane.b32.xlu0 %v886, 28
        %v1908 = vpop.permute.xlu0 %1907
        %1909 = vrot.lane.b32.xlu0 %v888, 28
        %v1910 = vpop.permute.xlu0 %1909
        %1911 = vrot.lane.b32.xlu0 %v890, 28
        %v1912 = vpop.permute.xlu0 %1911
        %1913 = vrot.lane.b32.xlu0 %v892, 28
        %v1914 = vpop.permute.xlu0 %1913
        %1931 = vrot.lane.b32.xlu0 %v894, 32
        %v1932 = vpop.permute.xlu0 %1931
        %1933 = vrot.lane.b32.xlu0 %v896, 32
        %v1934 = vpop.permute.xlu0 %1933
        %1935 = vrot.lane.b32.xlu0 %v898, 32
        %v1936 = vpop.permute.xlu0 %1935
        %1937 = vrot.lane.b32.xlu0 %v900, 32
        %v1938 = vpop.permute.xlu0 %1937
        %1939 = vrot.lane.b32.xlu0 %v902, 32
        %v1940 = vpop.permute.xlu0 %1939
        %1941 = vrot.lane.b32.xlu0 %v904, 32
        %v1942 = vpop.permute.xlu0 %1941
        %1943 = vrot.lane.b32.xlu0 %v906, 32
        %v1944 = vpop.permute.xlu0 %1943
        %1945 = vrot.lane.b32.xlu0 %v908, 32
        %v1946 = vpop.permute.xlu0 %1945
        %1963 = vrot.lane.b32.xlu0 %v910, 36
        %v1964 = vpop.permute.xlu0 %1963
        %1965 = vrot.lane.b32.xlu0 %v912, 36
        %v1966 = vpop.permute.xlu0 %1965
        %1967 = vrot.lane.b32.xlu0 %v914, 36
        %v1968 = vpop.permute.xlu0 %1967
        %1969 = vrot.lane.b32.xlu0 %v916, 36
        %v1970 = vpop.permute.xlu0 %1969
        %1971 = vrot.lane.b32.xlu0 %v918, 36
        %v1972 = vpop.permute.xlu0 %1971
        %1973 = vrot.lane.b32.xlu0 %v920, 36
        %v1974 = vpop.permute.xlu0 %1973
        %1975 = vrot.lane.b32.xlu0 %v922, 36
        %v1976 = vpop.permute.xlu0 %1975
        %1977 = vrot.lane.b32.xlu0 %v924, 36
        %v1978 = vpop.permute.xlu0 %1977
        %1995 = vrot.lane.b32.xlu0 %v926, 40
        %v1996 = vpop.permute.xlu0 %1995
        %1997 = vrot.lane.b32.xlu0 %v928, 40
        %v1998 = vpop.permute.xlu0 %1997
        %1999 = vrot.lane.b32.xlu0 %v930, 40
        %v2000 = vpop.permute.xlu0 %1999
        %2001 = vrot.lane.b32.xlu0 %v932, 40
        %v2002 = vpop.permute.xlu0 %2001
        %2003 = vrot.lane.b32.xlu0 %v934, 40
        %v2004 = vpop.permute.xlu0 %2003
        %2005 = vrot.lane.b32.xlu0 %v936, 40
        %v2006 = vpop.permute.xlu0 %2005
        %2007 = vrot.lane.b32.xlu0 %v938, 40
        %v2008 = vpop.permute.xlu0 %2007
        %2009 = vrot.lane.b32.xlu0 %v940, 40
        %v2010 = vpop.permute.xlu0 %2009
        %2027 = vrot.lane.b32.xlu0 %v942, 44
        %v2028 = vpop.permute.xlu0 %2027
        %2029 = vrot.lane.b32.xlu0 %v944, 44
        %v2030 = vpop.permute.xlu0 %2029
        %2031 = vrot.lane.b32.xlu0 %v946, 44
        %v2032 = vpop.permute.xlu0 %2031
        %2033 = vrot.lane.b32.xlu0 %v948, 44
        %v2034 = vpop.permute.xlu0 %2033
        %2035 = vrot.lane.b32.xlu0 %v950, 44
        %v2036 = vpop.permute.xlu0 %2035
        %2037 = vrot.lane.b32.xlu0 %v952, 44
        %v2038 = vpop.permute.xlu0 %2037
        %2039 = vrot.lane.b32.xlu0 %v954, 44
        %v2040 = vpop.permute.xlu0 %2039
        %2041 = vrot.lane.b32.xlu0 %v956, 44
        %v2042 = vpop.permute.xlu0 %2041
        %2059 = vrot.lane.b32.xlu0 %v958, 48
        %v2060 = vpop.permute.xlu0 %2059
        %2061 = vrot.lane.b32.xlu0 %v960, 48
        %v2062 = vpop.permute.xlu0 %2061
        %2063 = vrot.lane.b32.xlu0 %v962, 48
        %v2064 = vpop.permute.xlu0 %2063
        %2065 = vrot.lane.b32.xlu0 %v964, 48
        %v2066 = vpop.permute.xlu0 %2065
        %2067 = vrot.lane.b32.xlu0 %v966, 48
        %v2068 = vpop.permute.xlu0 %2067
        %2069 = vrot.lane.b32.xlu0 %v968, 48
        %v2070 = vpop.permute.xlu0 %2069
        %2071 = vrot.lane.b32.xlu0 %v970, 48
        %v2072 = vpop.permute.xlu0 %2071
        %2073 = vrot.lane.b32.xlu0 %v972, 48
        %v2074 = vpop.permute.xlu0 %2073
        %2091 = vrot.lane.b32.xlu0 %v974, 52
        %v2092 = vpop.permute.xlu0 %2091
        %2093 = vrot.lane.b32.xlu0 %v976, 52
        %v2094 = vpop.permute.xlu0 %2093
        %2095 = vrot.lane.b32.xlu0 %v978, 52
        %v2096 = vpop.permute.xlu0 %2095
        %2097 = vrot.lane.b32.xlu0 %v980, 52
        %v2098 = vpop.permute.xlu0 %2097
        %2099 = vrot.lane.b32.xlu0 %v982, 52
        %v2100 = vpop.permute.xlu0 %2099
        %2101 = vrot.lane.b32.xlu0 %v984, 52
        %v2102 = vpop.permute.xlu0 %2101
        %2103 = vrot.lane.b32.xlu0 %v986, 52
        %v2104 = vpop.permute.xlu0 %2103
        %2105 = vrot.lane.b32.xlu0 %v988, 52
        %v2106 = vpop.permute.xlu0 %2105
        %2123 = vrot.lane.b32.xlu0 %v990, 56
        %v2124 = vpop.permute.xlu0 %2123
        %2125 = vrot.lane.b32.xlu0 %v992, 56
        %v2126 = vpop.permute.xlu0 %2125
        %2127 = vrot.lane.b32.xlu0 %v994, 56
        %v2128 = vpop.permute.xlu0 %2127
        %2129 = vrot.lane.b32.xlu0 %v996, 56
        %v2130 = vpop.permute.xlu0 %2129
        %2131 = vrot.lane.b32.xlu0 %v998, 56
        %v2132 = vpop.permute.xlu0 %2131
        %2133 = vrot.lane.b32.xlu0 %v1000, 56
        %v2134 = vpop.permute.xlu0 %2133
        %2135 = vrot.lane.b32.xlu0 %v1002, 56
        %v2136 = vpop.permute.xlu0 %2135
        %2137 = vrot.lane.b32.xlu0 %v1004, 56
        %v2138 = vpop.permute.xlu0 %2137
        %2155 = vrot.lane.b32.xlu0 %v1006, 60
        %v2156 = vpop.permute.xlu0 %2155
        %2157 = vrot.lane.b32.xlu0 %v1008, 60
        %v2158 = vpop.permute.xlu0 %2157
        %2159 = vrot.lane.b32.xlu0 %v1010, 60
        %v2160 = vpop.permute.xlu0 %2159
        %2161 = vrot.lane.b32.xlu0 %v1012, 60
        %v2162 = vpop.permute.xlu0 %2161
        %2163 = vrot.lane.b32.xlu0 %v1014, 60
        %v2164 = vpop.permute.xlu0 %2163
        %2165 = vrot.lane.b32.xlu0 %v1016, 60
        %v2166 = vpop.permute.xlu0 %2165
        %2167 = vrot.lane.b32.xlu0 %v1018, 60
        %v2168 = vpop.permute.xlu0 %2167
        %2169 = vrot.lane.b32.xlu0 %v1020, 60
        %v2170 = vpop.permute.xlu0 %2169
        %v2179 = vsel %vm384, %v766, %v1708
        %v2180 = vsel %vm384, %v768, %v1710
        %v2181 = vsel %vm384, %v770, %v1712
        %v2182 = vsel %vm384, %v772, %v1714
        %v2183 = vsel %vm384, %v774, %v1716
        %v2184 = vsel %vm384, %v776, %v1718
        %v2185 = vsel %vm384, %v778, %v1720
        %v2186 = vsel %vm384, %v780, %v1722
        %v2187 = vsel %vm1573, %v2179, %v1740
        %v2188 = vsel %vm1573, %v2180, %v1742
        %v2189 = vsel %vm1573, %v2181, %v1744
        %v2190 = vsel %vm1573, %v2182, %v1746
        %v2191 = vsel %vm1573, %v2183, %v1748
        %v2192 = vsel %vm1573, %v2184, %v1750
        %v2193 = vsel %vm1573, %v2185, %v1752
        %v2194 = vsel %vm1573, %v2186, %v1754
        %v2195 = vsel %vm1582, %v2187, %v1772
        %v2196 = vsel %vm1582, %v2188, %v1774
        %v2197 = vsel %vm1582, %v2189, %v1776
        %v2198 = vsel %vm1582, %v2190, %v1778
        %v2199 = vsel %vm1582, %v2191, %v1780
        %v2200 = vsel %vm1582, %v2192, %v1782
        %v2201 = vsel %vm1582, %v2193, %v1784
        %v2202 = vsel %vm1582, %v2194, %v1786
        %v2203 = vsel %vm1591, %v2195, %v1804
        %v2204 = vsel %vm1591, %v2196, %v1806
        %v2205 = vsel %vm1591, %v2197, %v1808
        %v2206 = vsel %vm1591, %v2198, %v1810
        %v2207 = vsel %vm1591, %v2199, %v1812
        %v2208 = vsel %vm1591, %v2200, %v1814
        %v2209 = vsel %vm1591, %v2201, %v1816
        %v2210 = vsel %vm1591, %v2202, %v1818
        %v2211 = vsel %vm1600, %v2203, %v1836
        %v2212 = vsel %vm1600, %v2204, %v1838
        %v2213 = vsel %vm1600, %v2205, %v1840
        %v2214 = vsel %vm1600, %v2206, %v1842
        %v2215 = vsel %vm1600, %v2207, %v1844
        %v2216 = vsel %vm1600, %v2208, %v1846
        %v2217 = vsel %vm1600, %v2209, %v1848
        %v2218 = vsel %vm1600, %v2210, %v1850
        %v2219 = vsel %vm1609, %v2211, %v1868
        %v2220 = vsel %vm1609, %v2212, %v1870
        %v2221 = vsel %vm1609, %v2213, %v1872
        %v2222 = vsel %vm1609, %v2214, %v1874
        %v2223 = vsel %vm1609, %v2215, %v1876
        %v2224 = vsel %vm1609, %v2216, %v1878
        %v2225 = vsel %vm1609, %v2217, %v1880
        %v2226 = vsel %vm1609, %v2218, %v1882
        %v2227 = vsel %vm1618, %v2219, %v1900
        %v2228 = vsel %vm1618, %v2220, %v1902
        %v2229 = vsel %vm1618, %v2221, %v1904
        %v2230 = vsel %vm1618, %v2222, %v1906
        %v2231 = vsel %vm1618, %v2223, %v1908
        %v2232 = vsel %vm1618, %v2224, %v1910
        %v2233 = vsel %vm1618, %v2225, %v1912
        %v2234 = vsel %vm1618, %v2226, %v1914
        %v2235 = vsel %vm1627, %v2227, %v1932
        %v2236 = vsel %vm1627, %v2228, %v1934
        %v2237 = vsel %vm1627, %v2229, %v1936
        %v2238 = vsel %vm1627, %v2230, %v1938
        %v2239 = vsel %vm1627, %v2231, %v1940
        %v2240 = vsel %vm1627, %v2232, %v1942
        %v2241 = vsel %vm1627, %v2233, %v1944
        %v2242 = vsel %vm1627, %v2234, %v1946
        %v2243 = vsel %vm1636, %v2235, %v1964
        %v2244 = vsel %vm1636, %v2236, %v1966
        %v2245 = vsel %vm1636, %v2237, %v1968
        %v2246 = vsel %vm1636, %v2238, %v1970
        %v2247 = vsel %vm1636, %v2239, %v1972
        %v2248 = vsel %vm1636, %v2240, %v1974
        %v2249 = vsel %vm1636, %v2241, %v1976
        %v2250 = vsel %vm1636, %v2242, %v1978
        %v2251 = vsel %vm1645, %v2243, %v1996
        %v2252 = vsel %vm1645, %v2244, %v1998
        %v2253 = vsel %vm1645, %v2245, %v2000
        %v2254 = vsel %vm1645, %v2246, %v2002
        %v2255 = vsel %vm1645, %v2247, %v2004
        %v2256 = vsel %vm1645, %v2248, %v2006
        %v2257 = vsel %vm1645, %v2249, %v2008
        %v2258 = vsel %vm1645, %v2250, %v2010
        %v2259 = vsel %vm1654, %v2251, %v2028
        %v2260 = vsel %vm1654, %v2252, %v2030
        %v2261 = vsel %vm1654, %v2253, %v2032
        %v2262 = vsel %vm1654, %v2254, %v2034
        %v2263 = vsel %vm1654, %v2255, %v2036
        %v2264 = vsel %vm1654, %v2256, %v2038
        %v2265 = vsel %vm1654, %v2257, %v2040
        %v2266 = vsel %vm1654, %v2258, %v2042
        %v2267 = vsel %vm1663, %v2259, %v2060
        %v2268 = vsel %vm1663, %v2260, %v2062
        %v2269 = vsel %vm1663, %v2261, %v2064
        %v2270 = vsel %vm1663, %v2262, %v2066
        %v2271 = vsel %vm1663, %v2263, %v2068
        %v2272 = vsel %vm1663, %v2264, %v2070
        %v2273 = vsel %vm1663, %v2265, %v2072
        %v2274 = vsel %vm1663, %v2266, %v2074
        %v2275 = vsel %vm1672, %v2267, %v2092
        %v2276 = vsel %vm1672, %v2268, %v2094
        %v2277 = vsel %vm1672, %v2269, %v2096
        %v2278 = vsel %vm1672, %v2270, %v2098
        %v2279 = vsel %vm1672, %v2271, %v2100
        %v2280 = vsel %vm1672, %v2272, %v2102
        %v2281 = vsel %vm1672, %v2273, %v2104
        %v2282 = vsel %vm1672, %v2274, %v2106
        %v2283 = vsel %vm1681, %v2275, %v2124
        %v2284 = vsel %vm1681, %v2276, %v2126
        %v2285 = vsel %vm1681, %v2277, %v2128
        %v2286 = vsel %vm1681, %v2278, %v2130
        %v2287 = vsel %vm1681, %v2279, %v2132
        %v2288 = vsel %vm1681, %v2280, %v2134
        %v2289 = vsel %vm1681, %v2281, %v2136
        %v2290 = vsel %vm1681, %v2282, %v2138
        %v2291 = vsel %vm1690, %v2283, %v2156
        %v2292 = vsel %vm1690, %v2284, %v2158
        %v2293 = vsel %vm1690, %v2285, %v2160
        %v2294 = vsel %vm1690, %v2286, %v2162
        %v2295 = vsel %vm1690, %v2287, %v2164
        %v2296 = vsel %vm1690, %v2288, %v2166
        %v2297 = vsel %vm1690, %v2289, %v2168
        %v2298 = vsel %vm1690, %v2290, %v2170
        %2307 = vrot.lane.b32.xlu0 %v1038, 4
        %v2308 = vpop.permute.xlu0 %2307
        %2309 = vrot.lane.b32.xlu0 %v1040, 4
        %v2310 = vpop.permute.xlu0 %2309
        %2311 = vrot.lane.b32.xlu0 %v1042, 4
        %v2312 = vpop.permute.xlu0 %2311
        %2313 = vrot.lane.b32.xlu0 %v1044, 4
        %v2314 = vpop.permute.xlu0 %2313
        %2315 = vrot.lane.b32.xlu0 %v1046, 4
        %v2316 = vpop.permute.xlu0 %2315
        %2317 = vrot.lane.b32.xlu0 %v1048, 4
        %v2318 = vpop.permute.xlu0 %2317
        %2319 = vrot.lane.b32.xlu0 %v1050, 4
        %v2320 = vpop.permute.xlu0 %2319
        %2321 = vrot.lane.b32.xlu0 %v1052, 4
        %v2322 = vpop.permute.xlu0 %2321
        %2339 = vrot.lane.b32.xlu0 %v1054, 8
        %v2340 = vpop.permute.xlu0 %2339
        %2341 = vrot.lane.b32.xlu0 %v1056, 8
        %v2342 = vpop.permute.xlu0 %2341
        %2343 = vrot.lane.b32.xlu0 %v1058, 8
        %v2344 = vpop.permute.xlu0 %2343
        %2345 = vrot.lane.b32.xlu0 %v1060, 8
        %v2346 = vpop.permute.xlu0 %2345
        %2347 = vrot.lane.b32.xlu0 %v1062, 8
        %v2348 = vpop.permute.xlu0 %2347
        %2349 = vrot.lane.b32.xlu0 %v1064, 8
        %v2350 = vpop.permute.xlu0 %2349
        %2351 = vrot.lane.b32.xlu0 %v1066, 8
        %v2352 = vpop.permute.xlu0 %2351
        %2353 = vrot.lane.b32.xlu0 %v1068, 8
        %v2354 = vpop.permute.xlu0 %2353
        %2371 = vrot.lane.b32.xlu0 %v1070, 12
        %v2372 = vpop.permute.xlu0 %2371
        %2373 = vrot.lane.b32.xlu0 %v1072, 12
        %v2374 = vpop.permute.xlu0 %2373
        %2375 = vrot.lane.b32.xlu0 %v1074, 12
        %v2376 = vpop.permute.xlu0 %2375
        %2377 = vrot.lane.b32.xlu0 %v1076, 12
        %v2378 = vpop.permute.xlu0 %2377
        %2379 = vrot.lane.b32.xlu0 %v1078, 12
        %v2380 = vpop.permute.xlu0 %2379
        %2381 = vrot.lane.b32.xlu0 %v1080, 12
        %v2382 = vpop.permute.xlu0 %2381
        %2383 = vrot.lane.b32.xlu0 %v1082, 12
        %v2384 = vpop.permute.xlu0 %2383
        %2385 = vrot.lane.b32.xlu0 %v1084, 12
        %v2386 = vpop.permute.xlu0 %2385
        %v2395 = vsel %vm384, %v1022, %v2308
        %v2396 = vsel %vm384, %v1024, %v2310
        %v2397 = vsel %vm384, %v1026, %v2312
        %v2398 = vsel %vm384, %v1028, %v2314
        %v2399 = vsel %vm384, %v1030, %v2316
        %v2400 = vsel %vm384, %v1032, %v2318
        %v2401 = vsel %vm384, %v1034, %v2320
        %v2402 = vsel %vm384, %v1036, %v2322
        %v2403 = vsel %vm1573, %v2395, %v2340
        %v2404 = vsel %vm1573, %v2396, %v2342
        %v2405 = vsel %vm1573, %v2397, %v2344
        %v2406 = vsel %vm1573, %v2398, %v2346
        %v2407 = vsel %vm1573, %v2399, %v2348
        %v2408 = vsel %vm1573, %v2400, %v2350
        %v2409 = vsel %vm1573, %v2401, %v2352
        %v2410 = vsel %vm1573, %v2402, %v2354
        %v2411 = vsel %vm1582, %v2403, %v2372
        %v2412 = vsel %vm1582, %v2404, %v2374
        %v2413 = vsel %vm1582, %v2405, %v2376
        %v2414 = vsel %vm1582, %v2406, %v2378
        %v2415 = vsel %vm1582, %v2407, %v2380
        %v2416 = vsel %vm1582, %v2408, %v2382
        %v2417 = vsel %vm1582, %v2409, %v2384
        %v2418 = vsel %vm1582, %v2410, %v2386
        %2427 = vrot.lane.b32.xlu0 %v2291, 64
        %v2428 = vpop.permute.xlu0 %2427
        %2429 = vrot.lane.b32.xlu0 %v2292, 64
        %v2430 = vpop.permute.xlu0 %2429
        %2431 = vrot.lane.b32.xlu0 %v2293, 64
        %v2432 = vpop.permute.xlu0 %2431
        %2433 = vrot.lane.b32.xlu0 %v2294, 64
        %v2434 = vpop.permute.xlu0 %2433
        %2435 = vrot.lane.b32.xlu0 %v2295, 64
        %v2436 = vpop.permute.xlu0 %2435
        %2437 = vrot.lane.b32.xlu0 %v2296, 64
        %v2438 = vpop.permute.xlu0 %2437
        %2439 = vrot.lane.b32.xlu0 %v2297, 64
        %v2440 = vpop.permute.xlu0 %2439
        %2441 = vrot.lane.b32.xlu0 %v2298, 64
        %v2442 = vpop.permute.xlu0 %2441
        %vm2451 = vcmask 523264
        %v2452 = vsel %vm2451, %v1691, %v2428
        %v2453 = vsel %vm2451, %v1692, %v2430
        %v2454 = vsel %vm2451, %v1693, %v2432
        %v2455 = vsel %vm2451, %v1694, %v2434
        %v2456 = vsel %vm2451, %v1695, %v2436
        %v2457 = vsel %vm2451, %v1696, %v2438
        %v2458 = vsel %vm2451, %v1697, %v2440
        %v2459 = vsel %vm2451, %v1698, %v2442
        %v2460 = vld [vmem:[%s1] sm:$0xff]
        %v2461 = vld [vmem:[%s1 + $0x8] sm:$0xff]
        %v2462 = vld [vmem:[%s1 + $0x10] sm:$0xff]
        %v2463 = vld [vmem:[%s1 + $0x18] sm:$0xff]
        %v2464 = vld [vmem:[%s1 + $0x20] sm:$0xff]
        %v2465 = vld [vmem:[%s1 + $0x28] sm:$0xff]
        %v2466 = vld [vmem:[%s1 + $0x30] sm:$0xff]
        %v2467 = vld [vmem:[%s1 + $0x38] sm:$0xff]
        %v2468 = vld [vmem:[%s1 + $0x40] sm:$0xff]
        %v2469 = vld [vmem:[%s1 + $0x48] sm:$0xff]
        %v2470 = vld [vmem:[%s1 + $0x50] sm:$0xff]
        %v2471 = vld [vmem:[%s1 + $0x58] sm:$0xff]
        %v2472 = vld [vmem:[%s1 + $0x60] sm:$0xff]
        %v2473 = vld [vmem:[%s1 + $0x68] sm:$0xff]
        %v2474 = vld [vmem:[%s1 + $0x70] sm:$0xff]
        %v2475 = vld [vmem:[%s1 + $0x78] sm:$0xff]
        %v2476 = vld [vmem:[%s1 + $0x80] sm:$0xff]
        %v2477 = vld [vmem:[%s1 + $0x88] sm:$0xff]
        %v2478 = vld [vmem:[%s2] sm:$0x1]
        %v2480 = vlaneseq
        %v2481 = vshrl.u32 %v2480, 7
        %v2482 = vsub.s32 0, %v2481
        %v2483 = vrot.slane %v2478, %v2482
        %v2486 = vsel %vm1591, %v2411, 0
        %v2489 = vsel %vm1591, %v2412, 0
        %v2492 = vsel %vm1591, %v2413, 0
        %v2495 = vsel %vm1591, %v2414, 0
        %v2498 = vsel %vm1591, %v2415, 0
        %v2501 = vsel %vm1591, %v2416, 0
        %v2504 = vsel %vm1591, %v2417, 0
        %v2507 = vsel %vm1591, %v2418, 0
        %2509 = vmatprep.subr.mxu0 0.0
        %2510 = vmatpush1.msra.mxu0 %v2475
        %2511 = vmatprep.subr.mxu0 0.0
        %2512 = vmatpush1.msra.mxu0 %v2474
        %2513 = vmatprep.subr.mxu0 0.0
        %2514 = vmatpush1.msra.mxu0 %v2473
        %2515 = vmatprep.subr.mxu0 0.0
        %2516 = vmatpush1.msra.mxu0 %v2472
        %2517 = vmatprep.subr.mxu0 0.0
        %2518 = vmatpush1.msra.mxu0 %v2471
        %2519 = vmatprep.subr.mxu0 0.0
        %2520 = vmatpush1.msra.mxu0 %v2470
        %2521 = vmatprep.subr.mxu0 0.0
        %2522 = vmatpush1.msra.mxu0 %v2469
        %2523 = vmatprep.subr.mxu0 0.0
        %2524 = vmatpush1.msra.mxu0 %v2468
        %2525 = vmatprep.subr.mxu0 0.0
        %2526 = vmatpush1.msra.mxu0 %v2467
        %2527 = vmatprep.subr.mxu0 0.0
        %2528 = vmatpush1.msra.mxu0 %v2466
        %2529 = vmatprep.subr.mxu0 0.0
        %2530 = vmatpush1.msra.mxu0 %v2465
        %2531 = vmatprep.subr.mxu0 0.0
        %2532 = vmatpush1.msra.mxu0 %v2464
        %2533 = vmatprep.subr.mxu0 0.0
        %2534 = vmatpush1.msra.mxu0 %v2463
        %2535 = vmatprep.subr.mxu0 0.0
        %2536 = vmatpush1.msra.mxu0 %v2462
        %2537 = vmatprep.subr.mxu0 0.0
        %2538 = vmatpush1.msra.mxu0 %v2461
        %2539 = vmatprep.subr.mxu0 0.0
        %2540 = vmatpush1.msra.mxu0 %v2460
        %2541 = vmatprep.subr.mxu0 0.0
        %2542 = vmatpush2.msra.mxu0 0.0
        %2543 = vmatprep.subr.mxu0 0.0
        %2544 = vmatpush2.msra.mxu0 0.0
        %2545 = vmatprep.subr.mxu0 0.0
        %2546 = vmatpush2.msra.mxu0 0.0
        %2547 = vmatprep.subr.mxu0 0.0
        %2548 = vmatpush2.msra.mxu0 0.0
        %2549 = vmatprep.subr.mxu0 0.0
        %2550 = vmatpush2.msra.mxu0 0.0
        %2551 = vmatprep.subr.mxu0 0.0
        %2552 = vmatpush2.msra.mxu0 0.0
        %2553 = vmatprep.subr.mxu0 0.0
        %2554 = vmatpush2.msra.mxu0 0.0
        %2555 = vmatprep.subr.mxu0 0.0
        %2556 = vmatpush2.msra.mxu0 0.0
        %2557 = vmatprep.subr.mxu0 0.0
        %2558 = vmatpush2.msra.mxu0 0.0
        %2559 = vmatprep.subr.mxu0 0.0
        %2560 = vmatpush2.msra.mxu0 0.0
        %2561 = vmatprep.subr.mxu0 0.0
        %2562 = vmatpush2.msra.mxu0 0.0
        %2563 = vmatprep.subr.mxu0 0.0
        %2564 = vmatpush2.msra.mxu0 0.0
        %2565 = vmatprep.subr.mxu0 0.0
        %2566 = vmatpush2.msra.mxu0 0.0
        %2567 = vmatprep.subr.mxu0 0.0
        %2568 = vmatpush2.msra.mxu0 0.0
        %2569 = vmatprep.subr.mxu0 0.0
        %2570 = vmatpush2.msra.mxu0 %v2477
        %2571 = vmatprep.subr.mxu0 0.0
        %2572 = vmatpush2.msra.mxu0 %v2476
        %2573 = vmatprep.mubr.f32.mxu0 %v2486
        %2574 = vmatmul.mubr.f32.gmra.mxu0 %v2452
        %v2575 = vpop.f32.mrf.mxu0
        %v2576 = vadd.f32 %v2483, %v2575
        %v2577 = vpop.f32.mrf.mxu0
        %2578 = vmatprep.mubr.f32.mxu0 %v2489
        %2579 = vmatmul.mubr.f32.gmra.mxu0 %v2453
        %v2580 = vpop.f32.mrf.mxu0
        %v2581 = vadd.f32 %v2483, %v2580
        %v2582 = vpop.f32.mrf.mxu0
        %2583 = vmatprep.mubr.f32.mxu0 %v2492
        %2584 = vmatmul.mubr.f32.gmra.mxu0 %v2454
        %v2585 = vpop.f32.mrf.mxu0
        %v2586 = vadd.f32 %v2483, %v2585
        %v2587 = vpop.f32.mrf.mxu0
        %2588 = vmatprep.mubr.f32.mxu0 %v2495
        %2589 = vmatmul.mubr.f32.gmra.mxu0 %v2455
        %v2590 = vpop.f32.mrf.mxu0
        %v2591 = vadd.f32 %v2483, %v2590
        %v2592 = vpop.f32.mrf.mxu0
        %2593 = vmatprep.mubr.f32.mxu0 %v2498
        %2594 = vmatmul.mubr.f32.gmra.mxu0 %v2456
        %v2595 = vpop.f32.mrf.mxu0
        %v2596 = vadd.f32 %v2483, %v2595
        %v2597 = vpop.f32.mrf.mxu0
        %2598 = vmatprep.mubr.f32.mxu0 %v2501
        %2599 = vmatmul.mubr.f32.gmra.mxu0 %v2457
        %v2600 = vpop.f32.mrf.mxu0
        %v2601 = vadd.f32 %v2483, %v2600
        %v2602 = vpop.f32.mrf.mxu0
        %2603 = vmatprep.mubr.f32.mxu0 %v2504
        %2604 = vmatmul.mubr.f32.gmra.mxu0 %v2458
        %v2605 = vpop.f32.mrf.mxu0
        %v2606 = vadd.f32 %v2483, %v2605
        %v2607 = vpop.f32.mrf.mxu0
        %2608 = vmatprep.mubr.f32.mxu0 %v2507
        %2609 = vmatmul.mubr.f32.gmra.mxu0 %v2459
        %v2610 = vpop.f32.mrf.mxu0
        %v2611 = vadd.f32 %v2483, %v2610
        %v2612 = vpop.f32.mrf.mxu0
        %2613 = vdwg.mxu0
        %2622 = vrot.lane.b32.xlu0 %v2576, 122
        %v2623 = vpop.permute.xlu0 %2622
        %2624 = vrot.lane.b32.xlu0 %v2581, 122
        %v2625 = vpop.permute.xlu0 %2624
        %2626 = vrot.lane.b32.xlu0 %v2586, 122
        %v2627 = vpop.permute.xlu0 %2626
        %2628 = vrot.lane.b32.xlu0 %v2591, 122
        %v2629 = vpop.permute.xlu0 %2628
        %2630 = vrot.lane.b32.xlu0 %v2596, 122
        %v2631 = vpop.permute.xlu0 %2630
        %2632 = vrot.lane.b32.xlu0 %v2601, 122
        %v2633 = vpop.permute.xlu0 %2632
        %2634 = vrot.lane.b32.xlu0 %v2606, 122
        %v2635 = vpop.permute.xlu0 %2634
        %2636 = vrot.lane.b32.xlu0 %v2611, 122
        %v2637 = vpop.permute.xlu0 %2636
        %v2646 = vmax.f32 %v2576, %v2623
        %v2647 = vmax.f32 %v2581, %v2625
        %v2648 = vmax.f32 %v2586, %v2627
        %v2649 = vmax.f32 %v2591, %v2629
        %v2650 = vmax.f32 %v2596, %v2631
        %v2651 = vmax.f32 %v2601, %v2633
        %v2652 = vmax.f32 %v2606, %v2635
        %v2653 = vmax.f32 %v2611, %v2637
        %2662 = vrot.lane.b32.xlu0 %v2646, 116
        %v2663 = vpop.permute.xlu0 %2662
        %2664 = vrot.lane.b32.xlu0 %v2647, 116
        %v2665 = vpop.permute.xlu0 %2664
        %2666 = vrot.lane.b32.xlu0 %v2648, 116
        %v2667 = vpop.permute.xlu0 %2666
        %2668 = vrot.lane.b32.xlu0 %v2649, 116
        %v2669 = vpop.permute.xlu0 %2668
        %2670 = vrot.lane.b32.xlu0 %v2650, 116
        %v2671 = vpop.permute.xlu0 %2670
        %2672 = vrot.lane.b32.xlu0 %v2651, 116
        %v2673 = vpop.permute.xlu0 %2672
        %2674 = vrot.lane.b32.xlu0 %v2652, 116
        %v2675 = vpop.permute.xlu0 %2674
        %2676 = vrot.lane.b32.xlu0 %v2653, 116
        %v2677 = vpop.permute.xlu0 %2676
        %v2686 = vmax.f32 %v2646, %v2663
        %v2687 = vmax.f32 %v2647, %v2665
        %v2688 = vmax.f32 %v2648, %v2667
        %v2689 = vmax.f32 %v2649, %v2669
        %v2690 = vmax.f32 %v2650, %v2671
        %v2691 = vmax.f32 %v2651, %v2673
        %v2692 = vmax.f32 %v2652, %v2675
        %v2693 = vmax.f32 %v2653, %v2677
        %v2694 = vmax.f32 %v2686, 0.0
        %v2695 = vmax.f32 %v2687, 0.0
        %v2696 = vmax.f32 %v2688, 0.0
        %v2697 = vmax.f32 %v2689, 0.0
        %v2698 = vmax.f32 %v2690, 0.0
        %v2699 = vmax.f32 %v2691, 0.0
        %v2700 = vmax.f32 %v2692, 0.0
        %v2701 = vmax.f32 %v2693, 0.0
        %vm2702 = vcmask 48128
        %2703 = vst.msk [vmem:[#allocation3] sm:$0xff] %vm2702, 0.0
        %vm2704 = vcmask 44032
        %2705 = vst.msk [vmem:[#allocation3 + $0x8] sm:$0xf] %vm2704, 0.0
        %2706 = vst.msk [vmem:[#allocation3 + $0x10] sm:$0xff] %vm2702, 0.0
        %2707 = vst.msk [vmem:[#allocation3 + $0x18] sm:$0xf] %vm2704, 0.0
        %2708 = vst.msk [vmem:[#allocation3 + $0x20] sm:$0xff] %vm2702, 0.0
        %2709 = vst.msk [vmem:[#allocation3 + $0x28] sm:$0xf] %vm2704, 0.0
        %2710 = vst.msk [vmem:[#allocation3 + $0x30] sm:$0xff] %vm2702, 0.0
        %2711 = vst.msk [vmem:[#allocation3 + $0x38] sm:$0xf] %vm2704, 0.0
        %2712 = vst.msk [vmem:[#allocation3 + $0x40] sm:$0xff] %vm2702, 0.0
        %2713 = vst.msk [vmem:[#allocation3 + $0x48] sm:$0xf] %vm2704, 0.0
        %2714 = vst.msk [vmem:[#allocation3 + $0x50] sm:$0xff] %vm2702, 0.0
        %2715 = vst.msk [vmem:[#allocation3 + $0x58] sm:$0xf] %vm2704, 0.0
        %2716 = vst.msk [vmem:[#allocation3 + $0x60] sm:$0xff] %vm2702, 0.0
        %2717 = vst.msk [vmem:[#allocation3 + $0x68] sm:$0xf] %vm2704, 0.0
        %2718 = vst.msk [vmem:[#allocation3 + $0x70] sm:$0xff] %vm2702, 0.0
        %2719 = vst.msk [vmem:[#allocation3 + $0x78] sm:$0xf] %vm2704, 0.0
        %2720 = vst.msk [vmem:[#allocation3 + $0x80] sm:$0xff] %vm2702, 0.0
        %2721 = vst.msk [vmem:[#allocation3 + $0x88] sm:$0xf] %vm2704, 0.0
        %2722 = vst.msk [vmem:[#allocation3 + $0x90] sm:$0xff] %vm2702, 0.0
        %2723 = vst.msk [vmem:[#allocation3 + $0x98] sm:$0xf] %vm2704, 0.0
        %2724 = vst.msk [vmem:[#allocation3 + $0xa0] sm:$0xff] %vm2702, 0.0
        %2725 = vst.msk [vmem:[#allocation3 + $0xa8] sm:$0xf] %vm2704, 0.0
        %2726 = vst.msk [vmem:[#allocation3 + $0xb0] sm:$0xff] %vm2702, 0.0
        %2727 = vst.msk [vmem:[#allocation3 + $0xb8] sm:$0xf] %vm2704, 0.0
        %s2728 = scalar_lea.vmem [#allocation3], 32
        %2729 = vst.msk [vmem:[%s2728 + $0x2] sm:$0xff] %vm2702, %v2694
        %2730 = vst.msk [vmem:[%s2728 + $0x12] sm:$0xff] %vm2702, %v2695
        %2731 = vst.msk [vmem:[%s2728 + $0x22] sm:$0xff] %vm2702, %v2696
        %2732 = vst.msk [vmem:[%s2728 + $0x32] sm:$0xff] %vm2702, %v2697
        %2733 = vst.msk [vmem:[%s2728 + $0x42] sm:$0xff] %vm2702, %v2698
        %2734 = vst.msk [vmem:[%s2728 + $0x52] sm:$0xff] %vm2702, %v2699
        %2735 = vst.msk [vmem:[%s2728 + $0x62] sm:$0xff] %vm2702, %v2700
        %2736 = vst.msk [vmem:[%s2728 + $0x72] sm:$0xff] %vm2702, %v2701
        %v2737 = vld [vmem:[#allocation3] sm:$0xff]
        %v2738 = vld [vmem:[#allocation3 + $0x10] sm:$0xff]
        %v2739 = vld [vmem:[#allocation3 + $0x20] sm:$0xff]
        %v2740 = vld [vmem:[#allocation3 + $0x30] sm:$0xff]
        %v2741 = vld [vmem:[#allocation3 + $0x40] sm:$0xff]
        %v2742 = vld [vmem:[#allocation3 + $0x50] sm:$0xff]
        %v2743 = vld [vmem:[#allocation3 + $0x60] sm:$0xff]
        %v2744 = vld [vmem:[#allocation3 + $0x70] sm:$0xff]
        %v2745 = vld [vmem:[#allocation3 + $0x1] sm:$0xff]
        %v2746 = vld [vmem:[#allocation3 + $0x11] sm:$0xff]
        %v2747 = vld [vmem:[#allocation3 + $0x21] sm:$0xff]
        %v2748 = vld [vmem:[#allocation3 + $0x31] sm:$0xff]
        %v2749 = vld [vmem:[#allocation3 + $0x41] sm:$0xff]
        %v2750 = vld [vmem:[#allocation3 + $0x51] sm:$0xff]
        %v2751 = vld [vmem:[#allocation3 + $0x61] sm:$0xff]
        %v2752 = vld [vmem:[#allocation3 + $0x71] sm:$0xff]
        %v2753 = vld [vmem:[#allocation3 + $0x2] sm:$0xff]
        %v2754 = vld [vmem:[#allocation3 + $0x12] sm:$0xff]
        %v2755 = vld [vmem:[#allocation3 + $0x22] sm:$0xff]
        %v2756 = vld [vmem:[#allocation3 + $0x32] sm:$0xff]
        %v2757 = vld [vmem:[#allocation3 + $0x42] sm:$0xff]
        %v2758 = vld [vmem:[#allocation3 + $0x52] sm:$0xff]
        %v2759 = vld [vmem:[#allocation3 + $0x62] sm:$0xff]
        %v2760 = vld [vmem:[#allocation3 + $0x72] sm:$0xff]
        %v2761 = vld [vmem:[#allocation3 + $0x3] sm:$0xff]
        %v2762 = vld [vmem:[#allocation3 + $0x13] sm:$0xff]
        %v2763 = vld [vmem:[#allocation3 + $0x23] sm:$0xff]
        %v2764 = vld [vmem:[#allocation3 + $0x33] sm:$0xff]
        %v2765 = vld [vmem:[#allocation3 + $0x43] sm:$0xff]
        %v2766 = vld [vmem:[#allocation3 + $0x53] sm:$0xff]
        %v2767 = vld [vmem:[#allocation3 + $0x63] sm:$0xff]
        %v2768 = vld [vmem:[#allocation3 + $0x73] sm:$0xff]
        %v2769 = vld [vmem:[#allocation3 + $0x4] sm:$0xff]
        %v2770 = vld [vmem:[#allocation3 + $0x14] sm:$0xff]
        %v2771 = vld [vmem:[#allocation3 + $0x24] sm:$0xff]
        %v2772 = vld [vmem:[#allocation3 + $0x34] sm:$0xff]
        %v2773 = vld [vmem:[#allocation3 + $0x44] sm:$0xff]
        %v2774 = vld [vmem:[#allocation3 + $0x54] sm:$0xff]
        %v2775 = vld [vmem:[#allocation3 + $0x64] sm:$0xff]
        %v2776 = vld [vmem:[#allocation3 + $0x74] sm:$0xff]
        %s2777 = scalar_lea.vmem [#allocation3], 16
        %v2778 = vld [vmem:[%s2777] sm:$0xff]
        %v2779 = vld [vmem:[%s2777 + $0x10] sm:$0xff]
        %v2780 = vld [vmem:[%s2777 + $0x20] sm:$0xff]
        %v2781 = vld [vmem:[%s2777 + $0x30] sm:$0xff]
        %v2782 = vld [vmem:[%s2777 + $0x40] sm:$0xff]
        %v2783 = vld [vmem:[%s2777 + $0x50] sm:$0xff]
        %v2784 = vld [vmem:[%s2777 + $0x60] sm:$0xff]
        %v2785 = vld [vmem:[%s2777 + $0x70] sm:$0xff]
        %v2786 = vld [vmem:[%s2777 + $0x1] sm:$0xff]
        %v2787 = vld [vmem:[%s2777 + $0x11] sm:$0xff]
        %v2788 = vld [vmem:[%s2777 + $0x21] sm:$0xff]
        %v2789 = vld [vmem:[%s2777 + $0x31] sm:$0xff]
        %v2790 = vld [vmem:[%s2777 + $0x41] sm:$0xff]
        %v2791 = vld [vmem:[%s2777 + $0x51] sm:$0xff]
        %v2792 = vld [vmem:[%s2777 + $0x61] sm:$0xff]
        %v2793 = vld [vmem:[%s2777 + $0x71] sm:$0xff]
        %v2794 = vld [vmem:[%s2777 + $0x2] sm:$0xff]
        %v2795 = vld [vmem:[%s2777 + $0x12] sm:$0xff]
        %v2796 = vld [vmem:[%s2777 + $0x22] sm:$0xff]
        %v2797 = vld [vmem:[%s2777 + $0x32] sm:$0xff]
        %v2798 = vld [vmem:[%s2777 + $0x42] sm:$0xff]
        %v2799 = vld [vmem:[%s2777 + $0x52] sm:$0xff]
        %v2800 = vld [vmem:[%s2777 + $0x62] sm:$0xff]
        %v2801 = vld [vmem:[%s2777 + $0x72] sm:$0xff]
        %v2802 = vld [vmem:[%s2777 + $0x3] sm:$0xff]
        %v2803 = vld [vmem:[%s2777 + $0x13] sm:$0xff]
        %v2804 = vld [vmem:[%s2777 + $0x23] sm:$0xff]
        %v2805 = vld [vmem:[%s2777 + $0x33] sm:$0xff]
        %v2806 = vld [vmem:[%s2777 + $0x43] sm:$0xff]
        %v2807 = vld [vmem:[%s2777 + $0x53] sm:$0xff]
        %v2808 = vld [vmem:[%s2777 + $0x63] sm:$0xff]
        %v2809 = vld [vmem:[%s2777 + $0x73] sm:$0xff]
        %v2810 = vld [vmem:[%s2777 + $0x4] sm:$0xff]
        %v2811 = vld [vmem:[%s2777 + $0x14] sm:$0xff]
        %v2812 = vld [vmem:[%s2777 + $0x24] sm:$0xff]
        %v2813 = vld [vmem:[%s2777 + $0x34] sm:$0xff]
        %v2814 = vld [vmem:[%s2777 + $0x44] sm:$0xff]
        %v2815 = vld [vmem:[%s2777 + $0x54] sm:$0xff]
        %v2816 = vld [vmem:[%s2777 + $0x64] sm:$0xff]
        %v2817 = vld [vmem:[%s2777 + $0x74] sm:$0xff]
        %v2818 = vld [vmem:[%s2728] sm:$0xff]
        %v2819 = vld [vmem:[%s2728 + $0x10] sm:$0xff]
        %v2820 = vld [vmem:[%s2728 + $0x20] sm:$0xff]
        %v2821 = vld [vmem:[%s2728 + $0x30] sm:$0xff]
        %v2822 = vld [vmem:[%s2728 + $0x40] sm:$0xff]
        %v2823 = vld [vmem:[%s2728 + $0x50] sm:$0xff]
        %v2824 = vld [vmem:[%s2728 + $0x60] sm:$0xff]
        %v2825 = vld [vmem:[%s2728 + $0x70] sm:$0xff]
        %v2826 = vld [vmem:[%s2728 + $0x1] sm:$0xff]
        %v2827 = vld [vmem:[%s2728 + $0x11] sm:$0xff]
        %v2828 = vld [vmem:[%s2728 + $0x21] sm:$0xff]
        %v2829 = vld [vmem:[%s2728 + $0x31] sm:$0xff]
        %v2830 = vld [vmem:[%s2728 + $0x41] sm:$0xff]
        %v2831 = vld [vmem:[%s2728 + $0x51] sm:$0xff]
        %v2832 = vld [vmem:[%s2728 + $0x61] sm:$0xff]
        %v2833 = vld [vmem:[%s2728 + $0x71] sm:$0xff]
        %v2834 = vld [vmem:[%s2728 + $0x2] sm:$0xff]
        %v2835 = vld [vmem:[%s2728 + $0x12] sm:$0xff]
        %v2836 = vld [vmem:[%s2728 + $0x22] sm:$0xff]
        %v2837 = vld [vmem:[%s2728 + $0x32] sm:$0xff]
        %v2838 = vld [vmem:[%s2728 + $0x42] sm:$0xff]
        %v2839 = vld [vmem:[%s2728 + $0x52] sm:$0xff]
        %v2840 = vld [vmem:[%s2728 + $0x62] sm:$0xff]
        %v2841 = vld [vmem:[%s2728 + $0x72] sm:$0xff]
        %v2842 = vld [vmem:[%s2728 + $0x3] sm:$0xff]
        %v2843 = vld [vmem:[%s2728 + $0x13] sm:$0xff]
        %v2844 = vld [vmem:[%s2728 + $0x23] sm:$0xff]
        %v2845 = vld [vmem:[%s2728 + $0x33] sm:$0xff]
        %v2846 = vld [vmem:[%s2728 + $0x43] sm:$0xff]
        %v2847 = vld [vmem:[%s2728 + $0x53] sm:$0xff]
        %v2848 = vld [vmem:[%s2728 + $0x63] sm:$0xff]
        %v2849 = vld [vmem:[%s2728 + $0x73] sm:$0xff]
        %v2850 = vld [vmem:[%s2728 + $0x4] sm:$0xff]
        %v2851 = vld [vmem:[%s2728 + $0x14] sm:$0xff]
        %v2852 = vld [vmem:[%s2728 + $0x24] sm:$0xff]
        %v2853 = vld [vmem:[%s2728 + $0x34] sm:$0xff]
        %v2854 = vld [vmem:[%s2728 + $0x44] sm:$0xff]
        %v2855 = vld [vmem:[%s2728 + $0x54] sm:$0xff]
        %v2856 = vld [vmem:[%s2728 + $0x64] sm:$0xff]
        %v2857 = vld [vmem:[%s2728 + $0x74] sm:$0xff]
        %s2858 = scalar_lea.vmem [#allocation3], 48
        %v2859 = vld [vmem:[%s2858] sm:$0xff]
        %v2860 = vld [vmem:[%s2858 + $0x10] sm:$0xff]
        %v2861 = vld [vmem:[%s2858 + $0x20] sm:$0xff]
        %v2862 = vld [vmem:[%s2858 + $0x30] sm:$0xff]
        %v2863 = vld [vmem:[%s2858 + $0x40] sm:$0xff]
        %v2864 = vld [vmem:[%s2858 + $0x50] sm:$0xff]
        %v2865 = vld [vmem:[%s2858 + $0x60] sm:$0xff]
        %v2866 = vld [vmem:[%s2858 + $0x70] sm:$0xff]
        %v2867 = vld [vmem:[%s2858 + $0x1] sm:$0xff]
        %v2868 = vld [vmem:[%s2858 + $0x11] sm:$0xff]
        %v2869 = vld [vmem:[%s2858 + $0x21] sm:$0xff]
        %v2870 = vld [vmem:[%s2858 + $0x31] sm:$0xff]
        %v2871 = vld [vmem:[%s2858 + $0x41] sm:$0xff]
        %v2872 = vld [vmem:[%s2858 + $0x51] sm:$0xff]
        %v2873 = vld [vmem:[%s2858 + $0x61] sm:$0xff]
        %v2874 = vld [vmem:[%s2858 + $0x71] sm:$0xff]
        %v2875 = vld [vmem:[%s2858 + $0x2] sm:$0xff]
        %v2876 = vld [vmem:[%s2858 + $0x12] sm:$0xff]
        %v2877 = vld [vmem:[%s2858 + $0x22] sm:$0xff]
        %v2878 = vld [vmem:[%s2858 + $0x32] sm:$0xff]
        %v2879 = vld [vmem:[%s2858 + $0x42] sm:$0xff]
        %v2880 = vld [vmem:[%s2858 + $0x52] sm:$0xff]
        %v2881 = vld [vmem:[%s2858 + $0x62] sm:$0xff]
        %v2882 = vld [vmem:[%s2858 + $0x72] sm:$0xff]
        %v2883 = vld [vmem:[%s2858 + $0x3] sm:$0xff]
        %v2884 = vld [vmem:[%s2858 + $0x13] sm:$0xff]
        %v2885 = vld [vmem:[%s2858 + $0x23] sm:$0xff]
        %v2886 = vld [vmem:[%s2858 + $0x33] sm:$0xff]
        %v2887 = vld [vmem:[%s2858 + $0x43] sm:$0xff]
        %v2888 = vld [vmem:[%s2858 + $0x53] sm:$0xff]
        %v2889 = vld [vmem:[%s2858 + $0x63] sm:$0xff]
        %v2890 = vld [vmem:[%s2858 + $0x73] sm:$0xff]
        %v2891 = vld [vmem:[%s2858 + $0x4] sm:$0xff]
        %v2892 = vld [vmem:[%s2858 + $0x14] sm:$0xff]
        %v2893 = vld [vmem:[%s2858 + $0x24] sm:$0xff]
        %v2894 = vld [vmem:[%s2858 + $0x34] sm:$0xff]
        %v2895 = vld [vmem:[%s2858 + $0x44] sm:$0xff]
        %v2896 = vld [vmem:[%s2858 + $0x54] sm:$0xff]
        %v2897 = vld [vmem:[%s2858 + $0x64] sm:$0xff]
        %v2898 = vld [vmem:[%s2858 + $0x74] sm:$0xff]
        %s2899 = scalar_lea.vmem [#allocation3], 64
        %v2900 = vld [vmem:[%s2899] sm:$0xff]
        %v2901 = vld [vmem:[%s2899 + $0x10] sm:$0xff]
        %v2902 = vld [vmem:[%s2899 + $0x20] sm:$0xff]
        %v2903 = vld [vmem:[%s2899 + $0x30] sm:$0xff]
        %v2904 = vld [vmem:[%s2899 + $0x40] sm:$0xff]
        %v2905 = vld [vmem:[%s2899 + $0x50] sm:$0xff]
        %v2906 = vld [vmem:[%s2899 + $0x60] sm:$0xff]
        %v2907 = vld [vmem:[%s2899 + $0x70] sm:$0xff]
        %v2908 = vld [vmem:[%s2899 + $0x1] sm:$0xff]
        %v2909 = vld [vmem:[%s2899 + $0x11] sm:$0xff]
        %v2910 = vld [vmem:[%s2899 + $0x21] sm:$0xff]
        %v2911 = vld [vmem:[%s2899 + $0x31] sm:$0xff]
        %v2912 = vld [vmem:[%s2899 + $0x41] sm:$0xff]
        %v2913 = vld [vmem:[%s2899 + $0x51] sm:$0xff]
        %v2914 = vld [vmem:[%s2899 + $0x61] sm:$0xff]
        %v2915 = vld [vmem:[%s2899 + $0x71] sm:$0xff]
        %v2916 = vld [vmem:[%s2899 + $0x2] sm:$0xff]
        %v2917 = vld [vmem:[%s2899 + $0x12] sm:$0xff]
        %v2918 = vld [vmem:[%s2899 + $0x22] sm:$0xff]
        %v2919 = vld [vmem:[%s2899 + $0x32] sm:$0xff]
        %v2920 = vld [vmem:[%s2899 + $0x42] sm:$0xff]
        %v2921 = vld [vmem:[%s2899 + $0x52] sm:$0xff]
        %v2922 = vld [vmem:[%s2899 + $0x62] sm:$0xff]
        %v2923 = vld [vmem:[%s2899 + $0x72] sm:$0xff]
        %v2924 = vld [vmem:[%s2899 + $0x3] sm:$0xff]
        %v2925 = vld [vmem:[%s2899 + $0x13] sm:$0xff]
        %v2926 = vld [vmem:[%s2899 + $0x23] sm:$0xff]
        %v2927 = vld [vmem:[%s2899 + $0x33] sm:$0xff]
        %v2928 = vld [vmem:[%s2899 + $0x43] sm:$0xff]
        %v2929 = vld [vmem:[%s2899 + $0x53] sm:$0xff]
        %v2930 = vld [vmem:[%s2899 + $0x63] sm:$0xff]
        %v2931 = vld [vmem:[%s2899 + $0x73] sm:$0xff]
        %v2932 = vld [vmem:[%s2899 + $0x4] sm:$0xff]
        %v2933 = vld [vmem:[%s2899 + $0x14] sm:$0xff]
        %v2934 = vld [vmem:[%s2899 + $0x24] sm:$0xff]
        %v2935 = vld [vmem:[%s2899 + $0x34] sm:$0xff]
        %v2936 = vld [vmem:[%s2899 + $0x44] sm:$0xff]
        %v2937 = vld [vmem:[%s2899 + $0x54] sm:$0xff]
        %v2938 = vld [vmem:[%s2899 + $0x64] sm:$0xff]
        %v2939 = vld [vmem:[%s2899 + $0x74] sm:$0xff]
        %2948 = vrot.lane.b32.xlu0 %v2745, 6
        %v2949 = vpop.permute.xlu0 %2948
        %2950 = vrot.lane.b32.xlu0 %v2746, 6
        %v2951 = vpop.permute.xlu0 %2950
        %2952 = vrot.lane.b32.xlu0 %v2747, 6
        %v2953 = vpop.permute.xlu0 %2952
        %2954 = vrot.lane.b32.xlu0 %v2748, 6
        %v2955 = vpop.permute.xlu0 %2954
        %2956 = vrot.lane.b32.xlu0 %v2749, 6
        %v2957 = vpop.permute.xlu0 %2956
        %2958 = vrot.lane.b32.xlu0 %v2750, 6
        %v2959 = vpop.permute.xlu0 %2958
        %2960 = vrot.lane.b32.xlu0 %v2751, 6
        %v2961 = vpop.permute.xlu0 %2960
        %2962 = vrot.lane.b32.xlu0 %v2752, 6
        %v2963 = vpop.permute.xlu0 %2962
        %2980 = vrot.lane.b32.xlu0 %v2753, 12
        %v2981 = vpop.permute.xlu0 %2980
        %2982 = vrot.lane.b32.xlu0 %v2754, 12
        %v2983 = vpop.permute.xlu0 %2982
        %2984 = vrot.lane.b32.xlu0 %v2755, 12
        %v2985 = vpop.permute.xlu0 %2984
        %2986 = vrot.lane.b32.xlu0 %v2756, 12
        %v2987 = vpop.permute.xlu0 %2986
        %2988 = vrot.lane.b32.xlu0 %v2757, 12
        %v2989 = vpop.permute.xlu0 %2988
        %2990 = vrot.lane.b32.xlu0 %v2758, 12
        %v2991 = vpop.permute.xlu0 %2990
        %2992 = vrot.lane.b32.xlu0 %v2759, 12
        %v2993 = vpop.permute.xlu0 %2992
        %2994 = vrot.lane.b32.xlu0 %v2760, 12
        %v2995 = vpop.permute.xlu0 %2994
        %3012 = vrot.lane.b32.xlu0 %v2761, 18
        %v3013 = vpop.permute.xlu0 %3012
        %3014 = vrot.lane.b32.xlu0 %v2762, 18
        %v3015 = vpop.permute.xlu0 %3014
        %3016 = vrot.lane.b32.xlu0 %v2763, 18
        %v3017 = vpop.permute.xlu0 %3016
        %3018 = vrot.lane.b32.xlu0 %v2764, 18
        %v3019 = vpop.permute.xlu0 %3018
        %3020 = vrot.lane.b32.xlu0 %v2765, 18
        %v3021 = vpop.permute.xlu0 %3020
        %3022 = vrot.lane.b32.xlu0 %v2766, 18
        %v3023 = vpop.permute.xlu0 %3022
        %3024 = vrot.lane.b32.xlu0 %v2767, 18
        %v3025 = vpop.permute.xlu0 %3024
        %3026 = vrot.lane.b32.xlu0 %v2768, 18
        %v3027 = vpop.permute.xlu0 %3026
        %3044 = vrot.lane.b32.xlu0 %v2769, 24
        %v3045 = vpop.permute.xlu0 %3044
        %3046 = vrot.lane.b32.xlu0 %v2770, 24
        %v3047 = vpop.permute.xlu0 %3046
        %3048 = vrot.lane.b32.xlu0 %v2771, 24
        %v3049 = vpop.permute.xlu0 %3048
        %3050 = vrot.lane.b32.xlu0 %v2772, 24
        %v3051 = vpop.permute.xlu0 %3050
        %3052 = vrot.lane.b32.xlu0 %v2773, 24
        %v3053 = vpop.permute.xlu0 %3052
        %3054 = vrot.lane.b32.xlu0 %v2774, 24
        %v3055 = vpop.permute.xlu0 %3054
        %3056 = vrot.lane.b32.xlu0 %v2775, 24
        %v3057 = vpop.permute.xlu0 %3056
        %3058 = vrot.lane.b32.xlu0 %v2776, 24
        %v3059 = vpop.permute.xlu0 %3058
        %3076 = vrot.lane.b32.xlu0 %v2778, 30
        %v3077 = vpop.permute.xlu0 %3076
        %3078 = vrot.lane.b32.xlu0 %v2779, 30
        %v3079 = vpop.permute.xlu0 %3078
        %3080 = vrot.lane.b32.xlu0 %v2780, 30
        %v3081 = vpop.permute.xlu0 %3080
        %3082 = vrot.lane.b32.xlu0 %v2781, 30
        %v3083 = vpop.permute.xlu0 %3082
        %3084 = vrot.lane.b32.xlu0 %v2782, 30
        %v3085 = vpop.permute.xlu0 %3084
        %3086 = vrot.lane.b32.xlu0 %v2783, 30
        %v3087 = vpop.permute.xlu0 %3086
        %3088 = vrot.lane.b32.xlu0 %v2784, 30
        %v3089 = vpop.permute.xlu0 %3088
        %3090 = vrot.lane.b32.xlu0 %v2785, 30
        %v3091 = vpop.permute.xlu0 %3090
        %3108 = vrot.lane.b32.xlu0 %v2786, 36
        %v3109 = vpop.permute.xlu0 %3108
        %3110 = vrot.lane.b32.xlu0 %v2787, 36
        %v3111 = vpop.permute.xlu0 %3110
        %3112 = vrot.lane.b32.xlu0 %v2788, 36
        %v3113 = vpop.permute.xlu0 %3112
        %3114 = vrot.lane.b32.xlu0 %v2789, 36
        %v3115 = vpop.permute.xlu0 %3114
        %3116 = vrot.lane.b32.xlu0 %v2790, 36
        %v3117 = vpop.permute.xlu0 %3116
        %3118 = vrot.lane.b32.xlu0 %v2791, 36
        %v3119 = vpop.permute.xlu0 %3118
        %3120 = vrot.lane.b32.xlu0 %v2792, 36
        %v3121 = vpop.permute.xlu0 %3120
        %3122 = vrot.lane.b32.xlu0 %v2793, 36
        %v3123 = vpop.permute.xlu0 %3122
        %3140 = vrot.lane.b32.xlu0 %v2794, 42
        %v3141 = vpop.permute.xlu0 %3140
        %3142 = vrot.lane.b32.xlu0 %v2795, 42
        %v3143 = vpop.permute.xlu0 %3142
        %3144 = vrot.lane.b32.xlu0 %v2796, 42
        %v3145 = vpop.permute.xlu0 %3144
        %3146 = vrot.lane.b32.xlu0 %v2797, 42
        %v3147 = vpop.permute.xlu0 %3146
        %3148 = vrot.lane.b32.xlu0 %v2798, 42
        %v3149 = vpop.permute.xlu0 %3148
        %3150 = vrot.lane.b32.xlu0 %v2799, 42
        %v3151 = vpop.permute.xlu0 %3150
        %3152 = vrot.lane.b32.xlu0 %v2800, 42
        %v3153 = vpop.permute.xlu0 %3152
        %3154 = vrot.lane.b32.xlu0 %v2801, 42
        %v3155 = vpop.permute.xlu0 %3154
        %3172 = vrot.lane.b32.xlu0 %v2802, 48
        %v3173 = vpop.permute.xlu0 %3172
        %3174 = vrot.lane.b32.xlu0 %v2803, 48
        %v3175 = vpop.permute.xlu0 %3174
        %3176 = vrot.lane.b32.xlu0 %v2804, 48
        %v3177 = vpop.permute.xlu0 %3176
        %3178 = vrot.lane.b32.xlu0 %v2805, 48
        %v3179 = vpop.permute.xlu0 %3178
        %3180 = vrot.lane.b32.xlu0 %v2806, 48
        %v3181 = vpop.permute.xlu0 %3180
        %3182 = vrot.lane.b32.xlu0 %v2807, 48
        %v3183 = vpop.permute.xlu0 %3182
        %3184 = vrot.lane.b32.xlu0 %v2808, 48
        %v3185 = vpop.permute.xlu0 %3184
        %3186 = vrot.lane.b32.xlu0 %v2809, 48
        %v3187 = vpop.permute.xlu0 %3186
        %3204 = vrot.lane.b32.xlu0 %v2810, 54
        %v3205 = vpop.permute.xlu0 %3204
        %3206 = vrot.lane.b32.xlu0 %v2811, 54
        %v3207 = vpop.permute.xlu0 %3206
        %3208 = vrot.lane.b32.xlu0 %v2812, 54
        %v3209 = vpop.permute.xlu0 %3208
        %3210 = vrot.lane.b32.xlu0 %v2813, 54
        %v3211 = vpop.permute.xlu0 %3210
        %3212 = vrot.lane.b32.xlu0 %v2814, 54
        %v3213 = vpop.permute.xlu0 %3212
        %3214 = vrot.lane.b32.xlu0 %v2815, 54
        %v3215 = vpop.permute.xlu0 %3214
        %3216 = vrot.lane.b32.xlu0 %v2816, 54
        %v3217 = vpop.permute.xlu0 %3216
        %3218 = vrot.lane.b32.xlu0 %v2817, 54
        %v3219 = vpop.permute.xlu0 %3218
        %3236 = vrot.lane.b32.xlu0 %v2818, 60
        %v3237 = vpop.permute.xlu0 %3236
        %3238 = vrot.lane.b32.xlu0 %v2819, 60
        %v3239 = vpop.permute.xlu0 %3238
        %3240 = vrot.lane.b32.xlu0 %v2820, 60
        %v3241 = vpop.permute.xlu0 %3240
        %3242 = vrot.lane.b32.xlu0 %v2821, 60
        %v3243 = vpop.permute.xlu0 %3242
        %3244 = vrot.lane.b32.xlu0 %v2822, 60
        %v3245 = vpop.permute.xlu0 %3244
        %3246 = vrot.lane.b32.xlu0 %v2823, 60
        %v3247 = vpop.permute.xlu0 %3246
        %3248 = vrot.lane.b32.xlu0 %v2824, 60
        %v3249 = vpop.permute.xlu0 %3248
        %3250 = vrot.lane.b32.xlu0 %v2825, 60
        %v3251 = vpop.permute.xlu0 %3250
        %3268 = vrot.lane.b32.xlu0 %v2826, 66
        %v3269 = vpop.permute.xlu0 %3268
        %3270 = vrot.lane.b32.xlu0 %v2827, 66
        %v3271 = vpop.permute.xlu0 %3270
        %3272 = vrot.lane.b32.xlu0 %v2828, 66
        %v3273 = vpop.permute.xlu0 %3272
        %3274 = vrot.lane.b32.xlu0 %v2829, 66
        %v3275 = vpop.permute.xlu0 %3274
        %3276 = vrot.lane.b32.xlu0 %v2830, 66
        %v3277 = vpop.permute.xlu0 %3276
        %3278 = vrot.lane.b32.xlu0 %v2831, 66
        %v3279 = vpop.permute.xlu0 %3278
        %3280 = vrot.lane.b32.xlu0 %v2832, 66
        %v3281 = vpop.permute.xlu0 %3280
        %3282 = vrot.lane.b32.xlu0 %v2833, 66
        %v3283 = vpop.permute.xlu0 %3282
        %3300 = vrot.lane.b32.xlu0 %v2834, 72
        %v3301 = vpop.permute.xlu0 %3300
        %3302 = vrot.lane.b32.xlu0 %v2835, 72
        %v3303 = vpop.permute.xlu0 %3302
        %3304 = vrot.lane.b32.xlu0 %v2836, 72
        %v3305 = vpop.permute.xlu0 %3304
        %3306 = vrot.lane.b32.xlu0 %v2837, 72
        %v3307 = vpop.permute.xlu0 %3306
        %3308 = vrot.lane.b32.xlu0 %v2838, 72
        %v3309 = vpop.permute.xlu0 %3308
        %3310 = vrot.lane.b32.xlu0 %v2839, 72
        %v3311 = vpop.permute.xlu0 %3310
        %3312 = vrot.lane.b32.xlu0 %v2840, 72
        %v3313 = vpop.permute.xlu0 %3312
        %3314 = vrot.lane.b32.xlu0 %v2841, 72
        %v3315 = vpop.permute.xlu0 %3314
        %3332 = vrot.lane.b32.xlu0 %v2842, 78
        %v3333 = vpop.permute.xlu0 %3332
        %3334 = vrot.lane.b32.xlu0 %v2843, 78
        %v3335 = vpop.permute.xlu0 %3334
        %3336 = vrot.lane.b32.xlu0 %v2844, 78
        %v3337 = vpop.permute.xlu0 %3336
        %3338 = vrot.lane.b32.xlu0 %v2845, 78
        %v3339 = vpop.permute.xlu0 %3338
        %3340 = vrot.lane.b32.xlu0 %v2846, 78
        %v3341 = vpop.permute.xlu0 %3340
        %3342 = vrot.lane.b32.xlu0 %v2847, 78
        %v3343 = vpop.permute.xlu0 %3342
        %3344 = vrot.lane.b32.xlu0 %v2848, 78
        %v3345 = vpop.permute.xlu0 %3344
        %3346 = vrot.lane.b32.xlu0 %v2849, 78
        %v3347 = vpop.permute.xlu0 %3346
        %3364 = vrot.lane.b32.xlu0 %v2850, 84
        %v3365 = vpop.permute.xlu0 %3364
        %3366 = vrot.lane.b32.xlu0 %v2851, 84
        %v3367 = vpop.permute.xlu0 %3366
        %3368 = vrot.lane.b32.xlu0 %v2852, 84
        %v3369 = vpop.permute.xlu0 %3368
        %3370 = vrot.lane.b32.xlu0 %v2853, 84
        %v3371 = vpop.permute.xlu0 %3370
        %3372 = vrot.lane.b32.xlu0 %v2854, 84
        %v3373 = vpop.permute.xlu0 %3372
        %3374 = vrot.lane.b32.xlu0 %v2855, 84
        %v3375 = vpop.permute.xlu0 %3374
        %3376 = vrot.lane.b32.xlu0 %v2856, 84
        %v3377 = vpop.permute.xlu0 %3376
        %3378 = vrot.lane.b32.xlu0 %v2857, 84
        %v3379 = vpop.permute.xlu0 %3378
        %3396 = vrot.lane.b32.xlu0 %v2859, 90
        %v3397 = vpop.permute.xlu0 %3396
        %3398 = vrot.lane.b32.xlu0 %v2860, 90
        %v3399 = vpop.permute.xlu0 %3398
        %3400 = vrot.lane.b32.xlu0 %v2861, 90
        %v3401 = vpop.permute.xlu0 %3400
        %3402 = vrot.lane.b32.xlu0 %v2862, 90
        %v3403 = vpop.permute.xlu0 %3402
        %3404 = vrot.lane.b32.xlu0 %v2863, 90
        %v3405 = vpop.permute.xlu0 %3404
        %3406 = vrot.lane.b32.xlu0 %v2864, 90
        %v3407 = vpop.permute.xlu0 %3406
        %3408 = vrot.lane.b32.xlu0 %v2865, 90
        %v3409 = vpop.permute.xlu0 %3408
        %3410 = vrot.lane.b32.xlu0 %v2866, 90
        %v3411 = vpop.permute.xlu0 %3410
        %v3420 = vsel %vm2702, %v2737, %v2949
        %v3421 = vsel %vm2702, %v2738, %v2951
        %v3422 = vsel %vm2702, %v2739, %v2953
        %v3423 = vsel %vm2702, %v2740, %v2955
        %v3424 = vsel %vm2702, %v2741, %v2957
        %v3425 = vsel %vm2702, %v2742, %v2959
        %v3426 = vsel %vm2702, %v2743, %v2961
        %v3427 = vsel %vm2702, %v2744, %v2963
        %v3428 = vsel %vm1582, %v3420, %v2981
        %v3429 = vsel %vm1582, %v3421, %v2983
        %v3430 = vsel %vm1582, %v3422, %v2985
        %v3431 = vsel %vm1582, %v3423, %v2987
        %v3432 = vsel %vm1582, %v3424, %v2989
        %v3433 = vsel %vm1582, %v3425, %v2991
        %v3434 = vsel %vm1582, %v3426, %v2993
        %v3435 = vsel %vm1582, %v3427, %v2995
        %vm3436 = vcmask 146432
        %v3437 = vsel %vm3436, %v3428, %v3013
        %v3438 = vsel %vm3436, %v3429, %v3015
        %v3439 = vsel %vm3436, %v3430, %v3017
        %v3440 = vsel %vm3436, %v3431, %v3019
        %v3441 = vsel %vm3436, %v3432, %v3021
        %v3442 = vsel %vm3436, %v3433, %v3023
        %v3443 = vsel %vm3436, %v3434, %v3025
        %v3444 = vsel %vm3436, %v3435, %v3027
        %v3445 = vsel %vm1609, %v3437, %v3045
        %v3446 = vsel %vm1609, %v3438, %v3047
        %v3447 = vsel %vm1609, %v3439, %v3049
        %v3448 = vsel %vm1609, %v3440, %v3051
        %v3449 = vsel %vm1609, %v3441, %v3053
        %v3450 = vsel %vm1609, %v3442, %v3055
        %v3451 = vsel %vm1609, %v3443, %v3057
        %v3452 = vsel %vm1609, %v3444, %v3059
        %vm3453 = vcmask 244736
        %v3454 = vsel %vm3453, %v3445, %v3077
        %v3455 = vsel %vm3453, %v3446, %v3079
        %v3456 = vsel %vm3453, %v3447, %v3081
        %v3457 = vsel %vm3453, %v3448, %v3083
        %v3458 = vsel %vm3453, %v3449, %v3085
        %v3459 = vsel %vm3453, %v3450, %v3087
        %v3460 = vsel %vm3453, %v3451, %v3089
        %v3461 = vsel %vm3453, %v3452, %v3091
        %v3462 = vsel %vm1636, %v3454, %v3109
        %v3463 = vsel %vm1636, %v3455, %v3111
        %v3464 = vsel %vm1636, %v3456, %v3113
        %v3465 = vsel %vm1636, %v3457, %v3115
        %v3466 = vsel %vm1636, %v3458, %v3117
        %v3467 = vsel %vm1636, %v3459, %v3119
        %v3468 = vsel %vm1636, %v3460, %v3121
        %v3469 = vsel %vm1636, %v3461, %v3123
        %vm3470 = vcmask 343040
        %v3471 = vsel %vm3470, %v3462, %v3141
        %v3472 = vsel %vm3470, %v3463, %v3143
        %v3473 = vsel %vm3470, %v3464, %v3145
        %v3474 = vsel %vm3470, %v3465, %v3147
        %v3475 = vsel %vm3470, %v3466, %v3149
        %v3476 = vsel %vm3470, %v3467, %v3151
        %v3477 = vsel %vm3470, %v3468, %v3153
        %v3478 = vsel %vm3470, %v3469, %v3155
        %v3479 = vsel %vm1663, %v3471, %v3173
        %v3480 = vsel %vm1663, %v3472, %v3175
        %v3481 = vsel %vm1663, %v3473, %v3177
        %v3482 = vsel %vm1663, %v3474, %v3179
        %v3483 = vsel %vm1663, %v3475, %v3181
        %v3484 = vsel %vm1663, %v3476, %v3183
        %v3485 = vsel %vm1663, %v3477, %v3185
        %v3486 = vsel %vm1663, %v3478, %v3187
        %vm3487 = vcmask 441344
        %v3488 = vsel %vm3487, %v3479, %v3205
        %v3489 = vsel %vm3487, %v3480, %v3207
        %v3490 = vsel %vm3487, %v3481, %v3209
        %v3491 = vsel %vm3487, %v3482, %v3211
        %v3492 = vsel %vm3487, %v3483, %v3213
        %v3493 = vsel %vm3487, %v3484, %v3215
        %v3494 = vsel %vm3487, %v3485, %v3217
        %v3495 = vsel %vm3487, %v3486, %v3219
        %v3496 = vsel %vm1690, %v3488, %v3237
        %v3497 = vsel %vm1690, %v3489, %v3239
        %v3498 = vsel %vm1690, %v3490, %v3241
        %v3499 = vsel %vm1690, %v3491, %v3243
        %v3500 = vsel %vm1690, %v3492, %v3245
        %v3501 = vsel %vm1690, %v3493, %v3247
        %v3502 = vsel %vm1690, %v3494, %v3249
        %v3503 = vsel %vm1690, %v3495, %v3251
        %vm3504 = vcmask 539648
        %v3505 = vsel %vm3504, %v3496, %v3269
        %v3506 = vsel %vm3504, %v3497, %v3271
        %v3507 = vsel %vm3504, %v3498, %v3273
        %v3508 = vsel %vm3504, %v3499, %v3275
        %v3509 = vsel %vm3504, %v3500, %v3277
        %v3510 = vsel %vm3504, %v3501, %v3279
        %v3511 = vsel %vm3504, %v3502, %v3281
        %v3512 = vsel %vm3504, %v3503, %v3283
        %vm3513 = vcmask 588800
        %v3514 = vsel %vm3513, %v3505, %v3301
        %v3515 = vsel %vm3513, %v3506, %v3303
        %v3516 = vsel %vm3513, %v3507, %v3305
        %v3517 = vsel %vm3513, %v3508, %v3307
        %v3518 = vsel %vm3513, %v3509, %v3309
        %v3519 = vsel %vm3513, %v3510, %v3311
        %v3520 = vsel %vm3513, %v3511, %v3313
        %v3521 = vsel %vm3513, %v3512, %v3315
        %vm3522 = vcmask 637952
        %v3523 = vsel %vm3522, %v3514, %v3333
        %v3524 = vsel %vm3522, %v3515, %v3335
        %v3525 = vsel %vm3522, %v3516, %v3337
        %v3526 = vsel %vm3522, %v3517, %v3339
        %v3527 = vsel %vm3522, %v3518, %v3341
        %v3528 = vsel %vm3522, %v3519, %v3343
        %v3529 = vsel %vm3522, %v3520, %v3345
        %v3530 = vsel %vm3522, %v3521, %v3347
        %vm3531 = vcmask 687104
        %v3532 = vsel %vm3531, %v3523, %v3365
        %v3533 = vsel %vm3531, %v3524, %v3367
        %v3534 = vsel %vm3531, %v3525, %v3369
        %v3535 = vsel %vm3531, %v3526, %v3371
        %v3536 = vsel %vm3531, %v3527, %v3373
        %v3537 = vsel %vm3531, %v3528, %v3375
        %v3538 = vsel %vm3531, %v3529, %v3377
        %v3539 = vsel %vm3531, %v3530, %v3379
        %vm3540 = vcmask 736256
        %v3541 = vsel %vm3540, %v3532, %v3397
        %v3542 = vsel %vm3540, %v3533, %v3399
        %v3543 = vsel %vm3540, %v3534, %v3401
        %v3544 = vsel %vm3540, %v3535, %v3403
        %v3545 = vsel %vm3540, %v3536, %v3405
        %v3546 = vsel %vm3540, %v3537, %v3407
        %v3547 = vsel %vm3540, %v3538, %v3409
        %v3548 = vsel %vm3540, %v3539, %v3411
        %3557 = vrot.lane.b32.xlu0 %v2875, 6
        %v3558 = vpop.permute.xlu0 %3557
        %3559 = vrot.lane.b32.xlu0 %v2876, 6
        %v3560 = vpop.permute.xlu0 %3559
        %3561 = vrot.lane.b32.xlu0 %v2877, 6
        %v3562 = vpop.permute.xlu0 %3561
        %3563 = vrot.lane.b32.xlu0 %v2878, 6
        %v3564 = vpop.permute.xlu0 %3563
        %3565 = vrot.lane.b32.xlu0 %v2879, 6
        %v3566 = vpop.permute.xlu0 %3565
        %3567 = vrot.lane.b32.xlu0 %v2880, 6
        %v3568 = vpop.permute.xlu0 %3567
        %3569 = vrot.lane.b32.xlu0 %v2881, 6
        %v3570 = vpop.permute.xlu0 %3569
        %3571 = vrot.lane.b32.xlu0 %v2882, 6
        %v3572 = vpop.permute.xlu0 %3571
        %3589 = vrot.lane.b32.xlu0 %v2883, 12
        %v3590 = vpop.permute.xlu0 %3589
        %3591 = vrot.lane.b32.xlu0 %v2884, 12
        %v3592 = vpop.permute.xlu0 %3591
        %3593 = vrot.lane.b32.xlu0 %v2885, 12
        %v3594 = vpop.permute.xlu0 %3593
        %3595 = vrot.lane.b32.xlu0 %v2886, 12
        %v3596 = vpop.permute.xlu0 %3595
        %3597 = vrot.lane.b32.xlu0 %v2887, 12
        %v3598 = vpop.permute.xlu0 %3597
        %3599 = vrot.lane.b32.xlu0 %v2888, 12
        %v3600 = vpop.permute.xlu0 %3599
        %3601 = vrot.lane.b32.xlu0 %v2889, 12
        %v3602 = vpop.permute.xlu0 %3601
        %3603 = vrot.lane.b32.xlu0 %v2890, 12
        %v3604 = vpop.permute.xlu0 %3603
        %3621 = vrot.lane.b32.xlu0 %v2891, 18
        %v3622 = vpop.permute.xlu0 %3621
        %3623 = vrot.lane.b32.xlu0 %v2892, 18
        %v3624 = vpop.permute.xlu0 %3623
        %3625 = vrot.lane.b32.xlu0 %v2893, 18
        %v3626 = vpop.permute.xlu0 %3625
        %3627 = vrot.lane.b32.xlu0 %v2894, 18
        %v3628 = vpop.permute.xlu0 %3627
        %3629 = vrot.lane.b32.xlu0 %v2895, 18
        %v3630 = vpop.permute.xlu0 %3629
        %3631 = vrot.lane.b32.xlu0 %v2896, 18
        %v3632 = vpop.permute.xlu0 %3631
        %3633 = vrot.lane.b32.xlu0 %v2897, 18
        %v3634 = vpop.permute.xlu0 %3633
        %3635 = vrot.lane.b32.xlu0 %v2898, 18
        %v3636 = vpop.permute.xlu0 %3635
        %3653 = vrot.lane.b32.xlu0 %v2900, 24
        %v3654 = vpop.permute.xlu0 %3653
        %3655 = vrot.lane.b32.xlu0 %v2901, 24
        %v3656 = vpop.permute.xlu0 %3655
        %3657 = vrot.lane.b32.xlu0 %v2902, 24
        %v3658 = vpop.permute.xlu0 %3657
        %3659 = vrot.lane.b32.xlu0 %v2903, 24
        %v3660 = vpop.permute.xlu0 %3659
        %3661 = vrot.lane.b32.xlu0 %v2904, 24
        %v3662 = vpop.permute.xlu0 %3661
        %3663 = vrot.lane.b32.xlu0 %v2905, 24
        %v3664 = vpop.permute.xlu0 %3663
        %3665 = vrot.lane.b32.xlu0 %v2906, 24
        %v3666 = vpop.permute.xlu0 %3665
        %3667 = vrot.lane.b32.xlu0 %v2907, 24
        %v3668 = vpop.permute.xlu0 %3667
        %3685 = vrot.lane.b32.xlu0 %v2908, 30
        %v3686 = vpop.permute.xlu0 %3685
        %3687 = vrot.lane.b32.xlu0 %v2909, 30
        %v3688 = vpop.permute.xlu0 %3687
        %3689 = vrot.lane.b32.xlu0 %v2910, 30
        %v3690 = vpop.permute.xlu0 %3689
        %3691 = vrot.lane.b32.xlu0 %v2911, 30
        %v3692 = vpop.permute.xlu0 %3691
        %3693 = vrot.lane.b32.xlu0 %v2912, 30
        %v3694 = vpop.permute.xlu0 %3693
        %3695 = vrot.lane.b32.xlu0 %v2913, 30
        %v3696 = vpop.permute.xlu0 %3695
        %3697 = vrot.lane.b32.xlu0 %v2914, 30
        %v3698 = vpop.permute.xlu0 %3697
        %3699 = vrot.lane.b32.xlu0 %v2915, 30
        %v3700 = vpop.permute.xlu0 %3699
        %3717 = vrot.lane.b32.xlu0 %v2916, 36
        %v3718 = vpop.permute.xlu0 %3717
        %3719 = vrot.lane.b32.xlu0 %v2917, 36
        %v3720 = vpop.permute.xlu0 %3719
        %3721 = vrot.lane.b32.xlu0 %v2918, 36
        %v3722 = vpop.permute.xlu0 %3721
        %3723 = vrot.lane.b32.xlu0 %v2919, 36
        %v3724 = vpop.permute.xlu0 %3723
        %3725 = vrot.lane.b32.xlu0 %v2920, 36
        %v3726 = vpop.permute.xlu0 %3725
        %3727 = vrot.lane.b32.xlu0 %v2921, 36
        %v3728 = vpop.permute.xlu0 %3727
        %3729 = vrot.lane.b32.xlu0 %v2922, 36
        %v3730 = vpop.permute.xlu0 %3729
        %3731 = vrot.lane.b32.xlu0 %v2923, 36
        %v3732 = vpop.permute.xlu0 %3731
        %3749 = vrot.lane.b32.xlu0 %v2924, 42
        %v3750 = vpop.permute.xlu0 %3749
        %3751 = vrot.lane.b32.xlu0 %v2925, 42
        %v3752 = vpop.permute.xlu0 %3751
        %3753 = vrot.lane.b32.xlu0 %v2926, 42
        %v3754 = vpop.permute.xlu0 %3753
        %3755 = vrot.lane.b32.xlu0 %v2927, 42
        %v3756 = vpop.permute.xlu0 %3755
        %3757 = vrot.lane.b32.xlu0 %v2928, 42
        %v3758 = vpop.permute.xlu0 %3757
        %3759 = vrot.lane.b32.xlu0 %v2929, 42
        %v3760 = vpop.permute.xlu0 %3759
        %3761 = vrot.lane.b32.xlu0 %v2930, 42
        %v3762 = vpop.permute.xlu0 %3761
        %3763 = vrot.lane.b32.xlu0 %v2931, 42
        %v3764 = vpop.permute.xlu0 %3763
        %3781 = vrot.lane.b32.xlu0 %v2932, 48
        %v3782 = vpop.permute.xlu0 %3781
        %3783 = vrot.lane.b32.xlu0 %v2933, 48
        %v3784 = vpop.permute.xlu0 %3783
        %3785 = vrot.lane.b32.xlu0 %v2934, 48
        %v3786 = vpop.permute.xlu0 %3785
        %3787 = vrot.lane.b32.xlu0 %v2935, 48
        %v3788 = vpop.permute.xlu0 %3787
        %3789 = vrot.lane.b32.xlu0 %v2936, 48
        %v3790 = vpop.permute.xlu0 %3789
        %3791 = vrot.lane.b32.xlu0 %v2937, 48
        %v3792 = vpop.permute.xlu0 %3791
        %3793 = vrot.lane.b32.xlu0 %v2938, 48
        %v3794 = vpop.permute.xlu0 %3793
        %3795 = vrot.lane.b32.xlu0 %v2939, 48
        %v3796 = vpop.permute.xlu0 %3795
        %v3805 = vsel %vm2702, %v2867, %v3558
        %v3806 = vsel %vm2702, %v2868, %v3560
        %v3807 = vsel %vm2702, %v2869, %v3562
        %v3808 = vsel %vm2702, %v2870, %v3564
        %v3809 = vsel %vm2702, %v2871, %v3566
        %v3810 = vsel %vm2702, %v2872, %v3568
        %v3811 = vsel %vm2702, %v2873, %v3570
        %v3812 = vsel %vm2702, %v2874, %v3572
        %v3813 = vsel %vm1582, %v3805, %v3590
        %v3814 = vsel %vm1582, %v3806, %v3592
        %v3815 = vsel %vm1582, %v3807, %v3594
        %v3816 = vsel %vm1582, %v3808, %v3596
        %v3817 = vsel %vm1582, %v3809, %v3598
        %v3818 = vsel %vm1582, %v3810, %v3600
        %v3819 = vsel %vm1582, %v3811, %v3602
        %v3820 = vsel %vm1582, %v3812, %v3604
        %v3821 = vsel %vm3436, %v3813, %v3622
        %v3822 = vsel %vm3436, %v3814, %v3624
        %v3823 = vsel %vm3436, %v3815, %v3626
        %v3824 = vsel %vm3436, %v3816, %v3628
        %v3825 = vsel %vm3436, %v3817, %v3630
        %v3826 = vsel %vm3436, %v3818, %v3632
        %v3827 = vsel %vm3436, %v3819, %v3634
        %v3828 = vsel %vm3436, %v3820, %v3636
        %v3829 = vsel %vm1609, %v3821, %v3654
        %v3830 = vsel %vm1609, %v3822, %v3656
        %v3831 = vsel %vm1609, %v3823, %v3658
        %v3832 = vsel %vm1609, %v3824, %v3660
        %v3833 = vsel %vm1609, %v3825, %v3662
        %v3834 = vsel %vm1609, %v3826, %v3664
        %v3835 = vsel %vm1609, %v3827, %v3666
        %v3836 = vsel %vm1609, %v3828, %v3668
        %v3837 = vsel %vm3453, %v3829, %v3686
        %v3838 = vsel %vm3453, %v3830, %v3688
        %v3839 = vsel %vm3453, %v3831, %v3690
        %v3840 = vsel %vm3453, %v3832, %v3692
        %v3841 = vsel %vm3453, %v3833, %v3694
        %v3842 = vsel %vm3453, %v3834, %v3696
        %v3843 = vsel %vm3453, %v3835, %v3698
        %v3844 = vsel %vm3453, %v3836, %v3700
        %v3845 = vsel %vm1636, %v3837, %v3718
        %v3846 = vsel %vm1636, %v3838, %v3720
        %v3847 = vsel %vm1636, %v3839, %v3722
        %v3848 = vsel %vm1636, %v3840, %v3724
        %v3849 = vsel %vm1636, %v3841, %v3726
        %v3850 = vsel %vm1636, %v3842, %v3728
        %v3851 = vsel %vm1636, %v3843, %v3730
        %v3852 = vsel %vm1636, %v3844, %v3732
        %v3853 = vsel %vm3470, %v3845, %v3750
        %v3854 = vsel %vm3470, %v3846, %v3752
        %v3855 = vsel %vm3470, %v3847, %v3754
        %v3856 = vsel %vm3470, %v3848, %v3756
        %v3857 = vsel %vm3470, %v3849, %v3758
        %v3858 = vsel %vm3470, %v3850, %v3760
        %v3859 = vsel %vm3470, %v3851, %v3762
        %v3860 = vsel %vm3470, %v3852, %v3764
        %v3861 = vsel %vm1663, %v3853, %v3782
        %v3862 = vsel %vm1663, %v3854, %v3784
        %v3863 = vsel %vm1663, %v3855, %v3786
        %v3864 = vsel %vm1663, %v3856, %v3788
        %v3865 = vsel %vm1663, %v3857, %v3790
        %v3866 = vsel %vm1663, %v3858, %v3792
        %v3867 = vsel %vm1663, %v3859, %v3794
        %v3868 = vsel %vm1663, %v3860, %v3796
        %3877 = vrot.lane.b32.xlu0 %v3861, 96
        %v3878 = vpop.permute.xlu0 %3877
        %3879 = vrot.lane.b32.xlu0 %v3862, 96
        %v3880 = vpop.permute.xlu0 %3879
        %3881 = vrot.lane.b32.xlu0 %v3863, 96
        %v3882 = vpop.permute.xlu0 %3881
        %3883 = vrot.lane.b32.xlu0 %v3864, 96
        %v3884 = vpop.permute.xlu0 %3883
        %3885 = vrot.lane.b32.xlu0 %v3865, 96
        %v3886 = vpop.permute.xlu0 %3885
        %3887 = vrot.lane.b32.xlu0 %v3866, 96
        %v3888 = vpop.permute.xlu0 %3887
        %3889 = vrot.lane.b32.xlu0 %v3867, 96
        %v3890 = vpop.permute.xlu0 %3889
        %3891 = vrot.lane.b32.xlu0 %v3868, 96
        %v3892 = vpop.permute.xlu0 %3891
        %vm3901 = vcmask 785408
        %v3902 = vsel %vm3901, %v3541, %v3878
        %v3903 = vsel %vm3901, %v3542, %v3880
        %v3904 = vsel %vm3901, %v3543, %v3882
        %v3905 = vsel %vm3901, %v3544, %v3884
        %v3906 = vsel %vm3901, %v3545, %v3886
        %v3907 = vsel %vm3901, %v3546, %v3888
        %v3908 = vsel %vm3901, %v3547, %v3890
        %v3909 = vsel %vm3901, %v3548, %v3892
        %v3910 = vld [vmem:[%s3] sm:$0xff]
        %v3911 = vld [vmem:[%s3 + $0x8] sm:$0xff]
        %v3912 = vld [vmem:[%s3 + $0x10] sm:$0xff]
        %v3913 = vld [vmem:[%s3 + $0x18] sm:$0xff]
        %v3914 = vld [vmem:[%s3 + $0x20] sm:$0xff]
        %v3915 = vld [vmem:[%s3 + $0x28] sm:$0xff]
        %v3916 = vld [vmem:[%s3 + $0x30] sm:$0xff]
        %v3917 = vld [vmem:[%s3 + $0x38] sm:$0xff]
        %v3918 = vld [vmem:[%s3 + $0x40] sm:$0xff]
        %v3919 = vld [vmem:[%s3 + $0x48] sm:$0xff]
        %v3920 = vld [vmem:[%s3 + $0x50] sm:$0xff]
        %v3921 = vld [vmem:[%s3 + $0x58] sm:$0xff]
        %v3922 = vld [vmem:[%s3 + $0x60] sm:$0xff]
        %v3923 = vld [vmem:[%s3 + $0x68] sm:$0xff]
        %v3924 = vld [vmem:[%s3 + $0x70] sm:$0xff]
        %v3925 = vld [vmem:[%s3 + $0x78] sm:$0xff]
        %v3926 = vld [vmem:[%s3 + $0x80] sm:$0xff]
        %v3927 = vld [vmem:[%s3 + $0x88] sm:$0xff]
        %v3928 = vld [vmem:[%s3 + $0x90] sm:$0x3f]
        %v3929 = vld [vmem:[%s4] sm:$0x1]
        %v3931 = vlaneseq
        %v3932 = vshrl.u32 %v3931, 7
        %v3933 = vsub.s32 0, %v3932
        %v3934 = vrot.slane %v3929, %v3933
        %vm3936 = vcmask 179200
        %v3937 = vsel %vm3936, %v3878, 0
        %v3939 = vsel %vm3936, %v3880, 0
        %v3941 = vsel %vm3936, %v3882, 0
        %v3943 = vsel %vm3936, %v3884, 0
        %v3945 = vsel %vm3936, %v3886, 0
        %v3947 = vsel %vm3936, %v3888, 0
        %v3949 = vsel %vm3936, %v3890, 0
        %v3951 = vsel %vm3936, %v3892, 0
        %vm3953 = vcmask 1045504
        %v3955 = vsel %vm3953, %v3928, 0
        %3957 = vmatprep.subr.mxu0 0.0
        %3958 = vmatpush1.msra.mxu0 %v3925
        %3959 = vmatprep.subr.mxu0 0.0
        %3960 = vmatpush1.msra.mxu0 %v3924
        %3961 = vmatprep.subr.mxu0 0.0
        %3962 = vmatpush1.msra.mxu0 %v3923
        %3963 = vmatprep.subr.mxu0 0.0
        %3964 = vmatpush1.msra.mxu0 %v3922
        %3965 = vmatprep.subr.mxu0 0.0
        %3966 = vmatpush1.msra.mxu0 %v3921
        %3967 = vmatprep.subr.mxu0 0.0
        %3968 = vmatpush1.msra.mxu0 %v3920
        %3969 = vmatprep.subr.mxu0 0.0
        %3970 = vmatpush1.msra.mxu0 %v3919
        %3971 = vmatprep.subr.mxu0 0.0
        %3972 = vmatpush1.msra.mxu0 %v3918
        %3973 = vmatprep.subr.mxu0 0.0
        %3974 = vmatpush1.msra.mxu0 %v3917
        %3975 = vmatprep.subr.mxu0 0.0
        %3976 = vmatpush1.msra.mxu0 %v3916
        %3977 = vmatprep.subr.mxu0 0.0
        %3978 = vmatpush1.msra.mxu0 %v3915
        %3979 = vmatprep.subr.mxu0 0.0
        %3980 = vmatpush1.msra.mxu0 %v3914
        %3981 = vmatprep.subr.mxu0 0.0
        %3982 = vmatpush1.msra.mxu0 %v3913
        %3983 = vmatprep.subr.mxu0 0.0
        %3984 = vmatpush1.msra.mxu0 %v3912
        %3985 = vmatprep.subr.mxu0 0.0
        %3986 = vmatpush1.msra.mxu0 %v3911
        %3987 = vmatprep.subr.mxu0 0.0
        %3988 = vmatpush1.msra.mxu0 %v3910
        %3989 = vmatprep.subr.mxu0 0.0
        %3990 = vmatpush2.msra.mxu0 0.0
        %3991 = vmatprep.subr.mxu0 0.0
        %3992 = vmatpush2.msra.mxu0 0.0
        %3993 = vmatprep.subr.mxu0 0.0
        %3994 = vmatpush2.msra.mxu0 0.0
        %3995 = vmatprep.subr.mxu0 0.0
        %3996 = vmatpush2.msra.mxu0 0.0
        %3997 = vmatprep.subr.mxu0 0.0
        %3998 = vmatpush2.msra.mxu0 0.0
        %3999 = vmatprep.subr.mxu0 0.0
        %4000 = vmatpush2.msra.mxu0 0.0
        %4001 = vmatprep.subr.mxu0 0.0
        %4002 = vmatpush2.msra.mxu0 0.0
        %4003 = vmatprep.subr.mxu0 0.0
        %4004 = vmatpush2.msra.mxu0 0.0
        %4005 = vmatprep.subr.mxu0 0.0
        %4006 = vmatpush2.msra.mxu0 0.0
        %4007 = vmatprep.subr.mxu0 0.0
        %4008 = vmatpush2.msra.mxu0 0.0
        %4009 = vmatprep.subr.mxu0 0.0
        %4010 = vmatpush2.msra.mxu0 0.0
        %4011 = vmatprep.subr.mxu0 0.0
        %4012 = vmatpush2.msra.mxu0 0.0
        %4013 = vmatprep.subr.mxu0 0.0
        %4014 = vmatpush2.msra.mxu0 0.0
        %4015 = vmatprep.subr.mxu0 0.0
        %4016 = vmatpush2.msra.mxu0 %v3955
        %4017 = vmatprep.subr.mxu0 0.0
        %4018 = vmatpush2.msra.mxu0 %v3927
        %4019 = vmatprep.subr.mxu0 0.0
        %4020 = vmatpush2.msra.mxu0 %v3926
        %4021 = vmatprep.mubr.f32.mxu0 %v3937
        %4022 = vmatmul.mubr.f32.gmra.mxu0 %v3902
        %v4023 = vpop.f32.mrf.mxu0
        %v4024 = vadd.f32 %v3934, %v4023
        %v4025 = vpop.f32.mrf.mxu0
        %4026 = vmatprep.mubr.f32.mxu0 %v3939
        %4027 = vmatmul.mubr.f32.gmra.mxu0 %v3903
        %v4028 = vpop.f32.mrf.mxu0
        %v4029 = vadd.f32 %v3934, %v4028
        %v4030 = vpop.f32.mrf.mxu0
        %4031 = vmatprep.mubr.f32.mxu0 %v3941
        %4032 = vmatmul.mubr.f32.gmra.mxu0 %v3904
        %v4033 = vpop.f32.mrf.mxu0
        %v4034 = vadd.f32 %v3934, %v4033
        %v4035 = vpop.f32.mrf.mxu0
        %4036 = vmatprep.mubr.f32.mxu0 %v3943
        %4037 = vmatmul.mubr.f32.gmra.mxu0 %v3905
        %v4038 = vpop.f32.mrf.mxu0
        %v4039 = vadd.f32 %v3934, %v4038
        %v4040 = vpop.f32.mrf.mxu0
        %4041 = vmatprep.mubr.f32.mxu0 %v3945
        %4042 = vmatmul.mubr.f32.gmra.mxu0 %v3906
        %v4043 = vpop.f32.mrf.mxu0
        %v4044 = vadd.f32 %v3934, %v4043
        %v4045 = vpop.f32.mrf.mxu0
        %4046 = vmatprep.mubr.f32.mxu0 %v3947
        %4047 = vmatmul.mubr.f32.gmra.mxu0 %v3907
        %v4048 = vpop.f32.mrf.mxu0
        %v4049 = vadd.f32 %v3934, %v4048
        %v4050 = vpop.f32.mrf.mxu0
        %4051 = vmatprep.mubr.f32.mxu0 %v3949
        %4052 = vmatmul.mubr.f32.gmra.mxu0 %v3908
        %v4053 = vpop.f32.mrf.mxu0
        %v4054 = vadd.f32 %v3934, %v4053
        %v4055 = vpop.f32.mrf.mxu0
        %4056 = vmatprep.mubr.f32.mxu0 %v3951
        %4057 = vmatmul.mubr.f32.gmra.mxu0 %v3909
        %v4058 = vpop.f32.mrf.mxu0
        %v4059 = vadd.f32 %v3934, %v4058
        %v4060 = vpop.f32.mrf.mxu0
        %4061 = vdwg.mxu0
        %4062 = vst.msk [vmem:[#allocation4] sm:$0xff] %vm1591, %v4024
        %4063 = vst.msk [vmem:[#allocation4 + $0x8] sm:$0xff] %vm1591, %v4029
        %4064 = vst.msk [vmem:[#allocation4 + $0x10] sm:$0xff] %vm1591, %v4034
        %4065 = vst.msk [vmem:[#allocation4 + $0x18] sm:$0xff] %vm1591, %v4039
        %4066 = vst.msk [vmem:[#allocation4 + $0x20] sm:$0xff] %vm1591, %v4044
        %4067 = vst.msk [vmem:[#allocation4 + $0x28] sm:$0xff] %vm1591, %v4049
        %4068 = vst.msk [vmem:[#allocation4 + $0x30] sm:$0xff] %vm1591, %v4054
        %4069 = vst.msk [vmem:[#allocation4 + $0x38] sm:$0xff] %vm1591, %v4059
        %v4070 = vld [vmem:[#allocation4] sm:$0x1]
        %v4071 = vld [vmem:[#allocation4 + $0x1] sm:$0x1]
        %v4072 = vld [vmem:[#allocation4 + $0x8] sm:$0x1]
        %v4073 = vld [vmem:[#allocation4 + $0x9] sm:$0x1]
        %v4074 = vmax.f32 %v4070, %v4071
        %v4075 = vmax.f32 %v4072, %v4073
        %v4076 = vmax.f32 %v4074, %v4075
        %v4077 = vld [vmem:[#allocation4 + $0x2] sm:$0x1]
        %v4078 = vld [vmem:[#allocation4 + $0x3] sm:$0x1]
        %v4079 = vld [vmem:[#allocation4 + $0xa] sm:$0x1]
        %v4080 = vld [vmem:[#allocation4 + $0xb] sm:$0x1]
        %v4081 = vmax.f32 %v4077, %v4078
        %v4082 = vmax.f32 %v4079, %v4080
        %v4083 = vmax.f32 %v4081, %v4082
        %v4084 = vld [vmem:[#allocation4 + $0x4] sm:$0x1]
        %v4085 = vld [vmem:[#allocation4 + $0x5] sm:$0x1]
        %v4086 = vld [vmem:[#allocation4 + $0xc] sm:$0x1]
        %v4087 = vld [vmem:[#allocation4 + $0xd] sm:$0x1]
        %v4088 = vmax.f32 %v4084, %v4085
        %v4089 = vmax.f32 %v4086, %v4087
        %v4090 = vmax.f32 %v4088, %v4089
        %v4091 = vld [vmem:[#allocation4 + $0x6] sm:$0x1]
        %v4092 = vld [vmem:[#allocation4 + $0x7] sm:$0x1]
        %v4093 = vld [vmem:[#allocation4 + $0xe] sm:$0x1]
        %v4094 = vld [vmem:[#allocation4 + $0xf] sm:$0x1]
        %v4095 = vmax.f32 %v4091, %v4092
        %v4096 = vmax.f32 %v4093, %v4094
        %v4097 = vmax.f32 %v4095, %v4096
        %v4098 = vld [vmem:[#allocation4 + $0x10] sm:$0x1]
        %v4099 = vld [vmem:[#allocation4 + $0x11] sm:$0x1]
        %v4100 = vld [vmem:[#allocation4 + $0x18] sm:$0x1]
        %v4101 = vld [vmem:[#allocation4 + $0x19] sm:$0x1]
        %v4102 = vmax.f32 %v4098, %v4099
        %v4103 = vmax.f32 %v4100, %v4101
        %v4104 = vmax.f32 %v4102, %v4103
        %v4105 = vld [vmem:[#allocation4 + $0x12] sm:$0x1]
        %v4106 = vld [vmem:[#allocation4 + $0x13] sm:$0x1]
        %v4107 = vld [vmem:[#allocation4 + $0x1a] sm:$0x1]
        %v4108 = vld [vmem:[#allocation4 + $0x1b] sm:$0x1]
        %v4109 = vmax.f32 %v4105, %v4106
        %v4110 = vmax.f32 %v4107, %v4108
        %v4111 = vmax.f32 %v4109, %v4110
        %v4112 = vld [vmem:[#allocation4 + $0x14] sm:$0x1]
        %v4113 = vld [vmem:[#allocation4 + $0x15] sm:$0x1]
        %v4114 = vld [vmem:[#allocation4 + $0x1c] sm:$0x1]
        %v4115 = vld [vmem:[#allocation4 + $0x1d] sm:$0x1]
        %v4116 = vmax.f32 %v4112, %v4113
        %v4117 = vmax.f32 %v4114, %v4115
        %v4118 = vmax.f32 %v4116, %v4117
        %v4119 = vld [vmem:[#allocation4 + $0x16] sm:$0x1]
        %v4120 = vld [vmem:[#allocation4 + $0x17] sm:$0x1]
        %v4121 = vld [vmem:[#allocation4 + $0x1e] sm:$0x1]
        %v4122 = vld [vmem:[#allocation4 + $0x1f] sm:$0x1]
        %v4123 = vmax.f32 %v4119, %v4120
        %v4124 = vmax.f32 %v4121, %v4122
        %v4125 = vmax.f32 %v4123, %v4124
        %v4126 = vld [vmem:[#allocation4 + $0x20] sm:$0x1]
        %v4127 = vld [vmem:[#allocation4 + $0x21] sm:$0x1]
        %v4128 = vld [vmem:[#allocation4 + $0x28] sm:$0x1]
        %v4129 = vld [vmem:[#allocation4 + $0x29] sm:$0x1]
        %v4130 = vmax.f32 %v4126, %v4127
        %v4131 = vmax.f32 %v4128, %v4129
        %v4132 = vmax.f32 %v4130, %v4131
        %v4133 = vld [vmem:[#allocation4 + $0x22] sm:$0x1]
        %v4134 = vld [vmem:[#allocation4 + $0x23] sm:$0x1]
        %v4135 = vld [vmem:[#allocation4 + $0x2a] sm:$0x1]
        %v4136 = vld [vmem:[#allocation4 + $0x2b] sm:$0x1]
        %v4137 = vmax.f32 %v4133, %v4134
        %v4138 = vmax.f32 %v4135, %v4136
        %v4139 = vmax.f32 %v4137, %v4138
        %v4140 = vld [vmem:[#allocation4 + $0x24] sm:$0x1]
        %v4141 = vld [vmem:[#allocation4 + $0x25] sm:$0x1]
        %v4142 = vld [vmem:[#allocation4 + $0x2c] sm:$0x1]
        %v4143 = vld [vmem:[#allocation4 + $0x2d] sm:$0x1]
        %v4144 = vmax.f32 %v4140, %v4141
        %v4145 = vmax.f32 %v4142, %v4143
        %v4146 = vmax.f32 %v4144, %v4145
        %v4147 = vld [vmem:[#allocation4 + $0x26] sm:$0x1]
        %v4148 = vld [vmem:[#allocation4 + $0x27] sm:$0x1]
        %v4149 = vld [vmem:[#allocation4 + $0x2e] sm:$0x1]
        %v4150 = vld [vmem:[#allocation4 + $0x2f] sm:$0x1]
        %v4151 = vmax.f32 %v4147, %v4148
        %v4152 = vmax.f32 %v4149, %v4150
        %v4153 = vmax.f32 %v4151, %v4152
        %v4154 = vld [vmem:[#allocation4 + $0x30] sm:$0x1]
        %v4155 = vld [vmem:[#allocation4 + $0x31] sm:$0x1]
        %v4156 = vld [vmem:[#allocation4 + $0x38] sm:$0x1]
        %v4157 = vld [vmem:[#allocation4 + $0x39] sm:$0x1]
        %v4158 = vmax.f32 %v4154, %v4155
        %v4159 = vmax.f32 %v4156, %v4157
        %v4160 = vmax.f32 %v4158, %v4159
        %v4161 = vld [vmem:[#allocation4 + $0x32] sm:$0x1]
        %v4162 = vld [vmem:[#allocation4 + $0x33] sm:$0x1]
        %v4163 = vld [vmem:[#allocation4 + $0x3a] sm:$0x1]
        %v4164 = vld [vmem:[#allocation4 + $0x3b] sm:$0x1]
        %v4165 = vmax.f32 %v4161, %v4162
        %v4166 = vmax.f32 %v4163, %v4164
        %v4167 = vmax.f32 %v4165, %v4166
        %v4168 = vld [vmem:[#allocation4 + $0x34] sm:$0x1]
        %v4169 = vld [vmem:[#allocation4 + $0x35] sm:$0x1]
        %v4170 = vld [vmem:[#allocation4 + $0x3c] sm:$0x1]
        %v4171 = vld [vmem:[#allocation4 + $0x3d] sm:$0x1]
        %v4172 = vmax.f32 %v4168, %v4169
        %v4173 = vmax.f32 %v4170, %v4171
        %v4174 = vmax.f32 %v4172, %v4173
        %v4175 = vld [vmem:[#allocation4 + $0x36] sm:$0x1]
        %v4176 = vld [vmem:[#allocation4 + $0x37] sm:$0x1]
        %v4177 = vld [vmem:[#allocation4 + $0x3e] sm:$0x1]
        %v4178 = vld [vmem:[#allocation4 + $0x3f] sm:$0x1]
        %v4179 = vmax.f32 %v4175, %v4176
        %v4180 = vmax.f32 %v4177, %v4178
        %v4181 = vmax.f32 %v4179, %v4180
        %4183 = vrot.lane.b32.xlu0 %v4083, 16
        %v4184 = vpop.permute.xlu0 %4183
        %4187 = vrot.lane.b32.xlu0 %v4090, 32
        %v4188 = vpop.permute.xlu0 %4187
        %4191 = vrot.lane.b32.xlu0 %v4097, 48
        %v4192 = vpop.permute.xlu0 %4191
        %4195 = vrot.lane.b32.xlu0 %v4104, 64
        %v4196 = vpop.permute.xlu0 %4195
        %4199 = vrot.lane.b32.xlu0 %v4111, 80
        %v4200 = vpop.permute.xlu0 %4199
        %4203 = vrot.lane.b32.xlu0 %v4118, 96
        %v4204 = vpop.permute.xlu0 %4203
        %4207 = vrot.lane.b32.xlu0 %v4125, 112
        %v4208 = vpop.permute.xlu0 %4207
        %4211 = vrot.lane.b32.xlu0 %v4139, 16
        %v4212 = vpop.permute.xlu0 %4211
        %4215 = vrot.lane.b32.xlu0 %v4146, 32
        %v4216 = vpop.permute.xlu0 %4215
        %4219 = vrot.lane.b32.xlu0 %v4153, 48
        %v4220 = vpop.permute.xlu0 %4219
        %4223 = vrot.lane.b32.xlu0 %v4160, 64
        %v4224 = vpop.permute.xlu0 %4223
        %4227 = vrot.lane.b32.xlu0 %v4167, 80
        %v4228 = vpop.permute.xlu0 %4227
        %4231 = vrot.lane.b32.xlu0 %v4174, 96
        %v4232 = vpop.permute.xlu0 %4231
        %4235 = vrot.lane.b32.xlu0 %v4181, 112
        %v4236 = vpop.permute.xlu0 %4235
        %v4238 = vsel %vm1591, %v4076, %v4184
        %v4239 = vsel %vm1627, %v4238, %v4188
        %v4240 = vsel %vm1663, %v4239, %v4192
        %v4241 = vsel %vm2451, %v4240, %v4196
        %vm4242 = vcmask 654336
        %v4243 = vsel %vm4242, %v4241, %v4200
        %v4244 = vsel %vm3901, %v4243, %v4204
        %vm4245 = vcmask 916480
        %v4246 = vsel %vm4245, %v4244, %v4208
        %v4247 = vsel %vm1591, %v4132, %v4212
        %v4248 = vsel %vm1627, %v4247, %v4216
        %v4249 = vsel %vm1663, %v4248, %v4220
        %v4250 = vsel %vm2451, %v4249, %v4224
        %v4251 = vsel %vm4242, %v4250, %v4228
        %v4252 = vsel %vm3901, %v4251, %v4232
        %v4253 = vsel %vm4245, %v4252, %v4236
        %v4254 = vmax.f32 %v4246, 0.0
        %v4255 = vmax.f32 %v4253, 0.0
        %v4256 = vld [vmem:[%s5] sm:$0xff]
        %v4257 = vld [vmem:[%s5 + $0x8] sm:$0xff]
        %v4258 = vld [vmem:[%s5 + $0x10] sm:$0xff]
        %v4259 = vld [vmem:[%s5 + $0x18] sm:$0xff]
        %v4260 = vld [vmem:[%s5 + $0x20] sm:$0xff]
        %v4261 = vld [vmem:[%s5 + $0x28] sm:$0xff]
        %v4262 = vld [vmem:[%s5 + $0x30] sm:$0xff]
        %v4263 = vld [vmem:[%s5 + $0x38] sm:$0xff]
        %v4264 = vld [vmem:[%s5 + $0x40] sm:$0xff]
        %v4265 = vld [vmem:[%s5 + $0x48] sm:$0xff]
        %v4266 = vld [vmem:[%s5 + $0x50] sm:$0xff]
        %v4267 = vld [vmem:[%s5 + $0x58] sm:$0xff]
        %v4268 = vld [vmem:[%s5 + $0x60] sm:$0xff]
        %v4269 = vld [vmem:[%s5 + $0x68] sm:$0xff]
        %v4270 = vld [vmem:[%s5 + $0x70] sm:$0xff]
        %v4271 = vld [vmem:[%s5 + $0x78] sm:$0xff]
        %v4272 = vld [vmem:[%s5 + $0x80] sm:$0xff]
        %v4273 = vld [vmem:[%s5 + $0x88] sm:$0xff]
        %v4274 = vld [vmem:[%s5 + $0x90] sm:$0xff]
        %v4275 = vld [vmem:[%s5 + $0x98] sm:$0xff]
        %v4276 = vld [vmem:[%s5 + $0xa0] sm:$0xff]
        %v4277 = vld [vmem:[%s5 + $0xa8] sm:$0xff]
        %v4278 = vld [vmem:[%s5 + $0xb0] sm:$0xff]
        %v4279 = vld [vmem:[%s5 + $0xb8] sm:$0xff]
        %v4280 = vld [vmem:[%s5 + $0xc0] sm:$0xff]
        %v4281 = vld [vmem:[%s5 + $0xc8] sm:$0xff]
        %v4282 = vld [vmem:[%s5 + $0xd0] sm:$0xff]
        %v4283 = vld [vmem:[%s5 + $0xd8] sm:$0xff]
        %v4284 = vld [vmem:[%s5 + $0xe0] sm:$0xff]
        %v4285 = vld [vmem:[%s5 + $0xe8] sm:$0xff]
        %v4286 = vld [vmem:[%s5 + $0xf0] sm:$0xff]
        %v4287 = vld [vmem:[%s5 + $0xf8] sm:$0xff]
        %v4288 = vld [vmem:[%s6] sm:$0x1]
        %4289 = vmatprep.subr.mxu0 0.0
        %4290 = vmatpush1.msra.mxu0 %v4271
        %4291 = vmatprep.subr.mxu0 0.0
        %4292 = vmatpush1.msra.mxu0 %v4270
        %4293 = vmatprep.subr.mxu0 0.0
        %4294 = vmatpush1.msra.mxu0 %v4269
        %4295 = vmatprep.subr.mxu0 0.0
        %4296 = vmatpush1.msra.mxu0 %v4268
        %4297 = vmatprep.subr.mxu0 0.0
        %4298 = vmatpush1.msra.mxu0 %v4267
        %4299 = vmatprep.subr.mxu0 0.0
        %4300 = vmatpush1.msra.mxu0 %v4266
        %4301 = vmatprep.subr.mxu0 0.0
        %4302 = vmatpush1.msra.mxu0 %v4265
        %4303 = vmatprep.subr.mxu0 0.0
        %4304 = vmatpush1.msra.mxu0 %v4264
        %4305 = vmatprep.subr.mxu0 0.0
        %4306 = vmatpush1.msra.mxu0 %v4263
        %4307 = vmatprep.subr.mxu0 0.0
        %4308 = vmatpush1.msra.mxu0 %v4262
        %4309 = vmatprep.subr.mxu0 0.0
        %4310 = vmatpush1.msra.mxu0 %v4261
        %4311 = vmatprep.subr.mxu0 0.0
        %4312 = vmatpush1.msra.mxu0 %v4260
        %4313 = vmatprep.subr.mxu0 0.0
        %4314 = vmatpush1.msra.mxu0 %v4259
        %4315 = vmatprep.subr.mxu0 0.0
        %4316 = vmatpush1.msra.mxu0 %v4258
        %4317 = vmatprep.subr.mxu0 0.0
        %4318 = vmatpush1.msra.mxu0 %v4257
        %4319 = vmatprep.subr.mxu0 0.0
        %4320 = vmatpush1.msra.mxu0 %v4256
        %4321 = vmatprep.subr.mxu0 0.0
        %4322 = vmatpush2.msra.mxu0 %v4287
        %4323 = vmatprep.subr.mxu0 0.0
        %4324 = vmatpush2.msra.mxu0 %v4286
        %4325 = vmatprep.subr.mxu0 0.0
        %4326 = vmatpush2.msra.mxu0 %v4285
        %4327 = vmatprep.subr.mxu0 0.0
        %4328 = vmatpush2.msra.mxu0 %v4284
        %4329 = vmatprep.subr.mxu0 0.0
        %4330 = vmatpush2.msra.mxu0 %v4283
        %4331 = vmatprep.subr.mxu0 0.0
        %4332 = vmatpush2.msra.mxu0 %v4282
        %4333 = vmatprep.subr.mxu0 0.0
        %4334 = vmatpush2.msra.mxu0 %v4281
        %4335 = vmatprep.subr.mxu0 0.0
        %4336 = vmatpush2.msra.mxu0 %v4280
        %4337 = vmatprep.subr.mxu0 0.0
        %4338 = vmatpush2.msra.mxu0 %v4279
        %4339 = vmatprep.subr.mxu0 0.0
        %4340 = vmatpush2.msra.mxu0 %v4278
        %4341 = vmatprep.subr.mxu0 0.0
        %4342 = vmatpush2.msra.mxu0 %v4277
        %4343 = vmatprep.subr.mxu0 0.0
        %4344 = vmatpush2.msra.mxu0 %v4276
        %4345 = vmatprep.subr.mxu0 0.0
        %4346 = vmatpush2.msra.mxu0 %v4275
        %4347 = vmatprep.subr.mxu0 0.0
        %4348 = vmatpush2.msra.mxu0 %v4274
        %4349 = vmatprep.subr.mxu0 0.0
        %4350 = vmatpush2.msra.mxu0 %v4273
        %4351 = vmatprep.subr.mxu0 0.0
        %4352 = vmatpush2.msra.mxu0 %v4272
        %4353 = vmatprep.mubr.f32.mxu0 %v4255
        %4354 = vmatmul.mubr.f32.gmra.mxu0 %v4254
        %v4355 = vpop.f32.mrf.mxu0
        %v4356 = vadd.f32 %v4288, %v4355
        %v4357 = vpop.f32.mrf.mxu0
        %4358 = vdwg.mxu0
        %v4359 = vmax.f32 %v4356, 0.0
        %v4360 = vld [vmem:[%s7] sm:$0xff]
        %v4361 = vld [vmem:[%s7 + $0x8] sm:$0xff]
        %v4362 = vld [vmem:[%s7 + $0x10] sm:$0xff]
        %v4363 = vld [vmem:[%s7 + $0x18] sm:$0xff]
        %v4364 = vld [vmem:[%s7 + $0x20] sm:$0xff]
        %v4365 = vld [vmem:[%s7 + $0x28] sm:$0xff]
        %v4366 = vld [vmem:[%s7 + $0x30] sm:$0xff]
        %v4367 = vld [vmem:[%s7 + $0x38] sm:$0xff]
        %v4368 = vld [vmem:[%s7 + $0x40] sm:$0xff]
        %v4369 = vld [vmem:[%s7 + $0x48] sm:$0xff]
        %v4370 = vld [vmem:[%s7 + $0x50] sm:$0xff]
        %v4371 = vld [vmem:[%s7 + $0x58] sm:$0xff]
        %v4372 = vld [vmem:[%s7 + $0x60] sm:$0xff]
        %v4373 = vld [vmem:[%s7 + $0x68] sm:$0xff]
        %v4374 = vld [vmem:[%s7 + $0x70] sm:$0xff]
        %v4375 = vld [vmem:[%s8] sm:$0x1]
        %vm4376 = vcmask 982016
        %v4378 = vsel %vm4376, %v4359, 0
        %4380 = vmatprep.subr.mxu0 0.0
        %4381 = vmatpush1.msra.mxu0 0.0
        %4382 = vmatprep.subr.mxu0 0.0
        %4383 = vmatpush1.msra.mxu0 %v4374
        %4384 = vmatprep.subr.mxu0 0.0
        %4385 = vmatpush1.msra.mxu0 %v4373
        %4386 = vmatprep.subr.mxu0 0.0
        %4387 = vmatpush1.msra.mxu0 %v4372
        %4388 = vmatprep.subr.mxu0 0.0
        %4389 = vmatpush1.msra.mxu0 %v4371
        %4390 = vmatprep.subr.mxu0 0.0
        %4391 = vmatpush1.msra.mxu0 %v4370
        %4392 = vmatprep.subr.mxu0 0.0
        %4393 = vmatpush1.msra.mxu0 %v4369
        %4394 = vmatprep.subr.mxu0 0.0
        %4395 = vmatpush1.msra.mxu0 %v4368
        %4396 = vmatprep.subr.mxu0 0.0
        %4397 = vmatpush1.msra.mxu0 %v4367
        %4398 = vmatprep.subr.mxu0 0.0
        %4399 = vmatpush1.msra.mxu0 %v4366
        %4400 = vmatprep.subr.mxu0 0.0
        %4401 = vmatpush1.msra.mxu0 %v4365
        %4402 = vmatprep.subr.mxu0 0.0
        %4403 = vmatpush1.msra.mxu0 %v4364
        %4404 = vmatprep.subr.mxu0 0.0
        %4405 = vmatpush1.msra.mxu0 %v4363
        %4406 = vmatprep.subr.mxu0 0.0
        %4407 = vmatpush1.msra.mxu0 %v4362
        %4408 = vmatprep.subr.mxu0 0.0
        %4409 = vmatpush1.msra.mxu0 %v4361
        %4410 = vmatprep.subr.mxu0 0.0
        %4411 = vmatpush1.msra.mxu0 %v4360
        %4412 = vmatprep.subr.mxu0 0.0
        %4413 = vmatpush2.msra.mxu0 0.0
        %4414 = vmatprep.subr.mxu0 0.0
        %4415 = vmatpush2.msra.mxu0 0.0
        %4416 = vmatprep.subr.mxu0 0.0
        %4417 = vmatpush2.msra.mxu0 0.0
        %4418 = vmatprep.subr.mxu0 0.0
        %4419 = vmatpush2.msra.mxu0 0.0
        %4420 = vmatprep.subr.mxu0 0.0
        %4421 = vmatpush2.msra.mxu0 0.0
        %4422 = vmatprep.subr.mxu0 0.0
        %4423 = vmatpush2.msra.mxu0 0.0
        %4424 = vmatprep.subr.mxu0 0.0
        %4425 = vmatpush2.msra.mxu0 0.0
        %4426 = vmatprep.subr.mxu0 0.0
        %4427 = vmatpush2.msra.mxu0 0.0
        %4428 = vmatprep.subr.mxu0 0.0
        %4429 = vmatpush2.msra.mxu0 0.0
        %4430 = vmatprep.subr.mxu0 0.0
        %4431 = vmatpush2.msra.mxu0 0.0
        %4432 = vmatprep.subr.mxu0 0.0
        %4433 = vmatpush2.msra.mxu0 0.0
        %4434 = vmatprep.subr.mxu0 0.0
        %4435 = vmatpush2.msra.mxu0 0.0
        %4436 = vmatprep.subr.mxu0 0.0
        %4437 = vmatpush2.msra.mxu0 0.0
        %4438 = vmatprep.subr.mxu0 0.0
        %4439 = vmatpush2.msra.mxu0 0.0
        %4440 = vmatprep.subr.mxu0 0.0
        %4441 = vmatpush2.msra.mxu0 0.0
        %4442 = vmatprep.subr.mxu0 0.0
        %4443 = vmatpush2.msra.mxu0 0.0
        %4444 = vmatprep.mubr.f32.mxu0 0.0
        %4445 = vmatmul.mubr.f32.gmra.mxu0 %v4378
        %v4446 = vpop.f32.mrf.mxu0
        %v4447 = vadd.f32 %v4375, %v4446
        %v4448 = vpop.f32.mrf.mxu0
        %4449 = vdwg.mxu0
        %v4450 = vmax.f32 %v4447, 0.0
        %v4451 = vld [vmem:[%s9] sm:$0xff]
        %v4452 = vld [vmem:[%s9 + $0x8] sm:$0xff]
        %v4453 = vld [vmem:[%s9 + $0x10] sm:$0xff]
        %v4454 = vld [vmem:[%s9 + $0x18] sm:$0xff]
        %v4455 = vld [vmem:[%s9 + $0x20] sm:$0xff]
        %v4456 = vld [vmem:[%s9 + $0x28] sm:$0xff]
        %v4457 = vld [vmem:[%s9 + $0x30] sm:$0xff]
        %v4458 = vld [vmem:[%s9 + $0x38] sm:$0xff]
        %v4459 = vld [vmem:[%s9 + $0x40] sm:$0xff]
        %v4460 = vld [vmem:[%s9 + $0x48] sm:$0xff]
        %v4461 = vld [vmem:[%s9 + $0x50] sm:$0xf]
        %v4462 = vld [vmem:[%s10] sm:$0x1]
        %v4464 = vsel %vm3531, %v4450, 0
        %vm4466 = vcmask 1043456
        %v4468 = vsel %vm4466, %v4461, 0
        %4470 = vmatprep.subr.mxu0 0.0
        %4471 = vmatpush1.msra.mxu0 0.0
        %4472 = vmatprep.subr.mxu0 0.0
        %4473 = vmatpush1.msra.mxu0 0.0
        %4474 = vmatprep.subr.mxu0 0.0
        %4475 = vmatpush1.msra.mxu0 0.0
        %4476 = vmatprep.subr.mxu0 0.0
        %4477 = vmatpush1.msra.mxu0 0.0
        %4478 = vmatprep.subr.mxu0 0.0
        %4479 = vmatpush1.msra.mxu0 0.0
        %4480 = vmatprep.subr.mxu0 0.0
        %4481 = vmatpush1.msra.mxu0 %v4468
        %4482 = vmatprep.subr.mxu0 0.0
        %4483 = vmatpush1.msra.mxu0 %v4460
        %4484 = vmatprep.subr.mxu0 0.0
        %4485 = vmatpush1.msra.mxu0 %v4459
        %4486 = vmatprep.subr.mxu0 0.0
        %4487 = vmatpush1.msra.mxu0 %v4458
        %4488 = vmatprep.subr.mxu0 0.0
        %4489 = vmatpush1.msra.mxu0 %v4457
        %4490 = vmatprep.subr.mxu0 0.0
        %4491 = vmatpush1.msra.mxu0 %v4456
        %4492 = vmatprep.subr.mxu0 0.0
        %4493 = vmatpush1.msra.mxu0 %v4455
        %4494 = vmatprep.subr.mxu0 0.0
        %4495 = vmatpush1.msra.mxu0 %v4454
        %4496 = vmatprep.subr.mxu0 0.0
        %4497 = vmatpush1.msra.mxu0 %v4453
        %4498 = vmatprep.subr.mxu0 0.0
        %4499 = vmatpush1.msra.mxu0 %v4452
        %4500 = vmatprep.subr.mxu0 0.0
        %4501 = vmatpush1.msra.mxu0 %v4451
        %4502 = vmatprep.subr.mxu0 0.0
        %4503 = vmatpush2.msra.mxu0 0.0
        %4504 = vmatprep.subr.mxu0 0.0
        %4505 = vmatpush2.msra.mxu0 0.0
        %4506 = vmatprep.subr.mxu0 0.0
        %4507 = vmatpush2.msra.mxu0 0.0
        %4508 = vmatprep.subr.mxu0 0.0
        %4509 = vmatpush2.msra.mxu0 0.0
        %4510 = vmatprep.subr.mxu0 0.0
        %4511 = vmatpush2.msra.mxu0 0.0
        %4512 = vmatprep.subr.mxu0 0.0
        %4513 = vmatpush2.msra.mxu0 0.0
        %4514 = vmatprep.subr.mxu0 0.0
        %4515 = vmatpush2.msra.mxu0 0.0
        %4516 = vmatprep.subr.mxu0 0.0
        %4517 = vmatpush2.msra.mxu0 0.0
        %4518 = vmatprep.subr.mxu0 0.0
        %4519 = vmatpush2.msra.mxu0 0.0
        %4520 = vmatprep.subr.mxu0 0.0
        %4521 = vmatpush2.msra.mxu0 0.0
        %4522 = vmatprep.subr.mxu0 0.0
        %4523 = vmatpush2.msra.mxu0 0.0
        %4524 = vmatprep.subr.mxu0 0.0
        %4525 = vmatpush2.msra.mxu0 0.0
        %4526 = vmatprep.subr.mxu0 0.0
        %4527 = vmatpush2.msra.mxu0 0.0
        %4528 = vmatprep.subr.mxu0 0.0
        %4529 = vmatpush2.msra.mxu0 0.0
        %4530 = vmatprep.subr.mxu0 0.0
        %4531 = vmatpush2.msra.mxu0 0.0
        %4532 = vmatprep.subr.mxu0 0.0
        %4533 = vmatpush2.msra.mxu0 0.0
        %4534 = vmatprep.mubr.f32.mxu0 0.0
        %4535 = vmatmul.mubr.f32.gmra.mxu0 %v4464
        %v4536 = vpop.f32.mrf.mxu0
        %v4537 = vadd.f32 %v4462, %v4536
        %v4538 = vpop.f32.mrf.mxu0
        %4539 = vdwg.mxu0
        %vm4540 = vcmask 73728
        %4541 = vst.msk [vmem:[%s378] sm:$0x1] %vm4540, %v4537
        %s4542 = sand.u32 %s269, 1
        %s4543 = scalar_lea.sflag [#allocation6], %s4542
        %s4544 = sand.u32 %s269, 1
        %s4545 = scalar_lea.vmem [#allocation5], %s4544
        // Predicated region
        $region65: #{tpu_custom_call.1} parent=63 // pred_check
          %p4546 = pneg %p279
        $region66: #{tpu_custom_call.1} parent=63 // pred_check_branch
          %4548 = sbr.rel (%p4546) target = $region68
        $region67: #{tpu_custom_call.1} parent=63 // pred_region
          %s4550 = ssub.s32 16, 16
          %4551 = vsyncadd %s4543, %s4550
          %s4552 = smul.addr %s25, 16
          %s4553 = scalar_lea.hbm %s11, %s4552
          %s4555 = sshll.u32 %s4545, 4
          %s4556 = int_to_ptr.vmem [resolvable:$true] %s4555
          %4558 = dma.vmem_to_hbm [thread:$0]  %s4556, 16, %s4553, %s4543
        $region68: #{tpu_custom_call.1} parent=63 // pred_fallthru
          _
      $region64: #{tpu_custom_call.1} parent=5 // pred_fallthru
        _
      %p4559 = scmp.le.s32.totalorder 2, %s20
      // Predicated region
      $region69: #{tpu_custom_call.1} parent=5 // pred_check
        %p4560 = pneg %p4559
      $region70: #{tpu_custom_call.1} parent=5 // pred_check_branch
        %4562 = sbr.rel (%p4560) target = $region72
      $region71: #{tpu_custom_call.1} parent=5 // pred_region
        %s4563 = ssub.s32 %s20, 2
        // Predicated region
        $region73: #{tpu_custom_call.1} parent=71 // pred_check
          %p4564 = pneg %p285
        $region74: #{tpu_custom_call.1} parent=71 // pred_check_branch
          %4566 = sbr.rel (%p4564) target = $region76
        $region75: #{tpu_custom_call.1} parent=71 // pred_region
          %s4567 = sand.u32 %s270, 1
          %s4568 = scalar_lea.sflag [#allocation6], %s4567
          %s4569 = sand.u32 %s270, 1
          %s4570 = scalar_lea.vmem [#allocation5], %s4569
          %4571 = dma.done %s4568, 16
        $region76: #{tpu_custom_call.1} parent=71 // pred_fallthru
          _
      $region72: #{tpu_custom_call.1} parent=5 // pred_fallthru
        _
    $region6: #{tpu_custom_call.1} parent=1 // loop_footer
      %s24 = sadd.s32 1, %s20
    $region7: #{tpu_custom_call.1} parent=1 // loop_footer_branch
      %19 = sbr.rel target = $region3
    $region8: #{tpu_custom_call.1} parent=1 // loop_exit
      _
    %4572 = vsyncpa [#allocation6], 1
    %s4573 = scalar_lea.sflag [#allocation6], 1
    %4574 = vsyncpa %s4573, 1

</llo_original>
